<compile_context>
chip_gen: v5e
topology: v5e:2x2
jax: 0.10.0
libtpu: 0.0.40
codegen_flags: <defaults>
</compile_context>

<pallas_src>
import jax
import jax.numpy as jnp
from jax import lax
from jax.experimental import pallas as pl
from jax.experimental.pallas import tpu as pltpu

CLAMP_MIN = 0.1217971
CLAMP_MAX = 1.202422


def linear_clamp_kernel(x_ref, w_ref, b_ref, o_ref):
    """One (tm, tn) output tile; K is streamed along grid axis 2.

    x_ref: (tm, tk)   w_ref: (tk, tn)   b_ref: (1, tn)   o_ref: (tm, tn) f32
    The output block index is K-invariant, so o_ref stays resident in VMEM and
    doubles as the f32 accumulator.
    """
    k = pl.program_id(2)

    @pl.when(k == 0)
    def _init():
        o_ref[...] = jnp.zeros_like(o_ref)

    o_ref[...] += jnp.dot(
        x_ref[...], w_ref[...], preferred_element_type=jnp.float32
    )

    @pl.when(k == pl.num_programs(2) - 1)
    def _finalize():
        out = o_ref[...] + b_ref[...]               # (tm, tn) + (1, tn) broadcast
        o_ref[...] = jnp.clip(out, CLAMP_MIN, CLAMP_MAX)


def _fused_xla(x, weight, bias):
    """Fallback for sub-tile problems (lane-sparse output => XLA wins)."""
    o = jnp.dot(x, weight.T, preferred_element_type=jnp.float32) + bias
    return jnp.clip(o, CLAMP_MIN, CLAMP_MAX)


def _round_up(v, m):
    return ((v + m - 1) // m) * m


def linear_clamp(x, weight, bias, *, tm=512, tn=512, tk=1024):
    """x: (M, K) f32, weight: (N, K) f32 (PyTorch Linear layout), bias: (N,) f32."""
    M, K = x.shape
    N, K2 = weight.shape
    assert K == K2, (K, K2)

    # Lane-sparse / sub-tile problems: masked partial stores + launch overhead
    # dominate any custom kernel; use the fused XLA expression instead.
    if M < 8 or N < 128:
        return _fused_xla(x, weight, bias)

    # One-time host-side transpose: kernel consumes (K, N) so the MXU RHS tile
    # is already (tk, tn) — no in-kernel XLU transpose per K step.
    w_t = weight.T                      # (K, N)
    b2d = bias.reshape(1, N)            # kept 2-D so it maps onto a (1, tn) tile

    # Clamp tiles to the problem (block_shape == full array dim is always legal).
    tm = min(tm, M)
    tn = min(tn, N)

    # v7x has two TensorCores: keep >= 2 parallel M/N blocks when possible so
    # dimension_semantics can actually shard the grid.
    if pl.cdiv(M, tm) == 1 and pl.cdiv(N, tn) == 1 and M >= 256:
        tm = _round_up(pl.cdiv(M, 2), 128)

    # K tiling: never feed a partial K tile into the accumulator. Small K fits
    # in one full-extent block; large ragged K is zero-padded up to a multiple
    # of tk (zeros contribute nothing to the dot), keeping the pipeline intact
    # instead of degrading to a monolithic VMEM-blowing tk=K block.
    if K <= tk:
        tk = K
        Kp = K
    else:
        Kp = _round_up(K, tk)
        if Kp != K:
            x = jnp.pad(x, ((0, 0), (0, Kp - K)))
            w_t = jnp.pad(w_t, ((0, Kp - K), (0, 0)))

    gm, gn, gk = pl.cdiv(M, tm), pl.cdiv(N, tn), Kp // tk
    grid = (gm, gn, gk)

    cost = pl.CostEstimate(
        flops=2 * M * N * Kp,
        transcendentals=0,
        # x re-streamed once per N block, w once per M block.
        bytes_accessed=4 * (M * Kp * gn + Kp * N * gm + N + M * N),
    )

    return pl.pallas_call(
        linear_clamp_kernel,
        out_shape=jax.ShapeDtypeStruct((M, N), jnp.float32),
        grid_spec=pltpu.PrefetchScalarGridSpec(
            num_scalar_prefetch=0,
            grid=grid,
            in_specs=[
                pl.BlockSpec((tm, tk), lambda i, j, k: (i, k)),   # x tile
                pl.BlockSpec((tk, tn), lambda i, j, k: (k, j)),   # w^T tile (K, N)
                pl.BlockSpec((1, tn), lambda i, j, k: (0, j)),    # bias: K-invariant
            ],
            # K-invariant block index => output tile stays resident across the
            # reduction and serves as the f32 accumulator.
            out_specs=pl.BlockSpec((tm, tn), lambda i, j, k: (i, j)),
        ),
        compiler_params=pltpu.CompilerParams(
            dimension_semantics=("parallel", "parallel", "arbitrary"),
            vmem_limit_bytes=48 * 1024 * 1024,
        ),
        cost_estimate=cost,
    )(x, w_t, b2d)


def _reference(x, weight, bias):
    o = jnp.dot(x, weight.T, preferred_element_type=jnp.float32,
                precision=lax.Precision.HIGHEST) + bias
    return jnp.clip(o, CLAMP_MIN, CLAMP_MAX)


if __name__ == "__main__":
    key = jax.random.PRNGKey(0)

    # ---- Module-sized test: Linear(in=5, out=7), batch=4 (fused XLA path) ----
    kx, kw, kb = jax.random.split(key, 3)
    in_features, out_features, batch = 5, 7, 4
    bound = 1.0 / jnp.sqrt(jnp.float32(in_features))
    weight = jax.random.uniform(
        kw, (out_features, in_features), jnp.float32, minval=-bound, maxval=bound
    )
    bias = jax.random.uniform(
        kb, (out_features,), jnp.float32, minval=-bound, maxval=bound
    )
    x2 = jax.random.normal(kx, (batch, in_features), jnp.float32)

    out = linear_clamp(x2, weight, bias)
    jax.block_until_ready(out)
    ref = _reference(x2, weight, bias)
    assert out.shape == (batch, out_features)
    assert jnp.allclose(out, ref, atol=1e-5, rtol=1e-5)

    # ---- Pallas path: tiled K accumulation (grid (2, 1, 2) after v7x split) ----
    k2x, k2w, k2b = jax.random.split(jax.random.PRNGKey(1), 3)
    M2, K2, N2 = 512, 2048, 512
    xl = jax.random.normal(k2x, (M2, K2), jnp.float32) * 0.05
    wl = jax.random.normal(k2w, (N2, K2), jnp.float32) * 0.05
    bl = jax.random.normal(k2b, (N2,), jnp.float32) * 0.05

    out_l = linear_clamp(xl, wl, bl)
    jax.block_until_ready(out_l)
    ref_l = _reference(xl, wl, bl)
    assert out_l.shape == (M2, N2)
    assert jnp.allclose(out_l, ref_l, atol=2e-3, rtol=2e-3)

    # ---- Pallas path: ragged K exercising the zero-pad tail handling ----
    k3x, k3w, k3b = jax.random.split(jax.random.PRNGKey(2), 3)
    M3, K3, N3 = 256, 1300, 384
    xr = jax.random.normal(k3x, (M3, K3), jnp.float32) * 0.05
    wr = jax.random.normal(k3w, (N3, K3), jnp.float32) * 0.05
    br = jax.random.normal(k3b, (N3,), jnp.float32) * 0.05

    out_r = linear_clamp(xr, wr, br)
    jax.block_until_ready(out_r)
    ref_r = _reference(xr, wr, br)
    assert out_r.shape == (M3, N3)
    assert jnp.allclose(out_r, ref_r, atol=2e-3, rtol=2e-3)

    print("KERNEL_OK")
</pallas_src>

<mosaic_0001>
module attributes {stable_mosaic.version = 11 : i64} {
  func.func @linear_clamp_kernel(%arg0: i32, %arg1: i32, %arg2: i32, %arg3: memref<256x1024xf32, #tpu.memory_space<vmem>>, %arg4: memref<1024x512xf32, #tpu.memory_space<vmem>>, %arg5: memref<1x512xf32, #tpu.memory_space<vmem>>, %arg6: memref<256x512xf32, #tpu.memory_space<vmem>>) attributes {dimension_semantics = [#tpu.dimension_semantics<parallel>, #tpu.dimension_semantics<parallel>, #tpu.dimension_semantics<arbitrary>], iteration_bounds = array<i64: 2, 1, 2>, scalar_prefetch = 0 : i64, scratch_operands = 0 : i64, tpu.core_type = #tpu.core_type<tc>, window_params = [{transform_indices = @transform_0, window_bounds = array<i64: 256, 1024>}, {transform_indices = @transform_1, window_bounds = array<i64: 1024, 512>}, {transform_indices = @transform_2, window_bounds = array<i64: 1, 512>}, {transform_indices = @transform_3, window_bounds = array<i64: 256, 512>}]} {
    %c0_i32 = arith.constant 0 : i32
    %0 = arith.cmpi eq, %arg2, %c0_i32 : i32
    %1 = arith.extui %0 : i1 to i32
    %c0_i32_0 = arith.constant 0 : i32
    %2 = arith.cmpi ne, %1, %c0_i32_0 : i32
    scf.if %2 {
      %cst_9 = arith.constant 0.000000e+00 : f32
      %12 = vector.broadcast %cst_9 : f32 to vector<256x512xf32>
      %c0_10 = arith.constant 0 : index
      %c0_11 = arith.constant 0 : index
      %13 = vector.load %arg6[%c0_10, %c0_11] : memref<256x512xf32, #tpu.memory_space<vmem>>, vector<256x512xf32>
      tpu.vector_store %arg6[%c0_10, %c0_11], %12 {strides = array<i32>} : memref<256x512xf32, #tpu.memory_space<vmem>>, vector<256x512xf32>,
    } else {
    }
    %c0 = arith.constant 0 : index
    %c0_1 = arith.constant 0 : index
    %3 = vector.load %arg6[%c0, %c0_1] : memref<256x512xf32, #tpu.memory_space<vmem>>, vector<256x512xf32>
    %c0_2 = arith.constant 0 : index
    %c0_3 = arith.constant 0 : index
    %4 = vector.load %arg3[%c0_2, %c0_3] : memref<256x1024xf32, #tpu.memory_space<vmem>>, vector<256x1024xf32>
    %c0_4 = arith.constant 0 : index
    %c0_5 = arith.constant 0 : index
    %5 = vector.load %arg4[%c0_4, %c0_5] : memref<1024x512xf32, #tpu.memory_space<vmem>>, vector<1024x512xf32>
    %cst = arith.constant dense<0.000000e+00> : vector<256x512xf32>
    %6 = tpu.matmul %4, %5, %cst {dimension_numbers = #tpu.dot_dimension_numbers<[1], [0], [0], [1], [0, 0, 1, 1], [], []>} : vector<256x1024xf32>, vector<1024x512xf32>, vector<256x512xf32> -> vector<256x512xf32>
    %7 = arith.addf %3, %6 : vector<256x512xf32>
    %c0_6 = arith.constant 0 : index
    %c0_7 = arith.constant 0 : index
    %8 = vector.load %arg6[%c0_6, %c0_7] : memref<256x512xf32, #tpu.memory_space<vmem>>, vector<256x512xf32>
    tpu.vector_store %arg6[%c0_6, %c0_7], %7 {strides = array<i32>} : memref<256x512xf32, #tpu.memory_space<vmem>>, vector<256x512xf32>,
    %c1_i32 = arith.constant 1 : i32
    %9 = arith.cmpi eq, %arg2, %c1_i32 : i32
    %10 = arith.extui %9 : i1 to i32
    %c0_i32_8 = arith.constant 0 : i32
    %11 = arith.cmpi ne, %10, %c0_i32_8 : i32
    scf.if %11 {
      %c0_9 = arith.constant 0 : index
      %c0_10 = arith.constant 0 : index
      %12 = vector.load %arg6[%c0_9, %c0_10] : memref<256x512xf32, #tpu.memory_space<vmem>>, vector<256x512xf32>
      %c0_11 = arith.constant 0 : index
      %c0_12 = arith.constant 0 : index
      %13 = vector.load %arg5[%c0_11, %c0_12] : memref<1x512xf32, #tpu.memory_space<vmem>>, vector<1x512xf32>
      %14 = vector.broadcast %13 : vector<1x512xf32> to vector<256x512xf32>
      %15 = arith.addf %12, %14 : vector<256x512xf32>
      %cst_13 = arith.constant 0.1217971 : f32
      %cst_14 = arith.constant 1.20242202 : f32
      %16 = vector.broadcast %cst_13 : f32 to vector<256x512xf32>
      %17 = arith.maximumf %16, %15 : vector<256x512xf32>
      %18 = vector.broadcast %cst_14 : f32 to vector<256x512xf32>
      %19 = arith.minimumf %18, %17 : vector<256x512xf32>
      %c0_15 = arith.constant 0 : index
      %c0_16 = arith.constant 0 : index
      %20 = vector.load %arg6[%c0_15, %c0_16] : memref<256x512xf32, #tpu.memory_space<vmem>>, vector<256x512xf32>
      tpu.vector_store %arg6[%c0_15, %c0_16], %19 {strides = array<i32>} : memref<256x512xf32, #tpu.memory_space<vmem>>, vector<256x512xf32>,
    } else {
    }
    return
  }
  func.func @transform_0(%arg0: i32, %arg1: i32, %arg2: i32) -> (i32, i32) {
    %c0_i32 = arith.constant 0 : i32
    return %arg0, %arg2 : i32, i32
  }
  func.func @transform_1(%arg0: i32, %arg1: i32, %arg2: i32) -> (i32, i32) {
    %c0_i32 = arith.constant 0 : i32
    return %arg2, %arg1 : i32, i32
  }
  func.func @transform_2(%arg0: i32, %arg1: i32, %arg2: i32) -> (i32, i32) {
    %c0_i32 = arith.constant 0 : i32
    %c0_i32_0 = arith.constant 0 : i32
    return %c0_i32, %arg1 : i32, i32
  }
  func.func @transform_3(%arg0: i32, %arg1: i32, %arg2: i32) -> (i32, i32) {
    %c0_i32 = arith.constant 0 : i32
    return %arg0, %arg1 : i32, i32
  }
}

</mosaic_0001>

<llo_original>
// kernel: tpu_custom_call.1
$region0: #{tpu_custom_call.1}
  #allocation0 [shape = 'u32[]', space=smem, size = 0x4, offset = 0x4, fixed_abs, tag = 'smem constant byte address 0x4 - core index']
  #allocation1 [shape = 'u32[72,128]{1,0:T(1,128)}', space=vmem, size = 0x9000, scoped, tag = 'internal scratch']
  %s0 = inlined_call_operand.hbm [shape: f32[512,2048], index: 0, kind: input, shape index: {}]
  %s1 = inlined_call_operand.hbm [shape: f32[2048,512], index: 1, kind: input, shape index: {}]
  %s2 = inlined_call_operand.hbm [shape: f32[1,512], index: 2, kind: input, shape index: {}]
  %s3 = inlined_call_operand.hbm [shape: f32[512,512], index: 3, kind: output, shape index: {}]
  %s4 = sld [smem:[#allocation0]]
  $region65: #{tpu_custom_call.1} parent=0
    _
  %s6 = ssub.s32 1, %s4
  %s7 = scalar_select 0, %s6, %s4
  $region1: #{tpu_custom_call.1} parent=0
    #allocation2 [shape = 'u8[2097152]{0}', space=vmem, size = 0x200000, scoped, tag = 'input window, operand 0']
    #allocation3 [shape = 's32[2]{0}', space=sflag, size = 0x8, scoped, tag = 'scoped memory for tpu_custom_call.1']
    #allocation4 [shape = 's32[2]{0}', space=sflag, size = 0x8, scoped, tag = 'scoped memory for tpu_custom_call.1']
    #allocation5 [shape = 'u8[4194304]{0}', space=vmem, size = 0x400000, scoped, tag = 'input window, operand 1']
    #allocation6 [shape = 's32[2]{0}', space=sflag, size = 0x8, scoped, tag = 'scoped memory for tpu_custom_call.1']
    #allocation7 [shape = 'u8[2048]{0}', space=vmem, size = 0x800, scoped, tag = 'input window, operand 2, single buffered']
    #allocation8 [shape = 'u8[1048576]{0}', space=vmem, size = 0x100000, scoped, tag = 'output window, operand 0']
    %8 = vsyncpa [#allocation3], 0
    %s9 = scalar_lea.sflag [#allocation3], 1
    %10 = vsyncpa %s9, 0
    %11 = vsyncpa [#allocation6], 0
    %s12 = scalar_lea.sflag [#allocation6], 1
    %13 = vsyncpa %s12, 0
    %14 = vsyncpa [#allocation4], 0
    %s15 = scalar_lea.sflag [#allocation4], 1
    %16 = vsyncpa %s15, 0
    loop: start=0, step=1, limit=6
    $region2: #{tpu_custom_call.1} parent=1 // loop_pre_header
      _
    $region3: #{tpu_custom_call.1} parent=1 // loop_header
      %s18 = sphi 0, %s22
      %p19 = scmp.ge.s32.totalorder %s18, 6
      %s25 = sphi 0, %s44
      %s26 = sphi 0, %s40
      %s27 = sphi 0, %s36
      %s28 = sphi 0, %s25
      %s29 = sphi 0, %s26
      %s30 = sphi 0, %s27
      %s31 = sphi 0, %s28
      %s32 = sphi 0, %s29
      %s33 = sphi 0, %s30
      %s49 = sphi 0, %s51
      %s52 = sphi 0, %s49
      %s53 = sphi 0, %s52
      %s69 = sphi 0, %s53
      %s77 = sphi 0, %s79
      %s80 = sphi 0, %s77
      %s81 = sphi 0, %s80
      %s97 = sphi 0, %s81
      %s103 = sphi 0, %s105
      %s106 = sphi 0, %s103
      %s107 = sphi 0, %s106
      %s123 = sphi 0, %s107
      %s131 = sphi 0, %s133
      %s134 = sphi 0, %s131
      %s135 = sphi 0, %s134
      %s151 = sphi 0, %s135
    $region4: #{tpu_custom_call.1} parent=1 // loop_header_branch
      %21 = sbr.rel (%p19) target = $region8
    $region5: #{tpu_custom_call.1} parent=1 // loop_body
      %s23 = ssub.s32 %s18, 1
      %s24 = ssub.s32 %s18, 2
      %s34 = sadd.s32 1, %s27
      %p35 = scmp.ge.s32.totalorder %s34, 2
      %s36 = scalar_select %p35, 0, %s34
      %s37 = sadd.s32 1, %s26
      %s38 = scalar_select %p35, %s37, %s26
      %p39 = scmp.ge.s32.totalorder %s38, 1
      %s40 = scalar_select %p39, 0, %s38
      %s41 = sadd.s32 1, %s25
      %s42 = scalar_select %p39, %s41, %s25
      %p43 = scmp.ge.s32.totalorder %s42, 2
      %s44 = scalar_select %p43, 0, %s42
      %s45 = ssub.s32 %s25, %s44
      %s46 = ssub.s32 %s27, %s36
      %s47 = sor.u32 %s45, %s46
      %p48 = scmp.eq.s32.totalorder %s47, 0
      %s50 = sadd.s32 %s49, 1
      %s51 = scalar_select %p48, %s49, %s50
      %p54 = pneg %p48
      %p55 = scmp.eq.s32.totalorder %s18, 3
      %p56 = por %p54, %p55
      %p57 = scmp.ne.s32.totalorder %s49, %s52
      %p58 = scmp.eq.s32.totalorder %s18, 0
      %p59 = por %p57, %p58
      %p60 = scmp.ne.s32.totalorder %s49, %s52
      %p61 = scmp.eq.s32.totalorder %s23, 3
      %p62 = por %p60, %p61
      %p63 = scmp.ne.s32.totalorder %s52, %s53
      %p64 = scmp.eq.s32.totalorder %s23, 0
      %p65 = por %p63, %p64
      %p66 = scmp.ne.s32.totalorder %s52, %s53
      %p67 = scmp.eq.s32.totalorder %s24, 3
      %p68 = por %p66, %p67
      %p70 = scmp.ne.s32.totalorder %s53, %s69
      %p71 = scmp.eq.s32.totalorder %s24, 0
      %p72 = por %p70, %p71
      %s73 = ssub.s32 %s27, %s36
      %s74 = ssub.s32 %s26, %s40
      %s75 = sor.u32 %s73, %s74
      %p76 = scmp.eq.s32.totalorder %s75, 0
      %s78 = sadd.s32 %s77, 1
      %s79 = scalar_select %p76, %s77, %s78
      %p82 = pneg %p76
      %p83 = scmp.eq.s32.totalorder %s18, 3
      %p84 = por %p82, %p83
      %p85 = scmp.ne.s32.totalorder %s77, %s80
      %p86 = scmp.eq.s32.totalorder %s18, 0
      %p87 = por %p85, %p86
      %p88 = scmp.ne.s32.totalorder %s77, %s80
      %p89 = scmp.eq.s32.totalorder %s23, 3
      %p90 = por %p88, %p89
      %p91 = scmp.ne.s32.totalorder %s80, %s81
      %p92 = scmp.eq.s32.totalorder %s23, 0
      %p93 = por %p91, %p92
      %p94 = scmp.ne.s32.totalorder %s80, %s81
      %p95 = scmp.eq.s32.totalorder %s24, 3
      %p96 = por %p94, %p95
      %p98 = scmp.ne.s32.totalorder %s81, %s97
      %p99 = scmp.eq.s32.totalorder %s24, 0
      %p100 = por %p98, %p99
      %s101 = ssub.s32 %s26, %s40
      %p102 = scmp.eq.s32.totalorder %s101, 0
      %s104 = sadd.s32 %s103, 1
      %s105 = scalar_select %p102, %s103, %s104
      %p108 = pneg %p102
      %p109 = scmp.eq.s32.totalorder %s18, 3
      %p110 = por %p108, %p109
      %p111 = scmp.ne.s32.totalorder %s103, %s106
      %p112 = scmp.eq.s32.totalorder %s18, 0
      %p113 = por %p111, %p112
      %p114 = scmp.ne.s32.totalorder %s103, %s106
      %p115 = scmp.eq.s32.totalorder %s23, 3
      %p116 = por %p114, %p115
      %p117 = scmp.ne.s32.totalorder %s106, %s107
      %p118 = scmp.eq.s32.totalorder %s23, 0
      %p119 = por %p117, %p118
      %p120 = scmp.ne.s32.totalorder %s106, %s107
      %p121 = scmp.eq.s32.totalorder %s24, 3
      %p122 = por %p120, %p121
      %p124 = scmp.ne.s32.totalorder %s107, %s123
      %p125 = scmp.eq.s32.totalorder %s24, 0
      %p126 = por %p124, %p125
      %s127 = ssub.s32 %s25, %s44
      %s128 = ssub.s32 %s26, %s40
      %s129 = sor.u32 %s127, %s128
      %p130 = scmp.eq.s32.totalorder %s129, 0
      %s132 = sadd.s32 %s131, 1
      %s133 = scalar_select %p130, %s131, %s132
      %p136 = pneg %p130
      %p137 = scmp.eq.s32.totalorder %s18, 3
      %p138 = por %p136, %p137
      %p139 = scmp.ne.s32.totalorder %s131, %s134
      %p140 = scmp.eq.s32.totalorder %s18, 0
      %p141 = por %p139, %p140
      %p142 = scmp.ne.s32.totalorder %s131, %s134
      %p143 = scmp.eq.s32.totalorder %s23, 3
      %p144 = por %p142, %p143
      %p145 = scmp.ne.s32.totalorder %s134, %s135
      %p146 = scmp.eq.s32.totalorder %s23, 0
      %p147 = por %p145, %p146
      %p148 = scmp.ne.s32.totalorder %s134, %s135
      %p149 = scmp.eq.s32.totalorder %s24, 3
      %p150 = por %p148, %p149
      %p152 = scmp.ne.s32.totalorder %s135, %s151
      %p153 = scmp.eq.s32.totalorder %s24, 0
      %p154 = por %p152, %p153
      %p155 = scmp.le.s32.totalorder 1, %s18
      %p156 = scmp.lt.s32.totalorder %s18, 5
      %p157 = pnand %p155, %p156
      %p158 = pneg %p157
      // Predicated region
      $region9: #{tpu_custom_call.1} parent=5 // pred_check
        _
      $region10: #{tpu_custom_call.1} parent=5 // pred_check_branch
        %160 = sbr.rel (%p157) target = $region12
      $region11: #{tpu_custom_call.1} parent=5 // pred_region
        %s161 = ssub.s32 %s18, 1
        // Predicated region
        $region13: #{tpu_custom_call.1} parent=11 // pred_check
          %p162 = pneg %p119
        $region14: #{tpu_custom_call.1} parent=11 // pred_check_branch
          %164 = sbr.rel (%p162) target = $region16
        $region15: #{tpu_custom_call.1} parent=11 // pred_region
          %s165 = smul.u32 4, %s29
          %167 = vsyncadd [#allocation6], 0
          %s168 = scalar_lea.hbm %s2, %s165
          %s170 = sshll.u32 %s168, 4
          %s171 = int_to_ptr.hbm [resolvable:$true] %s170
          %s172 = sshll.u32 [#allocation7], 4
          %s173 = int_to_ptr.vmem [resolvable:$true] %s172
          %175 = dma.hbm_to_vmem [thread:$0]  %s171, 64, %s173, [#allocation6]
        $region16: #{tpu_custom_call.1} parent=11 // pred_fallthru
          _
      $region12: #{tpu_custom_call.1} parent=5 // pred_fallthru
        _
      %p176 = scmp.lt.s32.totalorder %s18, 4
      // Predicated region
      $region17: #{tpu_custom_call.1} parent=5 // pred_check
        %p177 = pneg %p176
      $region18: #{tpu_custom_call.1} parent=5 // pred_check_branch
        %179 = sbr.rel (%p177) target = $region20
      $region19: #{tpu_custom_call.1} parent=5 // pred_region
        // Predicated region
        $region21: #{tpu_custom_call.1} parent=19 // pred_check
          %p180 = pneg %p59
        $region22: #{tpu_custom_call.1} parent=19 // pred_check_branch
          %182 = sbr.rel (%p180) target = $region24
        $region23: #{tpu_custom_call.1} parent=19 // pred_region
          %s183 = sand.u32 %s49, 1
          %s184 = scalar_lea.sflag [#allocation3], %s183
          %s185 = sand.u32 %s49, 1
          %s186 = smul.addr %s185, 2048
          %s187 = scalar_lea.vmem [#allocation2], %s186
          %s188 = smul.u32 32, %s25
          %s189 = smul.u32 8, %s27
          %191 = vsyncadd %s184, 0
          %s192 = smul.addr %s188, 16
          %s193 = sadd.s32 %s189, %s192
          %s194 = smul.addr %s193, 8
          %s195 = scalar_lea.hbm %s0, %s194
          %s196 = sshll.u32 %s195, 4
          %s197 = int_to_ptr.hbm [resolvable:$true] %s196
          %s198 = sshll.u32 %s187, 4
          %s199 = int_to_ptr.vmem [resolvable:$true] %s198
          %204 = dma.hbm_to_vmem [thread:$0]  %s197, 32768, %s199, %s184, 2048, 1024, 64
        $region24: #{tpu_custom_call.1} parent=19 // pred_fallthru
          _
        // Predicated region
        $region25: #{tpu_custom_call.1} parent=19 // pred_check
          %p205 = pneg %p87
        $region26: #{tpu_custom_call.1} parent=19 // pred_check_branch
          %207 = sbr.rel (%p205) target = $region28
        $region27: #{tpu_custom_call.1} parent=19 // pred_region
          %s208 = sand.u32 %s18, 1
          %s209 = scalar_lea.sflag [#allocation6], %s208
          %s210 = sand.u32 %s77, 1
          %s211 = smul.addr %s210, 4096
          %s212 = scalar_lea.vmem [#allocation5], %s211
          %s213 = smul.u32 128, %s27
          %s214 = smul.u32 4, %s26
          %216 = vsyncadd %s209, 0
          %s217 = smul.addr %s213, 4
          %s218 = sadd.s32 %s214, %s217
          %s219 = smul.addr %s218, 8
          %s220 = scalar_lea.hbm %s1, %s219
          %s221 = sshll.u32 %s220, 4
          %s222 = int_to_ptr.hbm [resolvable:$true] %s221
          %s223 = sshll.u32 %s212, 4
          %s224 = int_to_ptr.vmem [resolvable:$true] %s223
          %229 = dma.hbm_to_vmem [thread:$0]  %s222, 65536, %s224, %s209, 512, 512, 32
        $region28: #{tpu_custom_call.1} parent=19 // pred_fallthru
          _
      $region20: #{tpu_custom_call.1} parent=5 // pred_fallthru
        _
      %p230 = scmp.le.s32.totalorder 1, %s18
      %p231 = scmp.lt.s32.totalorder %s18, 5
      %p232 = pnand %p230, %p231
      %p233 = pneg %p232
      // Predicated region
      $region29: #{tpu_custom_call.1} parent=5 // pred_check
        _
      $region30: #{tpu_custom_call.1} parent=5 // pred_check_branch
        %235 = sbr.rel (%p232) target = $region32
      $region31: #{tpu_custom_call.1} parent=5 // pred_region
        %s236 = ssub.s32 %s18, 1
        %s237 = sand.u32 %s52, 1
        %s238 = scalar_lea.sflag [#allocation3], %s237
        %s239 = sand.u32 %s52, 1
        %s240 = smul.addr %s239, 2048
        %s241 = scalar_lea.vmem [#allocation2], %s240
        // Predicated region
        $region33: #{tpu_custom_call.1} parent=31 // pred_check
          %p242 = pneg %p65
        $region34: #{tpu_custom_call.1} parent=31 // pred_check_branch
          %244 = sbr.rel (%p242) target = $region36
        $region35: #{tpu_custom_call.1} parent=31 // pred_region
          %246 = dma.done %s238, 32768
        $region36: #{tpu_custom_call.1} parent=31 // pred_fallthru
          _
        %s247 = sand.u32 %s23, 1
        %s248 = scalar_lea.sflag [#allocation6], %s247
        %s249 = sand.u32 %s80, 1
        %s250 = smul.addr %s249, 4096
        %s251 = scalar_lea.vmem [#allocation5], %s250
        // Predicated region
        $region37: #{tpu_custom_call.1} parent=31 // pred_check
          %p252 = pneg %p93
        $region38: #{tpu_custom_call.1} parent=31 // pred_check_branch
          %254 = sbr.rel (%p252) target = $region40
        $region39: #{tpu_custom_call.1} parent=31 // pred_region
          %256 = dma.done %s248, 65536
        $region40: #{tpu_custom_call.1} parent=31 // pred_fallthru
          _
        // Predicated region
        $region41: #{tpu_custom_call.1} parent=31 // pred_check
          %p257 = pneg %p119
        $region42: #{tpu_custom_call.1} parent=31 // pred_check_branch
          %259 = sbr.rel (%p257) target = $region44
        $region43: #{tpu_custom_call.1} parent=31 // pred_region
          %261 = dma.done [#allocation6], 64
        $region44: #{tpu_custom_call.1} parent=31 // pred_fallthru
          _
        %s262 = sand.u32 %s52, 1
        %s263 = scalar_lea.sflag [#allocation3], %s262
        %s264 = sand.u32 %s52, 1
        %s265 = smul.addr %s264, 2048
        %s266 = scalar_lea.vmem [#allocation2], %s265
        %p267 = pneg %p65
        %p268 = pneg %p62
        %s269 = sand.u32 %s23, 1
        %s270 = scalar_lea.sflag [#allocation6], %s269
        %s271 = sand.u32 %s80, 1
        %s272 = smul.addr %s271, 4096
        %s273 = scalar_lea.vmem [#allocation5], %s272
        %p274 = pneg %p93
        %p275 = pneg %p90
        %p276 = pneg %p119
        %p277 = pneg %p116
        %p278 = pneg %p147
        %p279 = pneg %p144
        %s280 = sand.u32 %s134, 1
        %s281 = scalar_lea.sflag [#allocation4], %s280
        %s282 = sand.u32 %s134, 1
        %s283 = smul.addr %s282, 1024
        %s284 = scalar_lea.vmem [#allocation8], %s283
        %s285 = smul.u32 32, %s28
        %s286 = smul.u32 8, %s30
        %s287 = smul.u32 128, %s30
        %s288 = smul.u32 4, %s29
        %s289 = smul.u32 4, %s29
        %s290 = smul.u32 32, %s28
        %s291 = smul.u32 4, %s29
        %p292 = scmp.eq.s32.totalorder %s30, 0
        // Predicated region
        $region45: #{tpu_custom_call.1} parent=31 // pred_check
          %p293 = pneg %p292
        $region46: #{tpu_custom_call.1} parent=31 // pred_check_branch
          %295 = sbr.rel (%p293) target = $region48
        $region47: #{tpu_custom_call.1} parent=31 // pred_region
          %296 = vst [vmem:[%s284] sm:$0xff] 0.0
          %297 = vst [vmem:[%s284 + $0x8] sm:$0xff] 0.0
          %298 = vst [vmem:[%s284 + $0x10] sm:$0xff] 0.0
          %299 = vst [vmem:[%s284 + $0x18] sm:$0xff] 0.0
          %300 = vst [vmem:[%s284 + $0x20] sm:$0xff] 0.0
          %301 = vst [vmem:[%s284 + $0x28] sm:$0xff] 0.0
          %302 = vst [vmem:[%s284 + $0x30] sm:$0xff] 0.0
          %303 = vst [vmem:[%s284 + $0x38] sm:$0xff] 0.0
          %304 = vst [vmem:[%s284 + $0x40] sm:$0xff] 0.0
          %305 = vst [vmem:[%s284 + $0x48] sm:$0xff] 0.0
          %306 = vst [vmem:[%s284 + $0x50] sm:$0xff] 0.0
          %307 = vst [vmem:[%s284 + $0x58] sm:$0xff] 0.0
          %308 = vst [vmem:[%s284 + $0x60] sm:$0xff] 0.0
          %309 = vst [vmem:[%s284 + $0x68] sm:$0xff] 0.0
          %310 = vst [vmem:[%s284 + $0x70] sm:$0xff] 0.0
          %311 = vst [vmem:[%s284 + $0x78] sm:$0xff] 0.0
          %312 = vst [vmem:[%s284 + $0x80] sm:$0xff] 0.0
          %313 = vst [vmem:[%s284 + $0x88] sm:$0xff] 0.0
          %314 = vst [vmem:[%s284 + $0x90] sm:$0xff] 0.0
          %315 = vst [vmem:[%s284 + $0x98] sm:$0xff] 0.0
          %316 = vst [vmem:[%s284 + $0xa0] sm:$0xff] 0.0
          %317 = vst [vmem:[%s284 + $0xa8] sm:$0xff] 0.0
          %318 = vst [vmem:[%s284 + $0xb0] sm:$0xff] 0.0
          %319 = vst [vmem:[%s284 + $0xb8] sm:$0xff] 0.0
          %320 = vst [vmem:[%s284 + $0xc0] sm:$0xff] 0.0
          %321 = vst [vmem:[%s284 + $0xc8] sm:$0xff] 0.0
          %322 = vst [vmem:[%s284 + $0xd0] sm:$0xff] 0.0
          %323 = vst [vmem:[%s284 + $0xd8] sm:$0xff] 0.0
          %324 = vst [vmem:[%s284 + $0xe0] sm:$0xff] 0.0
          %325 = vst [vmem:[%s284 + $0xe8] sm:$0xff] 0.0
          %326 = vst [vmem:[%s284 + $0xf0] sm:$0xff] 0.0
          %327 = vst [vmem:[%s284 + $0xf8] sm:$0xff] 0.0
          %328 = vst [vmem:[%s284 + $0x100] sm:$0xff] 0.0
          %329 = vst [vmem:[%s284 + $0x108] sm:$0xff] 0.0
          %330 = vst [vmem:[%s284 + $0x110] sm:$0xff] 0.0
          %331 = vst [vmem:[%s284 + $0x118] sm:$0xff] 0.0
          %332 = vst [vmem:[%s284 + $0x120] sm:$0xff] 0.0
          %333 = vst [vmem:[%s284 + $0x128] sm:$0xff] 0.0
          %334 = vst [vmem:[%s284 + $0x130] sm:$0xff] 0.0
          %335 = vst [vmem:[%s284 + $0x138] sm:$0xff] 0.0
          %336 = vst [vmem:[%s284 + $0x140] sm:$0xff] 0.0
          %337 = vst [vmem:[%s284 + $0x148] sm:$0xff] 0.0
          %338 = vst [vmem:[%s284 + $0x150] sm:$0xff] 0.0
          %339 = vst [vmem:[%s284 + $0x158] sm:$0xff] 0.0
          %340 = vst [vmem:[%s284 + $0x160] sm:$0xff] 0.0
          %341 = vst [vmem:[%s284 + $0x168] sm:$0xff] 0.0
          %342 = vst [vmem:[%s284 + $0x170] sm:$0xff] 0.0
          %343 = vst [vmem:[%s284 + $0x178] sm:$0xff] 0.0
          %344 = vst [vmem:[%s284 + $0x180] sm:$0xff] 0.0
          %345 = vst [vmem:[%s284 + $0x188] sm:$0xff] 0.0
          %346 = vst [vmem:[%s284 + $0x190] sm:$0xff] 0.0
          %347 = vst [vmem:[%s284 + $0x198] sm:$0xff] 0.0
          %348 = vst [vmem:[%s284 + $0x1a0] sm:$0xff] 0.0
          %349 = vst [vmem:[%s284 + $0x1a8] sm:$0xff] 0.0
          %350 = vst [vmem:[%s284 + $0x1b0] sm:$0xff] 0.0
          %351 = vst [vmem:[%s284 + $0x1b8] sm:$0xff] 0.0
          %352 = vst [vmem:[%s284 + $0x1c0] sm:$0xff] 0.0
          %353 = vst [vmem:[%s284 + $0x1c8] sm:$0xff] 0.0
          %354 = vst [vmem:[%s284 + $0x1d0] sm:$0xff] 0.0
          %355 = vst [vmem:[%s284 + $0x1d8] sm:$0xff] 0.0
          %356 = vst [vmem:[%s284 + $0x1e0] sm:$0xff] 0.0
          %357 = vst [vmem:[%s284 + $0x1e8] sm:$0xff] 0.0
          %358 = vst [vmem:[%s284 + $0x1f0] sm:$0xff] 0.0
          %359 = vst [vmem:[%s284 + $0x1f8] sm:$0xff] 0.0
          %360 = vst [vmem:[%s284 + $0x200] sm:$0xff] 0.0
          %361 = vst [vmem:[%s284 + $0x208] sm:$0xff] 0.0
          %362 = vst [vmem:[%s284 + $0x210] sm:$0xff] 0.0
          %363 = vst [vmem:[%s284 + $0x218] sm:$0xff] 0.0
          %364 = vst [vmem:[%s284 + $0x220] sm:$0xff] 0.0
          %365 = vst [vmem:[%s284 + $0x228] sm:$0xff] 0.0
          %366 = vst [vmem:[%s284 + $0x230] sm:$0xff] 0.0
          %367 = vst [vmem:[%s284 + $0x238] sm:$0xff] 0.0
          %368 = vst [vmem:[%s284 + $0x240] sm:$0xff] 0.0
          %369 = vst [vmem:[%s284 + $0x248] sm:$0xff] 0.0
          %370 = vst [vmem:[%s284 + $0x250] sm:$0xff] 0.0
          %371 = vst [vmem:[%s284 + $0x258] sm:$0xff] 0.0
          %372 = vst [vmem:[%s284 + $0x260] sm:$0xff] 0.0
          %373 = vst [vmem:[%s284 + $0x268] sm:$0xff] 0.0
          %374 = vst [vmem:[%s284 + $0x270] sm:$0xff] 0.0
          %375 = vst [vmem:[%s284 + $0x278] sm:$0xff] 0.0
          %376 = vst [vmem:[%s284 + $0x280] sm:$0xff] 0.0
          %377 = vst [vmem:[%s284 + $0x288] sm:$0xff] 0.0
          %378 = vst [vmem:[%s284 + $0x290] sm:$0xff] 0.0
          %379 = vst [vmem:[%s284 + $0x298] sm:$0xff] 0.0
          %380 = vst [vmem:[%s284 + $0x2a0] sm:$0xff] 0.0
          %381 = vst [vmem:[%s284 + $0x2a8] sm:$0xff] 0.0
          %382 = vst [vmem:[%s284 + $0x2b0] sm:$0xff] 0.0
          %383 = vst [vmem:[%s284 + $0x2b8] sm:$0xff] 0.0
          %384 = vst [vmem:[%s284 + $0x2c0] sm:$0xff] 0.0
          %385 = vst [vmem:[%s284 + $0x2c8] sm:$0xff] 0.0
          %386 = vst [vmem:[%s284 + $0x2d0] sm:$0xff] 0.0
          %387 = vst [vmem:[%s284 + $0x2d8] sm:$0xff] 0.0
          %388 = vst [vmem:[%s284 + $0x2e0] sm:$0xff] 0.0
          %389 = vst [vmem:[%s284 + $0x2e8] sm:$0xff] 0.0
          %390 = vst [vmem:[%s284 + $0x2f0] sm:$0xff] 0.0
          %391 = vst [vmem:[%s284 + $0x2f8] sm:$0xff] 0.0
          %392 = vst [vmem:[%s284 + $0x300] sm:$0xff] 0.0
          %393 = vst [vmem:[%s284 + $0x308] sm:$0xff] 0.0
          %394 = vst [vmem:[%s284 + $0x310] sm:$0xff] 0.0
          %395 = vst [vmem:[%s284 + $0x318] sm:$0xff] 0.0
          %396 = vst [vmem:[%s284 + $0x320] sm:$0xff] 0.0
          %397 = vst [vmem:[%s284 + $0x328] sm:$0xff] 0.0
          %398 = vst [vmem:[%s284 + $0x330] sm:$0xff] 0.0
          %399 = vst [vmem:[%s284 + $0x338] sm:$0xff] 0.0
          %400 = vst [vmem:[%s284 + $0x340] sm:$0xff] 0.0
          %401 = vst [vmem:[%s284 + $0x348] sm:$0xff] 0.0
          %402 = vst [vmem:[%s284 + $0x350] sm:$0xff] 0.0
          %403 = vst [vmem:[%s284 + $0x358] sm:$0xff] 0.0
          %404 = vst [vmem:[%s284 + $0x360] sm:$0xff] 0.0
          %405 = vst [vmem:[%s284 + $0x368] sm:$0xff] 0.0
          %406 = vst [vmem:[%s284 + $0x370] sm:$0xff] 0.0
          %407 = vst [vmem:[%s284 + $0x378] sm:$0xff] 0.0
          %408 = vst [vmem:[%s284 + $0x380] sm:$0xff] 0.0
          %409 = vst [vmem:[%s284 + $0x388] sm:$0xff] 0.0
          %410 = vst [vmem:[%s284 + $0x390] sm:$0xff] 0.0
          %411 = vst [vmem:[%s284 + $0x398] sm:$0xff] 0.0
          %412 = vst [vmem:[%s284 + $0x3a0] sm:$0xff] 0.0
          %413 = vst [vmem:[%s284 + $0x3a8] sm:$0xff] 0.0
          %414 = vst [vmem:[%s284 + $0x3b0] sm:$0xff] 0.0
          %415 = vst [vmem:[%s284 + $0x3b8] sm:$0xff] 0.0
          %416 = vst [vmem:[%s284 + $0x3c0] sm:$0xff] 0.0
          %417 = vst [vmem:[%s284 + $0x3c8] sm:$0xff] 0.0
          %418 = vst [vmem:[%s284 + $0x3d0] sm:$0xff] 0.0
          %419 = vst [vmem:[%s284 + $0x3d8] sm:$0xff] 0.0
          %420 = vst [vmem:[%s284 + $0x3e0] sm:$0xff] 0.0
          %421 = vst [vmem:[%s284 + $0x3e8] sm:$0xff] 0.0
          %422 = vst [vmem:[%s284 + $0x3f0] sm:$0xff] 0.0
          %423 = vst [vmem:[%s284 + $0x3f8] sm:$0xff] 0.0
        $region48: #{tpu_custom_call.1} parent=31 // pred_fallthru
          _
        %v424 = vld [vmem:[%s284] sm:$0xff]
        %v425 = vld [vmem:[%s284 + $0x8] sm:$0xff]
        %v426 = vld [vmem:[%s284 + $0x10] sm:$0xff]
        %v427 = vld [vmem:[%s284 + $0x18] sm:$0xff]
        %v428 = vld [vmem:[%s284 + $0x20] sm:$0xff]
        %v429 = vld [vmem:[%s284 + $0x28] sm:$0xff]
        %v430 = vld [vmem:[%s284 + $0x30] sm:$0xff]
        %v431 = vld [vmem:[%s284 + $0x38] sm:$0xff]
        %v432 = vld [vmem:[%s284 + $0x40] sm:$0xff]
        %v433 = vld [vmem:[%s284 + $0x48] sm:$0xff]
        %v434 = vld [vmem:[%s284 + $0x50] sm:$0xff]
        %v435 = vld [vmem:[%s284 + $0x58] sm:$0xff]
        %v436 = vld [vmem:[%s284 + $0x60] sm:$0xff]
        %v437 = vld [vmem:[%s284 + $0x68] sm:$0xff]
        %v438 = vld [vmem:[%s284 + $0x70] sm:$0xff]
        %v439 = vld [vmem:[%s284 + $0x78] sm:$0xff]
        %v440 = vld [vmem:[%s284 + $0x80] sm:$0xff]
        %v441 = vld [vmem:[%s284 + $0x88] sm:$0xff]
        %v442 = vld [vmem:[%s284 + $0x90] sm:$0xff]
        %v443 = vld [vmem:[%s284 + $0x98] sm:$0xff]
        %v444 = vld [vmem:[%s284 + $0xa0] sm:$0xff]
        %v445 = vld [vmem:[%s284 + $0xa8] sm:$0xff]
        %v446 = vld [vmem:[%s284 + $0xb0] sm:$0xff]
        %v447 = vld [vmem:[%s284 + $0xb8] sm:$0xff]
        %v448 = vld [vmem:[%s284 + $0xc0] sm:$0xff]
        %v449 = vld [vmem:[%s284 + $0xc8] sm:$0xff]
        %v450 = vld [vmem:[%s284 + $0xd0] sm:$0xff]
        %v451 = vld [vmem:[%s284 + $0xd8] sm:$0xff]
        %v452 = vld [vmem:[%s284 + $0xe0] sm:$0xff]
        %v453 = vld [vmem:[%s284 + $0xe8] sm:$0xff]
        %v454 = vld [vmem:[%s284 + $0xf0] sm:$0xff]
        %v455 = vld [vmem:[%s284 + $0xf8] sm:$0xff]
        %v456 = vld [vmem:[%s284 + $0x100] sm:$0xff]
        %v457 = vld [vmem:[%s284 + $0x108] sm:$0xff]
        %v458 = vld [vmem:[%s284 + $0x110] sm:$0xff]
        %v459 = vld [vmem:[%s284 + $0x118] sm:$0xff]
        %v460 = vld [vmem:[%s284 + $0x120] sm:$0xff]
        %v461 = vld [vmem:[%s284 + $0x128] sm:$0xff]
        %v462 = vld [vmem:[%s284 + $0x130] sm:$0xff]
        %v463 = vld [vmem:[%s284 + $0x138] sm:$0xff]
        %v464 = vld [vmem:[%s284 + $0x140] sm:$0xff]
        %v465 = vld [vmem:[%s284 + $0x148] sm:$0xff]
        %v466 = vld [vmem:[%s284 + $0x150] sm:$0xff]
        %v467 = vld [vmem:[%s284 + $0x158] sm:$0xff]
        %v468 = vld [vmem:[%s284 + $0x160] sm:$0xff]
        %v469 = vld [vmem:[%s284 + $0x168] sm:$0xff]
        %v470 = vld [vmem:[%s284 + $0x170] sm:$0xff]
        %v471 = vld [vmem:[%s284 + $0x178] sm:$0xff]
        %v472 = vld [vmem:[%s284 + $0x180] sm:$0xff]
        %v473 = vld [vmem:[%s284 + $0x188] sm:$0xff]
        %v474 = vld [vmem:[%s284 + $0x190] sm:$0xff]
        %v475 = vld [vmem:[%s284 + $0x198] sm:$0xff]
        %v476 = vld [vmem:[%s284 + $0x1a0] sm:$0xff]
        %v477 = vld [vmem:[%s284 + $0x1a8] sm:$0xff]
        %v478 = vld [vmem:[%s284 + $0x1b0] sm:$0xff]
        %v479 = vld [vmem:[%s284 + $0x1b8] sm:$0xff]
        %v480 = vld [vmem:[%s284 + $0x1c0] sm:$0xff]
        %v481 = vld [vmem:[%s284 + $0x1c8] sm:$0xff]
        %v482 = vld [vmem:[%s284 + $0x1d0] sm:$0xff]
        %v483 = vld [vmem:[%s284 + $0x1d8] sm:$0xff]
        %v484 = vld [vmem:[%s284 + $0x1e0] sm:$0xff]
        %v485 = vld [vmem:[%s284 + $0x1e8] sm:$0xff]
        %v486 = vld [vmem:[%s284 + $0x1f0] sm:$0xff]
        %v487 = vld [vmem:[%s284 + $0x1f8] sm:$0xff]
        %v488 = vld [vmem:[%s284 + $0x200] sm:$0xff]
        %v489 = vld [vmem:[%s284 + $0x208] sm:$0xff]
        %v490 = vld [vmem:[%s284 + $0x210] sm:$0xff]
        %v491 = vld [vmem:[%s284 + $0x218] sm:$0xff]
        %v492 = vld [vmem:[%s284 + $0x220] sm:$0xff]
        %v493 = vld [vmem:[%s284 + $0x228] sm:$0xff]
        %v494 = vld [vmem:[%s284 + $0x230] sm:$0xff]
        %v495 = vld [vmem:[%s284 + $0x238] sm:$0xff]
        %v496 = vld [vmem:[%s284 + $0x240] sm:$0xff]
        %v497 = vld [vmem:[%s284 + $0x248] sm:$0xff]
        %v498 = vld [vmem:[%s284 + $0x250] sm:$0xff]
        %v499 = vld [vmem:[%s284 + $0x258] sm:$0xff]
        %v500 = vld [vmem:[%s284 + $0x260] sm:$0xff]
        %v501 = vld [vmem:[%s284 + $0x268] sm:$0xff]
        %v502 = vld [vmem:[%s284 + $0x270] sm:$0xff]
        %v503 = vld [vmem:[%s284 + $0x278] sm:$0xff]
        %v504 = vld [vmem:[%s284 + $0x280] sm:$0xff]
        %v505 = vld [vmem:[%s284 + $0x288] sm:$0xff]
        %v506 = vld [vmem:[%s284 + $0x290] sm:$0xff]
        %v507 = vld [vmem:[%s284 + $0x298] sm:$0xff]
        %v508 = vld [vmem:[%s284 + $0x2a0] sm:$0xff]
        %v509 = vld [vmem:[%s284 + $0x2a8] sm:$0xff]
        %v510 = vld [vmem:[%s284 + $0x2b0] sm:$0xff]
        %v511 = vld [vmem:[%s284 + $0x2b8] sm:$0xff]
        %v512 = vld [vmem:[%s284 + $0x2c0] sm:$0xff]
        %v513 = vld [vmem:[%s284 + $0x2c8] sm:$0xff]
        %v514 = vld [vmem:[%s284 + $0x2d0] sm:$0xff]
        %v515 = vld [vmem:[%s284 + $0x2d8] sm:$0xff]
        %v516 = vld [vmem:[%s284 + $0x2e0] sm:$0xff]
        %v517 = vld [vmem:[%s284 + $0x2e8] sm:$0xff]
        %v518 = vld [vmem:[%s284 + $0x2f0] sm:$0xff]
        %v519 = vld [vmem:[%s284 + $0x2f8] sm:$0xff]
        %v520 = vld [vmem:[%s284 + $0x300] sm:$0xff]
        %v521 = vld [vmem:[%s284 + $0x308] sm:$0xff]
        %v522 = vld [vmem:[%s284 + $0x310] sm:$0xff]
        %v523 = vld [vmem:[%s284 + $0x318] sm:$0xff]
        %v524 = vld [vmem:[%s284 + $0x320] sm:$0xff]
        %v525 = vld [vmem:[%s284 + $0x328] sm:$0xff]
        %v526 = vld [vmem:[%s284 + $0x330] sm:$0xff]
        %v527 = vld [vmem:[%s284 + $0x338] sm:$0xff]
        %v528 = vld [vmem:[%s284 + $0x340] sm:$0xff]
        %v529 = vld [vmem:[%s284 + $0x348] sm:$0xff]
        %v530 = vld [vmem:[%s284 + $0x350] sm:$0xff]
        %v531 = vld [vmem:[%s284 + $0x358] sm:$0xff]
        %v532 = vld [vmem:[%s284 + $0x360] sm:$0xff]
        %v533 = vld [vmem:[%s284 + $0x368] sm:$0xff]
        %v534 = vld [vmem:[%s284 + $0x370] sm:$0xff]
        %v535 = vld [vmem:[%s284 + $0x378] sm:$0xff]
        %v536 = vld [vmem:[%s284 + $0x380] sm:$0xff]
        %v537 = vld [vmem:[%s284 + $0x388] sm:$0xff]
        %v538 = vld [vmem:[%s284 + $0x390] sm:$0xff]
        %v539 = vld [vmem:[%s284 + $0x398] sm:$0xff]
        %v540 = vld [vmem:[%s284 + $0x3a0] sm:$0xff]
        %v541 = vld [vmem:[%s284 + $0x3a8] sm:$0xff]
        %v542 = vld [vmem:[%s284 + $0x3b0] sm:$0xff]
        %v543 = vld [vmem:[%s284 + $0x3b8] sm:$0xff]
        %v544 = vld [vmem:[%s284 + $0x3c0] sm:$0xff]
        %v545 = vld [vmem:[%s284 + $0x3c8] sm:$0xff]
        %v546 = vld [vmem:[%s284 + $0x3d0] sm:$0xff]
        %v547 = vld [vmem:[%s284 + $0x3d8] sm:$0xff]
        %v548 = vld [vmem:[%s284 + $0x3e0] sm:$0xff]
        %v549 = vld [vmem:[%s284 + $0x3e8] sm:$0xff]
        %v550 = vld [vmem:[%s284 + $0x3f0] sm:$0xff]
        %v551 = vld [vmem:[%s284 + $0x3f8] sm:$0xff]
        %v552 = vld [vmem:[%s241] sm:$0xff]
        %v553 = vld [vmem:[%s241 + $0x8] sm:$0xff]
        %v554 = vld [vmem:[%s241 + $0x10] sm:$0xff]
        %v555 = vld [vmem:[%s241 + $0x18] sm:$0xff]
        %v556 = vld [vmem:[%s241 + $0x20] sm:$0xff]
        %v557 = vld [vmem:[%s241 + $0x28] sm:$0xff]
        %v558 = vld [vmem:[%s241 + $0x30] sm:$0xff]
        %v559 = vld [vmem:[%s241 + $0x38] sm:$0xff]
        %v560 = vld [vmem:[%s241 + $0x40] sm:$0xff]
        %v561 = vld [vmem:[%s241 + $0x48] sm:$0xff]
        %v562 = vld [vmem:[%s241 + $0x50] sm:$0xff]
        %v563 = vld [vmem:[%s241 + $0x58] sm:$0xff]
        %v564 = vld [vmem:[%s241 + $0x60] sm:$0xff]
        %v565 = vld [vmem:[%s241 + $0x68] sm:$0xff]
        %v566 = vld [vmem:[%s241 + $0x70] sm:$0xff]
        %v567 = vld [vmem:[%s241 + $0x78] sm:$0xff]
        %v568 = vld [vmem:[%s241 + $0x80] sm:$0xff]
        %v569 = vld [vmem:[%s241 + $0x88] sm:$0xff]
        %v570 = vld [vmem:[%s241 + $0x90] sm:$0xff]
        %v571 = vld [vmem:[%s241 + $0x98] sm:$0xff]
        %v572 = vld [vmem:[%s241 + $0xa0] sm:$0xff]
        %v573 = vld [vmem:[%s241 + $0xa8] sm:$0xff]
        %v574 = vld [vmem:[%s241 + $0xb0] sm:$0xff]
        %v575 = vld [vmem:[%s241 + $0xb8] sm:$0xff]
        %v576 = vld [vmem:[%s241 + $0xc0] sm:$0xff]
        %v577 = vld [vmem:[%s241 + $0xc8] sm:$0xff]
        %v578 = vld [vmem:[%s241 + $0xd0] sm:$0xff]
        %v579 = vld [vmem:[%s241 + $0xd8] sm:$0xff]
        %v580 = vld [vmem:[%s241 + $0xe0] sm:$0xff]
        %v581 = vld [vmem:[%s241 + $0xe8] sm:$0xff]
        %v582 = vld [vmem:[%s241 + $0xf0] sm:$0xff]
        %v583 = vld [vmem:[%s241 + $0xf8] sm:$0xff]
        %v584 = vld [vmem:[%s241 + $0x100] sm:$0xff]
        %v585 = vld [vmem:[%s241 + $0x108] sm:$0xff]
        %v586 = vld [vmem:[%s241 + $0x110] sm:$0xff]
        %v587 = vld [vmem:[%s241 + $0x118] sm:$0xff]
        %v588 = vld [vmem:[%s241 + $0x120] sm:$0xff]
        %v589 = vld [vmem:[%s241 + $0x128] sm:$0xff]
        %v590 = vld [vmem:[%s241 + $0x130] sm:$0xff]
        %v591 = vld [vmem:[%s241 + $0x138] sm:$0xff]
        %v592 = vld [vmem:[%s241 + $0x140] sm:$0xff]
        %v593 = vld [vmem:[%s241 + $0x148] sm:$0xff]
        %v594 = vld [vmem:[%s241 + $0x150] sm:$0xff]
        %v595 = vld [vmem:[%s241 + $0x158] sm:$0xff]
        %v596 = vld [vmem:[%s241 + $0x160] sm:$0xff]
        %v597 = vld [vmem:[%s241 + $0x168] sm:$0xff]
        %v598 = vld [vmem:[%s241 + $0x170] sm:$0xff]
        %v599 = vld [vmem:[%s241 + $0x178] sm:$0xff]
        %v600 = vld [vmem:[%s241 + $0x180] sm:$0xff]
        %v601 = vld [vmem:[%s241 + $0x188] sm:$0xff]
        %v602 = vld [vmem:[%s241 + $0x190] sm:$0xff]
        %v603 = vld [vmem:[%s241 + $0x198] sm:$0xff]
        %v604 = vld [vmem:[%s241 + $0x1a0] sm:$0xff]
        %v605 = vld [vmem:[%s241 + $0x1a8] sm:$0xff]
        %v606 = vld [vmem:[%s241 + $0x1b0] sm:$0xff]
        %v607 = vld [vmem:[%s241 + $0x1b8] sm:$0xff]
        %v608 = vld [vmem:[%s241 + $0x1c0] sm:$0xff]
        %v609 = vld [vmem:[%s241 + $0x1c8] sm:$0xff]
        %v610 = vld [vmem:[%s241 + $0x1d0] sm:$0xff]
        %v611 = vld [vmem:[%s241 + $0x1d8] sm:$0xff]
        %v612 = vld [vmem:[%s241 + $0x1e0] sm:$0xff]
        %v613 = vld [vmem:[%s241 + $0x1e8] sm:$0xff]
        %v614 = vld [vmem:[%s241 + $0x1f0] sm:$0xff]
        %v615 = vld [vmem:[%s241 + $0x1f8] sm:$0xff]
        %v616 = vld [vmem:[%s241 + $0x200] sm:$0xff]
        %v617 = vld [vmem:[%s241 + $0x208] sm:$0xff]
        %v618 = vld [vmem:[%s241 + $0x210] sm:$0xff]
        %v619 = vld [vmem:[%s241 + $0x218] sm:$0xff]
        %v620 = vld [vmem:[%s241 + $0x220] sm:$0xff]
        %v621 = vld [vmem:[%s241 + $0x228] sm:$0xff]
        %v622 = vld [vmem:[%s241 + $0x230] sm:$0xff]
        %v623 = vld [vmem:[%s241 + $0x238] sm:$0xff]
        %v624 = vld [vmem:[%s241 + $0x240] sm:$0xff]
        %v625 = vld [vmem:[%s241 + $0x248] sm:$0xff]
        %v626 = vld [vmem:[%s241 + $0x250] sm:$0xff]
        %v627 = vld [vmem:[%s241 + $0x258] sm:$0xff]
        %v628 = vld [vmem:[%s241 + $0x260] sm:$0xff]
        %v629 = vld [vmem:[%s241 + $0x268] sm:$0xff]
        %v630 = vld [vmem:[%s241 + $0x270] sm:$0xff]
        %v631 = vld [vmem:[%s241 + $0x278] sm:$0xff]
        %v632 = vld [vmem:[%s241 + $0x280] sm:$0xff]
        %v633 = vld [vmem:[%s241 + $0x288] sm:$0xff]
        %v634 = vld [vmem:[%s241 + $0x290] sm:$0xff]
        %v635 = vld [vmem:[%s241 + $0x298] sm:$0xff]
        %v636 = vld [vmem:[%s241 + $0x2a0] sm:$0xff]
        %v637 = vld [vmem:[%s241 + $0x2a8] sm:$0xff]
        %v638 = vld [vmem:[%s241 + $0x2b0] sm:$0xff]
        %v639 = vld [vmem:[%s241 + $0x2b8] sm:$0xff]
        %v640 = vld [vmem:[%s241 + $0x2c0] sm:$0xff]
        %v641 = vld [vmem:[%s241 + $0x2c8] sm:$0xff]
        %v642 = vld [vmem:[%s241 + $0x2d0] sm:$0xff]
        %v643 = vld [vmem:[%s241 + $0x2d8] sm:$0xff]
        %v644 = vld [vmem:[%s241 + $0x2e0] sm:$0xff]
        %v645 = vld [vmem:[%s241 + $0x2e8] sm:$0xff]
        %v646 = vld [vmem:[%s241 + $0x2f0] sm:$0xff]
        %v647 = vld [vmem:[%s241 + $0x2f8] sm:$0xff]
        %v648 = vld [vmem:[%s241 + $0x300] sm:$0xff]
        %v649 = vld [vmem:[%s241 + $0x308] sm:$0xff]
        %v650 = vld [vmem:[%s241 + $0x310] sm:$0xff]
        %v651 = vld [vmem:[%s241 + $0x318] sm:$0xff]
        %v652 = vld [vmem:[%s241 + $0x320] sm:$0xff]
        %v653 = vld [vmem:[%s241 + $0x328] sm:$0xff]
        %v654 = vld [vmem:[%s241 + $0x330] sm:$0xff]
        %v655 = vld [vmem:[%s241 + $0x338] sm:$0xff]
        %v656 = vld [vmem:[%s241 + $0x340] sm:$0xff]
        %v657 = vld [vmem:[%s241 + $0x348] sm:$0xff]
        %v658 = vld [vmem:[%s241 + $0x350] sm:$0xff]
        %v659 = vld [vmem:[%s241 + $0x358] sm:$0xff]
        %v660 = vld [vmem:[%s241 + $0x360] sm:$0xff]
        %v661 = vld [vmem:[%s241 + $0x368] sm:$0xff]
        %v662 = vld [vmem:[%s241 + $0x370] sm:$0xff]
        %v663 = vld [vmem:[%s241 + $0x378] sm:$0xff]
        %v664 = vld [vmem:[%s241 + $0x380] sm:$0xff]
        %v665 = vld [vmem:[%s241 + $0x388] sm:$0xff]
        %v666 = vld [vmem:[%s241 + $0x390] sm:$0xff]
        %v667 = vld [vmem:[%s241 + $0x398] sm:$0xff]
        %v668 = vld [vmem:[%s241 + $0x3a0] sm:$0xff]
        %v669 = vld [vmem:[%s241 + $0x3a8] sm:$0xff]
        %v670 = vld [vmem:[%s241 + $0x3b0] sm:$0xff]
        %v671 = vld [vmem:[%s241 + $0x3b8] sm:$0xff]
        %v672 = vld [vmem:[%s241 + $0x3c0] sm:$0xff]
        %v673 = vld [vmem:[%s241 + $0x3c8] sm:$0xff]
        %v674 = vld [vmem:[%s241 + $0x3d0] sm:$0xff]
        %v675 = vld [vmem:[%s241 + $0x3d8] sm:$0xff]
        %v676 = vld [vmem:[%s241 + $0x3e0] sm:$0xff]
        %v677 = vld [vmem:[%s241 + $0x3e8] sm:$0xff]
        %v678 = vld [vmem:[%s241 + $0x3f0] sm:$0xff]
        %v679 = vld [vmem:[%s241 + $0x3f8] sm:$0xff]
        %v680 = vld [vmem:[%s241 + $0x400] sm:$0xff]
        %v681 = vld [vmem:[%s241 + $0x408] sm:$0xff]
        %v682 = vld [vmem:[%s241 + $0x410] sm:$0xff]
        %v683 = vld [vmem:[%s241 + $0x418] sm:$0xff]
        %v684 = vld [vmem:[%s241 + $0x420] sm:$0xff]
        %v685 = vld [vmem:[%s241 + $0x428] sm:$0xff]
        %v686 = vld [vmem:[%s241 + $0x430] sm:$0xff]
        %v687 = vld [vmem:[%s241 + $0x438] sm:$0xff]
        %v688 = vld [vmem:[%s241 + $0x440] sm:$0xff]
        %v689 = vld [vmem:[%s241 + $0x448] sm:$0xff]
        %v690 = vld [vmem:[%s241 + $0x450] sm:$0xff]
        %v691 = vld [vmem:[%s241 + $0x458] sm:$0xff]
        %v692 = vld [vmem:[%s241 + $0x460] sm:$0xff]
        %v693 = vld [vmem:[%s241 + $0x468] sm:$0xff]
        %v694 = vld [vmem:[%s241 + $0x470] sm:$0xff]
        %v695 = vld [vmem:[%s241 + $0x478] sm:$0xff]
        %v696 = vld [vmem:[%s241 + $0x480] sm:$0xff]
        %v697 = vld [vmem:[%s241 + $0x488] sm:$0xff]
        %v698 = vld [vmem:[%s241 + $0x490] sm:$0xff]
        %v699 = vld [vmem:[%s241 + $0x498] sm:$0xff]
        %v700 = vld [vmem:[%s241 + $0x4a0] sm:$0xff]
        %v701 = vld [vmem:[%s241 + $0x4a8] sm:$0xff]
        %v702 = vld [vmem:[%s241 + $0x4b0] sm:$0xff]
        %v703 = vld [vmem:[%s241 + $0x4b8] sm:$0xff]
        %v704 = vld [vmem:[%s241 + $0x4c0] sm:$0xff]
        %v705 = vld [vmem:[%s241 + $0x4c8] sm:$0xff]
        %v706 = vld [vmem:[%s241 + $0x4d0] sm:$0xff]
        %v707 = vld [vmem:[%s241 + $0x4d8] sm:$0xff]
        %v708 = vld [vmem:[%s241 + $0x4e0] sm:$0xff]
        %v709 = vld [vmem:[%s241 + $0x4e8] sm:$0xff]
        %v710 = vld [vmem:[%s241 + $0x4f0] sm:$0xff]
        %v711 = vld [vmem:[%s241 + $0x4f8] sm:$0xff]
        %v712 = vld [vmem:[%s241 + $0x500] sm:$0xff]
        %v713 = vld [vmem:[%s241 + $0x508] sm:$0xff]
        %v714 = vld [vmem:[%s241 + $0x510] sm:$0xff]
        %v715 = vld [vmem:[%s241 + $0x518] sm:$0xff]
        %v716 = vld [vmem:[%s241 + $0x520] sm:$0xff]
        %v717 = vld [vmem:[%s241 + $0x528] sm:$0xff]
        %v718 = vld [vmem:[%s241 + $0x530] sm:$0xff]
        %v719 = vld [vmem:[%s241 + $0x538] sm:$0xff]
        %v720 = vld [vmem:[%s241 + $0x540] sm:$0xff]
        %v721 = vld [vmem:[%s241 + $0x548] sm:$0xff]
        %v722 = vld [vmem:[%s241 + $0x550] sm:$0xff]
        %v723 = vld [vmem:[%s241 + $0x558] sm:$0xff]
        %v724 = vld [vmem:[%s241 + $0x560] sm:$0xff]
        %v725 = vld [vmem:[%s241 + $0x568] sm:$0xff]
        %v726 = vld [vmem:[%s241 + $0x570] sm:$0xff]
        %v727 = vld [vmem:[%s241 + $0x578] sm:$0xff]
        %v728 = vld [vmem:[%s241 + $0x580] sm:$0xff]
        %v729 = vld [vmem:[%s241 + $0x588] sm:$0xff]
        %v730 = vld [vmem:[%s241 + $0x590] sm:$0xff]
        %v731 = vld [vmem:[%s241 + $0x598] sm:$0xff]
        %v732 = vld [vmem:[%s241 + $0x5a0] sm:$0xff]
        %v733 = vld [vmem:[%s241 + $0x5a8] sm:$0xff]
        %v734 = vld [vmem:[%s241 + $0x5b0] sm:$0xff]
        %v735 = vld [vmem:[%s241 + $0x5b8] sm:$0xff]
        %v736 = vld [vmem:[%s241 + $0x5c0] sm:$0xff]
        %v737 = vld [vmem:[%s241 + $0x5c8] sm:$0xff]
        %v738 = vld [vmem:[%s241 + $0x5d0] sm:$0xff]
        %v739 = vld [vmem:[%s241 + $0x5d8] sm:$0xff]
        %v740 = vld [vmem:[%s241 + $0x5e0] sm:$0xff]
        %v741 = vld [vmem:[%s241 + $0x5e8] sm:$0xff]
        %v742 = vld [vmem:[%s241 + $0x5f0] sm:$0xff]
        %v743 = vld [vmem:[%s241 + $0x5f8] sm:$0xff]
        %v744 = vld [vmem:[%s241 + $0x600] sm:$0xff]
        %v745 = vld [vmem:[%s241 + $0x608] sm:$0xff]
        %v746 = vld [vmem:[%s241 + $0x610] sm:$0xff]
        %v747 = vld [vmem:[%s241 + $0x618] sm:$0xff]
        %v748 = vld [vmem:[%s241 + $0x620] sm:$0xff]
        %v749 = vld [vmem:[%s241 + $0x628] sm:$0xff]
        %v750 = vld [vmem:[%s241 + $0x630] sm:$0xff]
        %v751 = vld [vmem:[%s241 + $0x638] sm:$0xff]
        %v752 = vld [vmem:[%s241 + $0x640] sm:$0xff]
        %v753 = vld [vmem:[%s241 + $0x648] sm:$0xff]
        %v754 = vld [vmem:[%s241 + $0x650] sm:$0xff]
        %v755 = vld [vmem:[%s241 + $0x658] sm:$0xff]
        %v756 = vld [vmem:[%s241 + $0x660] sm:$0xff]
        %v757 = vld [vmem:[%s241 + $0x668] sm:$0xff]
        %v758 = vld [vmem:[%s241 + $0x670] sm:$0xff]
        %v759 = vld [vmem:[%s241 + $0x678] sm:$0xff]
        %v760 = vld [vmem:[%s241 + $0x680] sm:$0xff]
        %v761 = vld [vmem:[%s241 + $0x688] sm:$0xff]
        %v762 = vld [vmem:[%s241 + $0x690] sm:$0xff]
        %v763 = vld [vmem:[%s241 + $0x698] sm:$0xff]
        %v764 = vld [vmem:[%s241 + $0x6a0] sm:$0xff]
        %v765 = vld [vmem:[%s241 + $0x6a8] sm:$0xff]
        %v766 = vld [vmem:[%s241 + $0x6b0] sm:$0xff]
        %v767 = vld [vmem:[%s241 + $0x6b8] sm:$0xff]
        %v768 = vld [vmem:[%s241 + $0x6c0] sm:$0xff]
        %v769 = vld [vmem:[%s241 + $0x6c8] sm:$0xff]
        %v770 = vld [vmem:[%s241 + $0x6d0] sm:$0xff]
        %v771 = vld [vmem:[%s241 + $0x6d8] sm:$0xff]
        %v772 = vld [vmem:[%s241 + $0x6e0] sm:$0xff]
        %v773 = vld [vmem:[%s241 + $0x6e8] sm:$0xff]
        %v774 = vld [vmem:[%s241 + $0x6f0] sm:$0xff]
        %v775 = vld [vmem:[%s241 + $0x6f8] sm:$0xff]
        %v776 = vld [vmem:[%s241 + $0x700] sm:$0xff]
        %v777 = vld [vmem:[%s241 + $0x708] sm:$0xff]
        %v778 = vld [vmem:[%s241 + $0x710] sm:$0xff]
        %v779 = vld [vmem:[%s241 + $0x718] sm:$0xff]
        %v780 = vld [vmem:[%s241 + $0x720] sm:$0xff]
        %v781 = vld [vmem:[%s241 + $0x728] sm:$0xff]
        %v782 = vld [vmem:[%s241 + $0x730] sm:$0xff]
        %v783 = vld [vmem:[%s241 + $0x738] sm:$0xff]
        %v784 = vld [vmem:[%s241 + $0x740] sm:$0xff]
        %v785 = vld [vmem:[%s241 + $0x748] sm:$0xff]
        %v786 = vld [vmem:[%s241 + $0x750] sm:$0xff]
        %v787 = vld [vmem:[%s241 + $0x758] sm:$0xff]
        %v788 = vld [vmem:[%s241 + $0x760] sm:$0xff]
        %v789 = vld [vmem:[%s241 + $0x768] sm:$0xff]
        %v790 = vld [vmem:[%s241 + $0x770] sm:$0xff]
        %v791 = vld [vmem:[%s241 + $0x778] sm:$0xff]
        %v792 = vld [vmem:[%s241 + $0x780] sm:$0xff]
        %v793 = vld [vmem:[%s241 + $0x788] sm:$0xff]
        %v794 = vld [vmem:[%s241 + $0x790] sm:$0xff]
        %v795 = vld [vmem:[%s241 + $0x798] sm:$0xff]
        %v796 = vld [vmem:[%s241 + $0x7a0] sm:$0xff]
        %v797 = vld [vmem:[%s241 + $0x7a8] sm:$0xff]
        %v798 = vld [vmem:[%s241 + $0x7b0] sm:$0xff]
        %v799 = vld [vmem:[%s241 + $0x7b8] sm:$0xff]
        %v800 = vld [vmem:[%s241 + $0x7c0] sm:$0xff]
        %v801 = vld [vmem:[%s241 + $0x7c8] sm:$0xff]
        %v802 = vld [vmem:[%s241 + $0x7d0] sm:$0xff]
        %v803 = vld [vmem:[%s241 + $0x7d8] sm:$0xff]
        %v804 = vld [vmem:[%s241 + $0x7e0] sm:$0xff]
        %v805 = vld [vmem:[%s241 + $0x7e8] sm:$0xff]
        %v806 = vld [vmem:[%s241 + $0x7f0] sm:$0xff]
        %v807 = vld [vmem:[%s241 + $0x7f8] sm:$0xff]
        %v808 = vld [vmem:[%s251] sm:$0xff]
        %v809 = vld [vmem:[%s251 + $0x8] sm:$0xff]
        %v810 = vld [vmem:[%s251 + $0x10] sm:$0xff]
        %v811 = vld [vmem:[%s251 + $0x18] sm:$0xff]
        %v812 = vld [vmem:[%s251 + $0x20] sm:$0xff]
        %v813 = vld [vmem:[%s251 + $0x28] sm:$0xff]
        %v814 = vld [vmem:[%s251 + $0x30] sm:$0xff]
        %v815 = vld [vmem:[%s251 + $0x38] sm:$0xff]
        %v816 = vld [vmem:[%s251 + $0x40] sm:$0xff]
        %v817 = vld [vmem:[%s251 + $0x48] sm:$0xff]
        %v818 = vld [vmem:[%s251 + $0x50] sm:$0xff]
        %v819 = vld [vmem:[%s251 + $0x58] sm:$0xff]
        %v820 = vld [vmem:[%s251 + $0x60] sm:$0xff]
        %v821 = vld [vmem:[%s251 + $0x68] sm:$0xff]
        %v822 = vld [vmem:[%s251 + $0x70] sm:$0xff]
        %v823 = vld [vmem:[%s251 + $0x78] sm:$0xff]
        %v824 = vld [vmem:[%s251 + $0x80] sm:$0xff]
        %v825 = vld [vmem:[%s251 + $0x88] sm:$0xff]
        %v826 = vld [vmem:[%s251 + $0x90] sm:$0xff]
        %v827 = vld [vmem:[%s251 + $0x98] sm:$0xff]
        %v828 = vld [vmem:[%s251 + $0xa0] sm:$0xff]
        %v829 = vld [vmem:[%s251 + $0xa8] sm:$0xff]
        %v830 = vld [vmem:[%s251 + $0xb0] sm:$0xff]
        %v831 = vld [vmem:[%s251 + $0xb8] sm:$0xff]
        %v832 = vld [vmem:[%s251 + $0xc0] sm:$0xff]
        %v833 = vld [vmem:[%s251 + $0xc8] sm:$0xff]
        %v834 = vld [vmem:[%s251 + $0xd0] sm:$0xff]
        %v835 = vld [vmem:[%s251 + $0xd8] sm:$0xff]
        %v836 = vld [vmem:[%s251 + $0xe0] sm:$0xff]
        %v837 = vld [vmem:[%s251 + $0xe8] sm:$0xff]
        %v838 = vld [vmem:[%s251 + $0xf0] sm:$0xff]
        %v839 = vld [vmem:[%s251 + $0xf8] sm:$0xff]
        %v840 = vld [vmem:[%s251 + $0x100] sm:$0xff]
        %v841 = vld [vmem:[%s251 + $0x108] sm:$0xff]
        %v842 = vld [vmem:[%s251 + $0x110] sm:$0xff]
        %v843 = vld [vmem:[%s251 + $0x118] sm:$0xff]
        %v844 = vld [vmem:[%s251 + $0x120] sm:$0xff]
        %v845 = vld [vmem:[%s251 + $0x128] sm:$0xff]
        %v846 = vld [vmem:[%s251 + $0x130] sm:$0xff]
        %v847 = vld [vmem:[%s251 + $0x138] sm:$0xff]
        %v848 = vld [vmem:[%s251 + $0x140] sm:$0xff]
        %v849 = vld [vmem:[%s251 + $0x148] sm:$0xff]
        %v850 = vld [vmem:[%s251 + $0x150] sm:$0xff]
        %v851 = vld [vmem:[%s251 + $0x158] sm:$0xff]
        %v852 = vld [vmem:[%s251 + $0x160] sm:$0xff]
        %v853 = vld [vmem:[%s251 + $0x168] sm:$0xff]
        %v854 = vld [vmem:[%s251 + $0x170] sm:$0xff]
        %v855 = vld [vmem:[%s251 + $0x178] sm:$0xff]
        %v856 = vld [vmem:[%s251 + $0x180] sm:$0xff]
        %v857 = vld [vmem:[%s251 + $0x188] sm:$0xff]
        %v858 = vld [vmem:[%s251 + $0x190] sm:$0xff]
        %v859 = vld [vmem:[%s251 + $0x198] sm:$0xff]
        %v860 = vld [vmem:[%s251 + $0x1a0] sm:$0xff]
        %v861 = vld [vmem:[%s251 + $0x1a8] sm:$0xff]
        %v862 = vld [vmem:[%s251 + $0x1b0] sm:$0xff]
        %v863 = vld [vmem:[%s251 + $0x1b8] sm:$0xff]
        %v864 = vld [vmem:[%s251 + $0x1c0] sm:$0xff]
        %v865 = vld [vmem:[%s251 + $0x1c8] sm:$0xff]
        %v866 = vld [vmem:[%s251 + $0x1d0] sm:$0xff]
        %v867 = vld [vmem:[%s251 + $0x1d8] sm:$0xff]
        %v868 = vld [vmem:[%s251 + $0x1e0] sm:$0xff]
        %v869 = vld [vmem:[%s251 + $0x1e8] sm:$0xff]
        %v870 = vld [vmem:[%s251 + $0x1f0] sm:$0xff]
        %v871 = vld [vmem:[%s251 + $0x1f8] sm:$0xff]
        %v872 = vld [vmem:[%s251 + $0x200] sm:$0xff]
        %v873 = vld [vmem:[%s251 + $0x208] sm:$0xff]
        %v874 = vld [vmem:[%s251 + $0x210] sm:$0xff]
        %v875 = vld [vmem:[%s251 + $0x218] sm:$0xff]
        %v876 = vld [vmem:[%s251 + $0x220] sm:$0xff]
        %v877 = vld [vmem:[%s251 + $0x228] sm:$0xff]
        %v878 = vld [vmem:[%s251 + $0x230] sm:$0xff]
        %v879 = vld [vmem:[%s251 + $0x238] sm:$0xff]
        %v880 = vld [vmem:[%s251 + $0x240] sm:$0xff]
        %v881 = vld [vmem:[%s251 + $0x248] sm:$0xff]
        %v882 = vld [vmem:[%s251 + $0x250] sm:$0xff]
        %v883 = vld [vmem:[%s251 + $0x258] sm:$0xff]
        %v884 = vld [vmem:[%s251 + $0x260] sm:$0xff]
        %v885 = vld [vmem:[%s251 + $0x268] sm:$0xff]
        %v886 = vld [vmem:[%s251 + $0x270] sm:$0xff]
        %v887 = vld [vmem:[%s251 + $0x278] sm:$0xff]
        %v888 = vld [vmem:[%s251 + $0x280] sm:$0xff]
        %v889 = vld [vmem:[%s251 + $0x288] sm:$0xff]
        %v890 = vld [vmem:[%s251 + $0x290] sm:$0xff]
        %v891 = vld [vmem:[%s251 + $0x298] sm:$0xff]
        %v892 = vld [vmem:[%s251 + $0x2a0] sm:$0xff]
        %v893 = vld [vmem:[%s251 + $0x2a8] sm:$0xff]
        %v894 = vld [vmem:[%s251 + $0x2b0] sm:$0xff]
        %v895 = vld [vmem:[%s251 + $0x2b8] sm:$0xff]
        %v896 = vld [vmem:[%s251 + $0x2c0] sm:$0xff]
        %v897 = vld [vmem:[%s251 + $0x2c8] sm:$0xff]
        %v898 = vld [vmem:[%s251 + $0x2d0] sm:$0xff]
        %v899 = vld [vmem:[%s251 + $0x2d8] sm:$0xff]
        %v900 = vld [vmem:[%s251 + $0x2e0] sm:$0xff]
        %v901 = vld [vmem:[%s251 + $0x2e8] sm:$0xff]
        %v902 = vld [vmem:[%s251 + $0x2f0] sm:$0xff]
        %v903 = vld [vmem:[%s251 + $0x2f8] sm:$0xff]
        %v904 = vld [vmem:[%s251 + $0x300] sm:$0xff]
        %v905 = vld [vmem:[%s251 + $0x308] sm:$0xff]
        %v906 = vld [vmem:[%s251 + $0x310] sm:$0xff]
        %v907 = vld [vmem:[%s251 + $0x318] sm:$0xff]
        %v908 = vld [vmem:[%s251 + $0x320] sm:$0xff]
        %v909 = vld [vmem:[%s251 + $0x328] sm:$0xff]
        %v910 = vld [vmem:[%s251 + $0x330] sm:$0xff]
        %v911 = vld [vmem:[%s251 + $0x338] sm:$0xff]
        %v912 = vld [vmem:[%s251 + $0x340] sm:$0xff]
        %v913 = vld [vmem:[%s251 + $0x348] sm:$0xff]
        %v914 = vld [vmem:[%s251 + $0x350] sm:$0xff]
        %v915 = vld [vmem:[%s251 + $0x358] sm:$0xff]
        %v916 = vld [vmem:[%s251 + $0x360] sm:$0xff]
        %v917 = vld [vmem:[%s251 + $0x368] sm:$0xff]
        %v918 = vld [vmem:[%s251 + $0x370] sm:$0xff]
        %v919 = vld [vmem:[%s251 + $0x378] sm:$0xff]
        %v920 = vld [vmem:[%s251 + $0x380] sm:$0xff]
        %v921 = vld [vmem:[%s251 + $0x388] sm:$0xff]
        %v922 = vld [vmem:[%s251 + $0x390] sm:$0xff]
        %v923 = vld [vmem:[%s251 + $0x398] sm:$0xff]
        %v924 = vld [vmem:[%s251 + $0x3a0] sm:$0xff]
        %v925 = vld [vmem:[%s251 + $0x3a8] sm:$0xff]
        %v926 = vld [vmem:[%s251 + $0x3b0] sm:$0xff]
        %v927 = vld [vmem:[%s251 + $0x3b8] sm:$0xff]
        %v928 = vld [vmem:[%s251 + $0x3c0] sm:$0xff]
        %v929 = vld [vmem:[%s251 + $0x3c8] sm:$0xff]
        %v930 = vld [vmem:[%s251 + $0x3d0] sm:$0xff]
        %v931 = vld [vmem:[%s251 + $0x3d8] sm:$0xff]
        %v932 = vld [vmem:[%s251 + $0x3e0] sm:$0xff]
        %v933 = vld [vmem:[%s251 + $0x3e8] sm:$0xff]
        %v934 = vld [vmem:[%s251 + $0x3f0] sm:$0xff]
        %v935 = vld [vmem:[%s251 + $0x3f8] sm:$0xff]
        %v936 = vld [vmem:[%s251 + $0x400] sm:$0xff]
        %v937 = vld [vmem:[%s251 + $0x408] sm:$0xff]
        %v938 = vld [vmem:[%s251 + $0x410] sm:$0xff]
        %v939 = vld [vmem:[%s251 + $0x418] sm:$0xff]
        %v940 = vld [vmem:[%s251 + $0x420] sm:$0xff]
        %v941 = vld [vmem:[%s251 + $0x428] sm:$0xff]
        %v942 = vld [vmem:[%s251 + $0x430] sm:$0xff]
        %v943 = vld [vmem:[%s251 + $0x438] sm:$0xff]
        %v944 = vld [vmem:[%s251 + $0x440] sm:$0xff]
        %v945 = vld [vmem:[%s251 + $0x448] sm:$0xff]
        %v946 = vld [vmem:[%s251 + $0x450] sm:$0xff]
        %v947 = vld [vmem:[%s251 + $0x458] sm:$0xff]
        %v948 = vld [vmem:[%s251 + $0x460] sm:$0xff]
        %v949 = vld [vmem:[%s251 + $0x468] sm:$0xff]
        %v950 = vld [vmem:[%s251 + $0x470] sm:$0xff]
        %v951 = vld [vmem:[%s251 + $0x478] sm:$0xff]
        %v952 = vld [vmem:[%s251 + $0x480] sm:$0xff]
        %v953 = vld [vmem:[%s251 + $0x488] sm:$0xff]
        %v954 = vld [vmem:[%s251 + $0x490] sm:$0xff]
        %v955 = vld [vmem:[%s251 + $0x498] sm:$0xff]
        %v956 = vld [vmem:[%s251 + $0x4a0] sm:$0xff]
        %v957 = vld [vmem:[%s251 + $0x4a8] sm:$0xff]
        %v958 = vld [vmem:[%s251 + $0x4b0] sm:$0xff]
        %v959 = vld [vmem:[%s251 + $0x4b8] sm:$0xff]
        %v960 = vld [vmem:[%s251 + $0x4c0] sm:$0xff]
        %v961 = vld [vmem:[%s251 + $0x4c8] sm:$0xff]
        %v962 = vld [vmem:[%s251 + $0x4d0] sm:$0xff]
        %v963 = vld [vmem:[%s251 + $0x4d8] sm:$0xff]
        %v964 = vld [vmem:[%s251 + $0x4e0] sm:$0xff]
        %v965 = vld [vmem:[%s251 + $0x4e8] sm:$0xff]
        %v966 = vld [vmem:[%s251 + $0x4f0] sm:$0xff]
        %v967 = vld [vmem:[%s251 + $0x4f8] sm:$0xff]
        %v968 = vld [vmem:[%s251 + $0x500] sm:$0xff]
        %v969 = vld [vmem:[%s251 + $0x508] sm:$0xff]
        %v970 = vld [vmem:[%s251 + $0x510] sm:$0xff]
        %v971 = vld [vmem:[%s251 + $0x518] sm:$0xff]
        %v972 = vld [vmem:[%s251 + $0x520] sm:$0xff]
        %v973 = vld [vmem:[%s251 + $0x528] sm:$0xff]
        %v974 = vld [vmem:[%s251 + $0x530] sm:$0xff]
        %v975 = vld [vmem:[%s251 + $0x538] sm:$0xff]
        %v976 = vld [vmem:[%s251 + $0x540] sm:$0xff]
        %v977 = vld [vmem:[%s251 + $0x548] sm:$0xff]
        %v978 = vld [vmem:[%s251 + $0x550] sm:$0xff]
        %v979 = vld [vmem:[%s251 + $0x558] sm:$0xff]
        %v980 = vld [vmem:[%s251 + $0x560] sm:$0xff]
        %v981 = vld [vmem:[%s251 + $0x568] sm:$0xff]
        %v982 = vld [vmem:[%s251 + $0x570] sm:$0xff]
        %v983 = vld [vmem:[%s251 + $0x578] sm:$0xff]
        %v984 = vld [vmem:[%s251 + $0x580] sm:$0xff]
        %v985 = vld [vmem:[%s251 + $0x588] sm:$0xff]
        %v986 = vld [vmem:[%s251 + $0x590] sm:$0xff]
        %v987 = vld [vmem:[%s251 + $0x598] sm:$0xff]
        %v988 = vld [vmem:[%s251 + $0x5a0] sm:$0xff]
        %v989 = vld [vmem:[%s251 + $0x5a8] sm:$0xff]
        %v990 = vld [vmem:[%s251 + $0x5b0] sm:$0xff]
        %v991 = vld [vmem:[%s251 + $0x5b8] sm:$0xff]
        %v992 = vld [vmem:[%s251 + $0x5c0] sm:$0xff]
        %v993 = vld [vmem:[%s251 + $0x5c8] sm:$0xff]
        %v994 = vld [vmem:[%s251 + $0x5d0] sm:$0xff]
        %v995 = vld [vmem:[%s251 + $0x5d8] sm:$0xff]
        %v996 = vld [vmem:[%s251 + $0x5e0] sm:$0xff]
        %v997 = vld [vmem:[%s251 + $0x5e8] sm:$0xff]
        %v998 = vld [vmem:[%s251 + $0x5f0] sm:$0xff]
        %v999 = vld [vmem:[%s251 + $0x5f8] sm:$0xff]
        %v1000 = vld [vmem:[%s251 + $0x600] sm:$0xff]
        %v1001 = vld [vmem:[%s251 + $0x608] sm:$0xff]
        %v1002 = vld [vmem:[%s251 + $0x610] sm:$0xff]
        %v1003 = vld [vmem:[%s251 + $0x618] sm:$0xff]
        %v1004 = vld [vmem:[%s251 + $0x620] sm:$0xff]
        %v1005 = vld [vmem:[%s251 + $0x628] sm:$0xff]
        %v1006 = vld [vmem:[%s251 + $0x630] sm:$0xff]
        %v1007 = vld [vmem:[%s251 + $0x638] sm:$0xff]
        %v1008 = vld [vmem:[%s251 + $0x640] sm:$0xff]
        %v1009 = vld [vmem:[%s251 + $0x648] sm:$0xff]
        %v1010 = vld [vmem:[%s251 + $0x650] sm:$0xff]
        %v1011 = vld [vmem:[%s251 + $0x658] sm:$0xff]
        %v1012 = vld [vmem:[%s251 + $0x660] sm:$0xff]
        %v1013 = vld [vmem:[%s251 + $0x668] sm:$0xff]
        %v1014 = vld [vmem:[%s251 + $0x670] sm:$0xff]
        %v1015 = vld [vmem:[%s251 + $0x678] sm:$0xff]
        %v1016 = vld [vmem:[%s251 + $0x680] sm:$0xff]
        %v1017 = vld [vmem:[%s251 + $0x688] sm:$0xff]
        %v1018 = vld [vmem:[%s251 + $0x690] sm:$0xff]
        %v1019 = vld [vmem:[%s251 + $0x698] sm:$0xff]
        %v1020 = vld [vmem:[%s251 + $0x6a0] sm:$0xff]
        %v1021 = vld [vmem:[%s251 + $0x6a8] sm:$0xff]
        %v1022 = vld [vmem:[%s251 + $0x6b0] sm:$0xff]
        %v1023 = vld [vmem:[%s251 + $0x6b8] sm:$0xff]
        %v1024 = vld [vmem:[%s251 + $0x6c0] sm:$0xff]
        %v1025 = vld [vmem:[%s251 + $0x6c8] sm:$0xff]
        %v1026 = vld [vmem:[%s251 + $0x6d0] sm:$0xff]
        %v1027 = vld [vmem:[%s251 + $0x6d8] sm:$0xff]
        %v1028 = vld [vmem:[%s251 + $0x6e0] sm:$0xff]
        %v1029 = vld [vmem:[%s251 + $0x6e8] sm:$0xff]
        %v1030 = vld [vmem:[%s251 + $0x6f0] sm:$0xff]
        %v1031 = vld [vmem:[%s251 + $0x6f8] sm:$0xff]
        %v1032 = vld [vmem:[%s251 + $0x700] sm:$0xff]
        %v1033 = vld [vmem:[%s251 + $0x708] sm:$0xff]
        %v1034 = vld [vmem:[%s251 + $0x710] sm:$0xff]
        %v1035 = vld [vmem:[%s251 + $0x718] sm:$0xff]
        %v1036 = vld [vmem:[%s251 + $0x720] sm:$0xff]
        %v1037 = vld [vmem:[%s251 + $0x728] sm:$0xff]
        %v1038 = vld [vmem:[%s251 + $0x730] sm:$0xff]
        %v1039 = vld [vmem:[%s251 + $0x738] sm:$0xff]
        %v1040 = vld [vmem:[%s251 + $0x740] sm:$0xff]
        %v1041 = vld [vmem:[%s251 + $0x748] sm:$0xff]
        %v1042 = vld [vmem:[%s251 + $0x750] sm:$0xff]
        %v1043 = vld [vmem:[%s251 + $0x758] sm:$0xff]
        %v1044 = vld [vmem:[%s251 + $0x760] sm:$0xff]
        %v1045 = vld [vmem:[%s251 + $0x768] sm:$0xff]
        %v1046 = vld [vmem:[%s251 + $0x770] sm:$0xff]
        %v1047 = vld [vmem:[%s251 + $0x778] sm:$0xff]
        %v1048 = vld [vmem:[%s251 + $0x780] sm:$0xff]
        %v1049 = vld [vmem:[%s251 + $0x788] sm:$0xff]
        %v1050 = vld [vmem:[%s251 + $0x790] sm:$0xff]
        %v1051 = vld [vmem:[%s251 + $0x798] sm:$0xff]
        %v1052 = vld [vmem:[%s251 + $0x7a0] sm:$0xff]
        %v1053 = vld [vmem:[%s251 + $0x7a8] sm:$0xff]
        %v1054 = vld [vmem:[%s251 + $0x7b0] sm:$0xff]
        %v1055 = vld [vmem:[%s251 + $0x7b8] sm:$0xff]
        %v1056 = vld [vmem:[%s251 + $0x7c0] sm:$0xff]
        %v1057 = vld [vmem:[%s251 + $0x7c8] sm:$0xff]
        %v1058 = vld [vmem:[%s251 + $0x7d0] sm:$0xff]
        %v1059 = vld [vmem:[%s251 + $0x7d8] sm:$0xff]
        %v1060 = vld [vmem:[%s251 + $0x7e0] sm:$0xff]
        %v1061 = vld [vmem:[%s251 + $0x7e8] sm:$0xff]
        %v1062 = vld [vmem:[%s251 + $0x7f0] sm:$0xff]
        %v1063 = vld [vmem:[%s251 + $0x7f8] sm:$0xff]
        %v1064 = vld [vmem:[%s251 + $0x800] sm:$0xff]
        %v1065 = vld [vmem:[%s251 + $0x808] sm:$0xff]
        %v1066 = vld [vmem:[%s251 + $0x810] sm:$0xff]
        %v1067 = vld [vmem:[%s251 + $0x818] sm:$0xff]
        %v1068 = vld [vmem:[%s251 + $0x820] sm:$0xff]
        %v1069 = vld [vmem:[%s251 + $0x828] sm:$0xff]
        %v1070 = vld [vmem:[%s251 + $0x830] sm:$0xff]
        %v1071 = vld [vmem:[%s251 + $0x838] sm:$0xff]
        %v1072 = vld [vmem:[%s251 + $0x840] sm:$0xff]
        %v1073 = vld [vmem:[%s251 + $0x848] sm:$0xff]
        %v1074 = vld [vmem:[%s251 + $0x850] sm:$0xff]
        %v1075 = vld [vmem:[%s251 + $0x858] sm:$0xff]
        %v1076 = vld [vmem:[%s251 + $0x860] sm:$0xff]
        %v1077 = vld [vmem:[%s251 + $0x868] sm:$0xff]
        %v1078 = vld [vmem:[%s251 + $0x870] sm:$0xff]
        %v1079 = vld [vmem:[%s251 + $0x878] sm:$0xff]
        %v1080 = vld [vmem:[%s251 + $0x880] sm:$0xff]
        %v1081 = vld [vmem:[%s251 + $0x888] sm:$0xff]
        %v1082 = vld [vmem:[%s251 + $0x890] sm:$0xff]
        %v1083 = vld [vmem:[%s251 + $0x898] sm:$0xff]
        %v1084 = vld [vmem:[%s251 + $0x8a0] sm:$0xff]
        %v1085 = vld [vmem:[%s251 + $0x8a8] sm:$0xff]
        %v1086 = vld [vmem:[%s251 + $0x8b0] sm:$0xff]
        %v1087 = vld [vmem:[%s251 + $0x8b8] sm:$0xff]
        %v1088 = vld [vmem:[%s251 + $0x8c0] sm:$0xff]
        %v1089 = vld [vmem:[%s251 + $0x8c8] sm:$0xff]
        %v1090 = vld [vmem:[%s251 + $0x8d0] sm:$0xff]
        %v1091 = vld [vmem:[%s251 + $0x8d8] sm:$0xff]
        %v1092 = vld [vmem:[%s251 + $0x8e0] sm:$0xff]
        %v1093 = vld [vmem:[%s251 + $0x8e8] sm:$0xff]
        %v1094 = vld [vmem:[%s251 + $0x8f0] sm:$0xff]
        %v1095 = vld [vmem:[%s251 + $0x8f8] sm:$0xff]
        %v1096 = vld [vmem:[%s251 + $0x900] sm:$0xff]
        %v1097 = vld [vmem:[%s251 + $0x908] sm:$0xff]
        %v1098 = vld [vmem:[%s251 + $0x910] sm:$0xff]
        %v1099 = vld [vmem:[%s251 + $0x918] sm:$0xff]
        %v1100 = vld [vmem:[%s251 + $0x920] sm:$0xff]
        %v1101 = vld [vmem:[%s251 + $0x928] sm:$0xff]
        %v1102 = vld [vmem:[%s251 + $0x930] sm:$0xff]
        %v1103 = vld [vmem:[%s251 + $0x938] sm:$0xff]
        %v1104 = vld [vmem:[%s251 + $0x940] sm:$0xff]
        %v1105 = vld [vmem:[%s251 + $0x948] sm:$0xff]
        %v1106 = vld [vmem:[%s251 + $0x950] sm:$0xff]
        %v1107 = vld [vmem:[%s251 + $0x958] sm:$0xff]
        %v1108 = vld [vmem:[%s251 + $0x960] sm:$0xff]
        %v1109 = vld [vmem:[%s251 + $0x968] sm:$0xff]
        %v1110 = vld [vmem:[%s251 + $0x970] sm:$0xff]
        %v1111 = vld [vmem:[%s251 + $0x978] sm:$0xff]
        %v1112 = vld [vmem:[%s251 + $0x980] sm:$0xff]
        %v1113 = vld [vmem:[%s251 + $0x988] sm:$0xff]
        %v1114 = vld [vmem:[%s251 + $0x990] sm:$0xff]
        %v1115 = vld [vmem:[%s251 + $0x998] sm:$0xff]
        %v1116 = vld [vmem:[%s251 + $0x9a0] sm:$0xff]
        %v1117 = vld [vmem:[%s251 + $0x9a8] sm:$0xff]
        %v1118 = vld [vmem:[%s251 + $0x9b0] sm:$0xff]
        %v1119 = vld [vmem:[%s251 + $0x9b8] sm:$0xff]
        %v1120 = vld [vmem:[%s251 + $0x9c0] sm:$0xff]
        %v1121 = vld [vmem:[%s251 + $0x9c8] sm:$0xff]
        %v1122 = vld [vmem:[%s251 + $0x9d0] sm:$0xff]
        %v1123 = vld [vmem:[%s251 + $0x9d8] sm:$0xff]
        %v1124 = vld [vmem:[%s251 + $0x9e0] sm:$0xff]
        %v1125 = vld [vmem:[%s251 + $0x9e8] sm:$0xff]
        %v1126 = vld [vmem:[%s251 + $0x9f0] sm:$0xff]
        %v1127 = vld [vmem:[%s251 + $0x9f8] sm:$0xff]
        %v1128 = vld [vmem:[%s251 + $0xa00] sm:$0xff]
        %v1129 = vld [vmem:[%s251 + $0xa08] sm:$0xff]
        %v1130 = vld [vmem:[%s251 + $0xa10] sm:$0xff]
        %v1131 = vld [vmem:[%s251 + $0xa18] sm:$0xff]
        %v1132 = vld [vmem:[%s251 + $0xa20] sm:$0xff]
        %v1133 = vld [vmem:[%s251 + $0xa28] sm:$0xff]
        %v1134 = vld [vmem:[%s251 + $0xa30] sm:$0xff]
        %v1135 = vld [vmem:[%s251 + $0xa38] sm:$0xff]
        %v1136 = vld [vmem:[%s251 + $0xa40] sm:$0xff]
        %v1137 = vld [vmem:[%s251 + $0xa48] sm:$0xff]
        %v1138 = vld [vmem:[%s251 + $0xa50] sm:$0xff]
        %v1139 = vld [vmem:[%s251 + $0xa58] sm:$0xff]
        %v1140 = vld [vmem:[%s251 + $0xa60] sm:$0xff]
        %v1141 = vld [vmem:[%s251 + $0xa68] sm:$0xff]
        %v1142 = vld [vmem:[%s251 + $0xa70] sm:$0xff]
        %v1143 = vld [vmem:[%s251 + $0xa78] sm:$0xff]
        %v1144 = vld [vmem:[%s251 + $0xa80] sm:$0xff]
        %v1145 = vld [vmem:[%s251 + $0xa88] sm:$0xff]
        %v1146 = vld [vmem:[%s251 + $0xa90] sm:$0xff]
        %v1147 = vld [vmem:[%s251 + $0xa98] sm:$0xff]
        %v1148 = vld [vmem:[%s251 + $0xaa0] sm:$0xff]
        %v1149 = vld [vmem:[%s251 + $0xaa8] sm:$0xff]
        %v1150 = vld [vmem:[%s251 + $0xab0] sm:$0xff]
        %v1151 = vld [vmem:[%s251 + $0xab8] sm:$0xff]
        %v1152 = vld [vmem:[%s251 + $0xac0] sm:$0xff]
        %v1153 = vld [vmem:[%s251 + $0xac8] sm:$0xff]
        %v1154 = vld [vmem:[%s251 + $0xad0] sm:$0xff]
        %v1155 = vld [vmem:[%s251 + $0xad8] sm:$0xff]
        %v1156 = vld [vmem:[%s251 + $0xae0] sm:$0xff]
        %v1157 = vld [vmem:[%s251 + $0xae8] sm:$0xff]
        %v1158 = vld [vmem:[%s251 + $0xaf0] sm:$0xff]
        %v1159 = vld [vmem:[%s251 + $0xaf8] sm:$0xff]
        %v1160 = vld [vmem:[%s251 + $0xb00] sm:$0xff]
        %v1161 = vld [vmem:[%s251 + $0xb08] sm:$0xff]
        %v1162 = vld [vmem:[%s251 + $0xb10] sm:$0xff]
        %v1163 = vld [vmem:[%s251 + $0xb18] sm:$0xff]
        %v1164 = vld [vmem:[%s251 + $0xb20] sm:$0xff]
        %v1165 = vld [vmem:[%s251 + $0xb28] sm:$0xff]
        %v1166 = vld [vmem:[%s251 + $0xb30] sm:$0xff]
        %v1167 = vld [vmem:[%s251 + $0xb38] sm:$0xff]
        %v1168 = vld [vmem:[%s251 + $0xb40] sm:$0xff]
        %v1169 = vld [vmem:[%s251 + $0xb48] sm:$0xff]
        %v1170 = vld [vmem:[%s251 + $0xb50] sm:$0xff]
        %v1171 = vld [vmem:[%s251 + $0xb58] sm:$0xff]
        %v1172 = vld [vmem:[%s251 + $0xb60] sm:$0xff]
        %v1173 = vld [vmem:[%s251 + $0xb68] sm:$0xff]
        %v1174 = vld [vmem:[%s251 + $0xb70] sm:$0xff]
        %v1175 = vld [vmem:[%s251 + $0xb78] sm:$0xff]
        %v1176 = vld [vmem:[%s251 + $0xb80] sm:$0xff]
        %v1177 = vld [vmem:[%s251 + $0xb88] sm:$0xff]
        %v1178 = vld [vmem:[%s251 + $0xb90] sm:$0xff]
        %v1179 = vld [vmem:[%s251 + $0xb98] sm:$0xff]
        %v1180 = vld [vmem:[%s251 + $0xba0] sm:$0xff]
        %v1181 = vld [vmem:[%s251 + $0xba8] sm:$0xff]
        %v1182 = vld [vmem:[%s251 + $0xbb0] sm:$0xff]
        %v1183 = vld [vmem:[%s251 + $0xbb8] sm:$0xff]
        %v1184 = vld [vmem:[%s251 + $0xbc0] sm:$0xff]
        %v1185 = vld [vmem:[%s251 + $0xbc8] sm:$0xff]
        %v1186 = vld [vmem:[%s251 + $0xbd0] sm:$0xff]
        %v1187 = vld [vmem:[%s251 + $0xbd8] sm:$0xff]
        %v1188 = vld [vmem:[%s251 + $0xbe0] sm:$0xff]
        %v1189 = vld [vmem:[%s251 + $0xbe8] sm:$0xff]
        %v1190 = vld [vmem:[%s251 + $0xbf0] sm:$0xff]
        %v1191 = vld [vmem:[%s251 + $0xbf8] sm:$0xff]
        %v1192 = vld [vmem:[%s251 + $0xc00] sm:$0xff]
        %v1193 = vld [vmem:[%s251 + $0xc08] sm:$0xff]
        %v1194 = vld [vmem:[%s251 + $0xc10] sm:$0xff]
        %v1195 = vld [vmem:[%s251 + $0xc18] sm:$0xff]
        %v1196 = vld [vmem:[%s251 + $0xc20] sm:$0xff]
        %v1197 = vld [vmem:[%s251 + $0xc28] sm:$0xff]
        %v1198 = vld [vmem:[%s251 + $0xc30] sm:$0xff]
        %v1199 = vld [vmem:[%s251 + $0xc38] sm:$0xff]
        %v1200 = vld [vmem:[%s251 + $0xc40] sm:$0xff]
        %v1201 = vld [vmem:[%s251 + $0xc48] sm:$0xff]
        %v1202 = vld [vmem:[%s251 + $0xc50] sm:$0xff]
        %v1203 = vld [vmem:[%s251 + $0xc58] sm:$0xff]
        %v1204 = vld [vmem:[%s251 + $0xc60] sm:$0xff]
        %v1205 = vld [vmem:[%s251 + $0xc68] sm:$0xff]
        %v1206 = vld [vmem:[%s251 + $0xc70] sm:$0xff]
        %v1207 = vld [vmem:[%s251 + $0xc78] sm:$0xff]
        %v1208 = vld [vmem:[%s251 + $0xc80] sm:$0xff]
        %v1209 = vld [vmem:[%s251 + $0xc88] sm:$0xff]
        %v1210 = vld [vmem:[%s251 + $0xc90] sm:$0xff]
        %v1211 = vld [vmem:[%s251 + $0xc98] sm:$0xff]
        %v1212 = vld [vmem:[%s251 + $0xca0] sm:$0xff]
        %v1213 = vld [vmem:[%s251 + $0xca8] sm:$0xff]
        %v1214 = vld [vmem:[%s251 + $0xcb0] sm:$0xff]
        %v1215 = vld [vmem:[%s251 + $0xcb8] sm:$0xff]
        %v1216 = vld [vmem:[%s251 + $0xcc0] sm:$0xff]
        %v1217 = vld [vmem:[%s251 + $0xcc8] sm:$0xff]
        %v1218 = vld [vmem:[%s251 + $0xcd0] sm:$0xff]
        %v1219 = vld [vmem:[%s251 + $0xcd8] sm:$0xff]
        %v1220 = vld [vmem:[%s251 + $0xce0] sm:$0xff]
        %v1221 = vld [vmem:[%s251 + $0xce8] sm:$0xff]
        %v1222 = vld [vmem:[%s251 + $0xcf0] sm:$0xff]
        %v1223 = vld [vmem:[%s251 + $0xcf8] sm:$0xff]
        %v1224 = vld [vmem:[%s251 + $0xd00] sm:$0xff]
        %v1225 = vld [vmem:[%s251 + $0xd08] sm:$0xff]
        %v1226 = vld [vmem:[%s251 + $0xd10] sm:$0xff]
        %v1227 = vld [vmem:[%s251 + $0xd18] sm:$0xff]
        %v1228 = vld [vmem:[%s251 + $0xd20] sm:$0xff]
        %v1229 = vld [vmem:[%s251 + $0xd28] sm:$0xff]
        %v1230 = vld [vmem:[%s251 + $0xd30] sm:$0xff]
        %v1231 = vld [vmem:[%s251 + $0xd38] sm:$0xff]
        %v1232 = vld [vmem:[%s251 + $0xd40] sm:$0xff]
        %v1233 = vld [vmem:[%s251 + $0xd48] sm:$0xff]
        %v1234 = vld [vmem:[%s251 + $0xd50] sm:$0xff]
        %v1235 = vld [vmem:[%s251 + $0xd58] sm:$0xff]
        %v1236 = vld [vmem:[%s251 + $0xd60] sm:$0xff]
        %v1237 = vld [vmem:[%s251 + $0xd68] sm:$0xff]
        %v1238 = vld [vmem:[%s251 + $0xd70] sm:$0xff]
        %v1239 = vld [vmem:[%s251 + $0xd78] sm:$0xff]
        %v1240 = vld [vmem:[%s251 + $0xd80] sm:$0xff]
        %v1241 = vld [vmem:[%s251 + $0xd88] sm:$0xff]
        %v1242 = vld [vmem:[%s251 + $0xd90] sm:$0xff]
        %v1243 = vld [vmem:[%s251 + $0xd98] sm:$0xff]
        %v1244 = vld [vmem:[%s251 + $0xda0] sm:$0xff]
        %v1245 = vld [vmem:[%s251 + $0xda8] sm:$0xff]
        %v1246 = vld [vmem:[%s251 + $0xdb0] sm:$0xff]
        %v1247 = vld [vmem:[%s251 + $0xdb8] sm:$0xff]
        %v1248 = vld [vmem:[%s251 + $0xdc0] sm:$0xff]
        %v1249 = vld [vmem:[%s251 + $0xdc8] sm:$0xff]
        %v1250 = vld [vmem:[%s251 + $0xdd0] sm:$0xff]
        %v1251 = vld [vmem:[%s251 + $0xdd8] sm:$0xff]
        %v1252 = vld [vmem:[%s251 + $0xde0] sm:$0xff]
        %v1253 = vld [vmem:[%s251 + $0xde8] sm:$0xff]
        %v1254 = vld [vmem:[%s251 + $0xdf0] sm:$0xff]
        %v1255 = vld [vmem:[%s251 + $0xdf8] sm:$0xff]
        %v1256 = vld [vmem:[%s251 + $0xe00] sm:$0xff]
        %v1257 = vld [vmem:[%s251 + $0xe08] sm:$0xff]
        %v1258 = vld [vmem:[%s251 + $0xe10] sm:$0xff]
        %v1259 = vld [vmem:[%s251 + $0xe18] sm:$0xff]
        %v1260 = vld [vmem:[%s251 + $0xe20] sm:$0xff]
        %v1261 = vld [vmem:[%s251 + $0xe28] sm:$0xff]
        %v1262 = vld [vmem:[%s251 + $0xe30] sm:$0xff]
        %v1263 = vld [vmem:[%s251 + $0xe38] sm:$0xff]
        %v1264 = vld [vmem:[%s251 + $0xe40] sm:$0xff]
        %v1265 = vld [vmem:[%s251 + $0xe48] sm:$0xff]
        %v1266 = vld [vmem:[%s251 + $0xe50] sm:$0xff]
        %v1267 = vld [vmem:[%s251 + $0xe58] sm:$0xff]
        %v1268 = vld [vmem:[%s251 + $0xe60] sm:$0xff]
        %v1269 = vld [vmem:[%s251 + $0xe68] sm:$0xff]
        %v1270 = vld [vmem:[%s251 + $0xe70] sm:$0xff]
        %v1271 = vld [vmem:[%s251 + $0xe78] sm:$0xff]
        %v1272 = vld [vmem:[%s251 + $0xe80] sm:$0xff]
        %v1273 = vld [vmem:[%s251 + $0xe88] sm:$0xff]
        %v1274 = vld [vmem:[%s251 + $0xe90] sm:$0xff]
        %v1275 = vld [vmem:[%s251 + $0xe98] sm:$0xff]
        %v1276 = vld [vmem:[%s251 + $0xea0] sm:$0xff]
        %v1277 = vld [vmem:[%s251 + $0xea8] sm:$0xff]
        %v1278 = vld [vmem:[%s251 + $0xeb0] sm:$0xff]
        %v1279 = vld [vmem:[%s251 + $0xeb8] sm:$0xff]
        %v1280 = vld [vmem:[%s251 + $0xec0] sm:$0xff]
        %v1281 = vld [vmem:[%s251 + $0xec8] sm:$0xff]
        %v1282 = vld [vmem:[%s251 + $0xed0] sm:$0xff]
        %v1283 = vld [vmem:[%s251 + $0xed8] sm:$0xff]
        %v1284 = vld [vmem:[%s251 + $0xee0] sm:$0xff]
        %v1285 = vld [vmem:[%s251 + $0xee8] sm:$0xff]
        %v1286 = vld [vmem:[%s251 + $0xef0] sm:$0xff]
        %v1287 = vld [vmem:[%s251 + $0xef8] sm:$0xff]
        %v1288 = vld [vmem:[%s251 + $0xf00] sm:$0xff]
        %v1289 = vld [vmem:[%s251 + $0xf08] sm:$0xff]
        %v1290 = vld [vmem:[%s251 + $0xf10] sm:$0xff]
        %v1291 = vld [vmem:[%s251 + $0xf18] sm:$0xff]
        %v1292 = vld [vmem:[%s251 + $0xf20] sm:$0xff]
        %v1293 = vld [vmem:[%s251 + $0xf28] sm:$0xff]
        %v1294 = vld [vmem:[%s251 + $0xf30] sm:$0xff]
        %v1295 = vld [vmem:[%s251 + $0xf38] sm:$0xff]
        %v1296 = vld [vmem:[%s251 + $0xf40] sm:$0xff]
        %v1297 = vld [vmem:[%s251 + $0xf48] sm:$0xff]
        %v1298 = vld [vmem:[%s251 + $0xf50] sm:$0xff]
        %v1299 = vld [vmem:[%s251 + $0xf58] sm:$0xff]
        %v1300 = vld [vmem:[%s251 + $0xf60] sm:$0xff]
        %v1301 = vld [vmem:[%s251 + $0xf68] sm:$0xff]
        %v1302 = vld [vmem:[%s251 + $0xf70] sm:$0xff]
        %v1303 = vld [vmem:[%s251 + $0xf78] sm:$0xff]
        %v1304 = vld [vmem:[%s251 + $0xf80] sm:$0xff]
        %v1305 = vld [vmem:[%s251 + $0xf88] sm:$0xff]
        %v1306 = vld [vmem:[%s251 + $0xf90] sm:$0xff]
        %v1307 = vld [vmem:[%s251 + $0xf98] sm:$0xff]
        %v1308 = vld [vmem:[%s251 + $0xfa0] sm:$0xff]
        %v1309 = vld [vmem:[%s251 + $0xfa8] sm:$0xff]
        %v1310 = vld [vmem:[%s251 + $0xfb0] sm:$0xff]
        %v1311 = vld [vmem:[%s251 + $0xfb8] sm:$0xff]
        %v1312 = vld [vmem:[%s251 + $0xfc0] sm:$0xff]
        %v1313 = vld [vmem:[%s251 + $0xfc8] sm:$0xff]
        %v1314 = vld [vmem:[%s251 + $0xfd0] sm:$0xff]
        %v1315 = vld [vmem:[%s251 + $0xfd8] sm:$0xff]
        %v1316 = vld [vmem:[%s251 + $0xfe0] sm:$0xff]
        %v1317 = vld [vmem:[%s251 + $0xfe8] sm:$0xff]
        %v1318 = vld [vmem:[%s251 + $0xff0] sm:$0xff]
        %v1319 = vld [vmem:[%s251 + $0xff8] sm:$0xff]
        %1320 = vmatpush.msra.mxu0 %v868
        %1321 = vmatpush.msra.mxu0 %v864
        %1322 = vmatpush.msra.mxu0 %v860
        %1323 = vmatpush.msra.mxu0 %v856
        %1324 = vmatpush.msra.mxu0 %v852
        %1325 = vmatpush.msra.mxu0 %v848
        %1326 = vmatpush.msra.mxu0 %v844
        %1327 = vmatpush.msra.mxu0 %v840
        %1328 = vmatpush.msra.mxu0 %v836
        %1329 = vmatpush.msra.mxu0 %v832
        %1330 = vmatpush.msra.mxu0 %v828
        %1331 = vmatpush.msra.mxu0 %v824
        %1332 = vmatpush.msra.mxu0 %v820
        %1333 = vmatpush.msra.mxu0 %v816
        %1334 = vmatpush.msra.mxu0 %v812
        %1335 = vmatpush.msra.mxu0 %v808
        %1336 = vmatmul.f32.gmra.mxu0 %v552
        %v1337 = vpop.f32.mrf.mxu0
        %v1338 = vadd.f32 0.0, %v1337
        %1339 = vmatmul.f32.gmra.mxu0 %v560
        %v1340 = vpop.f32.mrf.mxu0
        %v1341 = vadd.f32 0.0, %v1340
        %1342 = vmatmul.f32.gmra.mxu0 %v568
        %v1343 = vpop.f32.mrf.mxu0
        %v1344 = vadd.f32 0.0, %v1343
        %1345 = vmatmul.f32.gmra.mxu0 %v576
        %v1346 = vpop.f32.mrf.mxu0
        %v1347 = vadd.f32 0.0, %v1346
        %1348 = vmatmul.f32.gmra.mxu0 %v584
        %v1349 = vpop.f32.mrf.mxu0
        %v1350 = vadd.f32 0.0, %v1349
        %1351 = vmatmul.f32.gmra.mxu0 %v592
        %v1352 = vpop.f32.mrf.mxu0
        %v1353 = vadd.f32 0.0, %v1352
        %1354 = vmatmul.f32.gmra.mxu0 %v600
        %v1355 = vpop.f32.mrf.mxu0
        %v1356 = vadd.f32 0.0, %v1355
        %1357 = vmatmul.f32.gmra.mxu0 %v608
        %v1358 = vpop.f32.mrf.mxu0
        %v1359 = vadd.f32 0.0, %v1358
        %1360 = vmatmul.f32.gmra.mxu0 %v616
        %v1361 = vpop.f32.mrf.mxu0
        %v1362 = vadd.f32 0.0, %v1361
        %1363 = vmatmul.f32.gmra.mxu0 %v624
        %v1364 = vpop.f32.mrf.mxu0
        %v1365 = vadd.f32 0.0, %v1364
        %1366 = vmatmul.f32.gmra.mxu0 %v632
        %v1367 = vpop.f32.mrf.mxu0
        %v1368 = vadd.f32 0.0, %v1367
        %1369 = vmatmul.f32.gmra.mxu0 %v640
        %v1370 = vpop.f32.mrf.mxu0
        %v1371 = vadd.f32 0.0, %v1370
        %1372 = vmatmul.f32.gmra.mxu0 %v648
        %v1373 = vpop.f32.mrf.mxu0
        %v1374 = vadd.f32 0.0, %v1373
        %1375 = vmatmul.f32.gmra.mxu0 %v656
        %v1376 = vpop.f32.mrf.mxu0
        %v1377 = vadd.f32 0.0, %v1376
        %1378 = vmatmul.f32.gmra.mxu0 %v664
        %v1379 = vpop.f32.mrf.mxu0
        %v1380 = vadd.f32 0.0, %v1379
        %1381 = vmatmul.f32.gmra.mxu0 %v672
        %v1382 = vpop.f32.mrf.mxu0
        %v1383 = vadd.f32 0.0, %v1382
        %1384 = vmatmul.f32.gmra.mxu0 %v680
        %v1385 = vpop.f32.mrf.mxu0
        %v1386 = vadd.f32 0.0, %v1385
        %1387 = vmatmul.f32.gmra.mxu0 %v688
        %v1388 = vpop.f32.mrf.mxu0
        %v1389 = vadd.f32 0.0, %v1388
        %1390 = vmatmul.f32.gmra.mxu0 %v696
        %v1391 = vpop.f32.mrf.mxu0
        %v1392 = vadd.f32 0.0, %v1391
        %1393 = vmatmul.f32.gmra.mxu0 %v704
        %v1394 = vpop.f32.mrf.mxu0
        %v1395 = vadd.f32 0.0, %v1394
        %1396 = vmatmul.f32.gmra.mxu0 %v712
        %v1397 = vpop.f32.mrf.mxu0
        %v1398 = vadd.f32 0.0, %v1397
        %1399 = vmatmul.f32.gmra.mxu0 %v720
        %v1400 = vpop.f32.mrf.mxu0
        %v1401 = vadd.f32 0.0, %v1400
        %1402 = vmatmul.f32.gmra.mxu0 %v728
        %v1403 = vpop.f32.mrf.mxu0
        %v1404 = vadd.f32 0.0, %v1403
        %1405 = vmatmul.f32.gmra.mxu0 %v736
        %v1406 = vpop.f32.mrf.mxu0
        %v1407 = vadd.f32 0.0, %v1406
        %1408 = vmatmul.f32.gmra.mxu0 %v744
        %v1409 = vpop.f32.mrf.mxu0
        %v1410 = vadd.f32 0.0, %v1409
        %1411 = vmatmul.f32.gmra.mxu0 %v752
        %v1412 = vpop.f32.mrf.mxu0
        %v1413 = vadd.f32 0.0, %v1412
        %1414 = vmatmul.f32.gmra.mxu0 %v760
        %v1415 = vpop.f32.mrf.mxu0
        %v1416 = vadd.f32 0.0, %v1415
        %1417 = vmatmul.f32.gmra.mxu0 %v768
        %v1418 = vpop.f32.mrf.mxu0
        %v1419 = vadd.f32 0.0, %v1418
        %1420 = vmatmul.f32.gmra.mxu0 %v776
        %v1421 = vpop.f32.mrf.mxu0
        %v1422 = vadd.f32 0.0, %v1421
        %1423 = vmatmul.f32.gmra.mxu0 %v784
        %v1424 = vpop.f32.mrf.mxu0
        %v1425 = vadd.f32 0.0, %v1424
        %1426 = vmatmul.f32.gmra.mxu0 %v792
        %v1427 = vpop.f32.mrf.mxu0
        %v1428 = vadd.f32 0.0, %v1427
        %1429 = vmatmul.f32.gmra.mxu0 %v800
        %v1430 = vpop.f32.mrf.mxu0
        %v1431 = vadd.f32 0.0, %v1430
        %1432 = vdwg.mxu0
        %1433 = vmatpush.msra.mxu0 %v932
        %1434 = vmatpush.msra.mxu0 %v928
        %1435 = vmatpush.msra.mxu0 %v924
        %1436 = vmatpush.msra.mxu0 %v920
        %1437 = vmatpush.msra.mxu0 %v916
        %1438 = vmatpush.msra.mxu0 %v912
        %1439 = vmatpush.msra.mxu0 %v908
        %1440 = vmatpush.msra.mxu0 %v904
        %1441 = vmatpush.msra.mxu0 %v900
        %1442 = vmatpush.msra.mxu0 %v896
        %1443 = vmatpush.msra.mxu0 %v892
        %1444 = vmatpush.msra.mxu0 %v888
        %1445 = vmatpush.msra.mxu0 %v884
        %1446 = vmatpush.msra.mxu0 %v880
        %1447 = vmatpush.msra.mxu0 %v876
        %1448 = vmatpush.msra.mxu0 %v872
        %1449 = vmatmul.f32.gmra.mxu0 %v553
        %v1450 = vpop.f32.mrf.mxu0
        %v1451 = vadd.f32 %v1338, %v1450
        %1452 = vmatmul.f32.gmra.mxu0 %v561
        %v1453 = vpop.f32.mrf.mxu0
        %v1454 = vadd.f32 %v1341, %v1453
        %1455 = vmatmul.f32.gmra.mxu0 %v569
        %v1456 = vpop.f32.mrf.mxu0
        %v1457 = vadd.f32 %v1344, %v1456
        %1458 = vmatmul.f32.gmra.mxu0 %v577
        %v1459 = vpop.f32.mrf.mxu0
        %v1460 = vadd.f32 %v1347, %v1459
        %1461 = vmatmul.f32.gmra.mxu0 %v585
        %v1462 = vpop.f32.mrf.mxu0
        %v1463 = vadd.f32 %v1350, %v1462
        %1464 = vmatmul.f32.gmra.mxu0 %v593
        %v1465 = vpop.f32.mrf.mxu0
        %v1466 = vadd.f32 %v1353, %v1465
        %1467 = vmatmul.f32.gmra.mxu0 %v601
        %v1468 = vpop.f32.mrf.mxu0
        %v1469 = vadd.f32 %v1356, %v1468
        %1470 = vmatmul.f32.gmra.mxu0 %v609
        %v1471 = vpop.f32.mrf.mxu0
        %v1472 = vadd.f32 %v1359, %v1471
        %1473 = vmatmul.f32.gmra.mxu0 %v617
        %v1474 = vpop.f32.mrf.mxu0
        %v1475 = vadd.f32 %v1362, %v1474
        %1476 = vmatmul.f32.gmra.mxu0 %v625
        %v1477 = vpop.f32.mrf.mxu0
        %v1478 = vadd.f32 %v1365, %v1477
        %1479 = vmatmul.f32.gmra.mxu0 %v633
        %v1480 = vpop.f32.mrf.mxu0
        %v1481 = vadd.f32 %v1368, %v1480
        %1482 = vmatmul.f32.gmra.mxu0 %v641
        %v1483 = vpop.f32.mrf.mxu0
        %v1484 = vadd.f32 %v1371, %v1483
        %1485 = vmatmul.f32.gmra.mxu0 %v649
        %v1486 = vpop.f32.mrf.mxu0
        %v1487 = vadd.f32 %v1374, %v1486
        %1488 = vmatmul.f32.gmra.mxu0 %v657
        %v1489 = vpop.f32.mrf.mxu0
        %v1490 = vadd.f32 %v1377, %v1489
        %1491 = vmatmul.f32.gmra.mxu0 %v665
        %v1492 = vpop.f32.mrf.mxu0
        %v1493 = vadd.f32 %v1380, %v1492
        %1494 = vmatmul.f32.gmra.mxu0 %v673
        %v1495 = vpop.f32.mrf.mxu0
        %v1496 = vadd.f32 %v1383, %v1495
        %1497 = vmatmul.f32.gmra.mxu0 %v681
        %v1498 = vpop.f32.mrf.mxu0
        %v1499 = vadd.f32 %v1386, %v1498
        %1500 = vmatmul.f32.gmra.mxu0 %v689
        %v1501 = vpop.f32.mrf.mxu0
        %v1502 = vadd.f32 %v1389, %v1501
        %1503 = vmatmul.f32.gmra.mxu0 %v697
        %v1504 = vpop.f32.mrf.mxu0
        %v1505 = vadd.f32 %v1392, %v1504
        %1506 = vmatmul.f32.gmra.mxu0 %v705
        %v1507 = vpop.f32.mrf.mxu0
        %v1508 = vadd.f32 %v1395, %v1507
        %1509 = vmatmul.f32.gmra.mxu0 %v713
        %v1510 = vpop.f32.mrf.mxu0
        %v1511 = vadd.f32 %v1398, %v1510
        %1512 = vmatmul.f32.gmra.mxu0 %v721
        %v1513 = vpop.f32.mrf.mxu0
        %v1514 = vadd.f32 %v1401, %v1513
        %1515 = vmatmul.f32.gmra.mxu0 %v729
        %v1516 = vpop.f32.mrf.mxu0
        %v1517 = vadd.f32 %v1404, %v1516
        %1518 = vmatmul.f32.gmra.mxu0 %v737
        %v1519 = vpop.f32.mrf.mxu0
        %v1520 = vadd.f32 %v1407, %v1519
        %1521 = vmatmul.f32.gmra.mxu0 %v745
        %v1522 = vpop.f32.mrf.mxu0
        %v1523 = vadd.f32 %v1410, %v1522
        %1524 = vmatmul.f32.gmra.mxu0 %v753
        %v1525 = vpop.f32.mrf.mxu0
        %v1526 = vadd.f32 %v1413, %v1525
        %1527 = vmatmul.f32.gmra.mxu0 %v761
        %v1528 = vpop.f32.mrf.mxu0
        %v1529 = vadd.f32 %v1416, %v1528
        %1530 = vmatmul.f32.gmra.mxu0 %v769
        %v1531 = vpop.f32.mrf.mxu0
        %v1532 = vadd.f32 %v1419, %v1531
        %1533 = vmatmul.f32.gmra.mxu0 %v777
        %v1534 = vpop.f32.mrf.mxu0
        %v1535 = vadd.f32 %v1422, %v1534
        %1536 = vmatmul.f32.gmra.mxu0 %v785
        %v1537 = vpop.f32.mrf.mxu0
        %v1538 = vadd.f32 %v1425, %v1537
        %1539 = vmatmul.f32.gmra.mxu0 %v793
        %v1540 = vpop.f32.mrf.mxu0
        %v1541 = vadd.f32 %v1428, %v1540
        %1542 = vmatmul.f32.gmra.mxu0 %v801
        %v1543 = vpop.f32.mrf.mxu0
        %v1544 = vadd.f32 %v1431, %v1543
        %1545 = vdwg.mxu0
        %1546 = vmatpush.msra.mxu0 %v996
        %1547 = vmatpush.msra.mxu0 %v992
        %1548 = vmatpush.msra.mxu0 %v988
        %1549 = vmatpush.msra.mxu0 %v984
        %1550 = vmatpush.msra.mxu0 %v980
        %1551 = vmatpush.msra.mxu0 %v976
        %1552 = vmatpush.msra.mxu0 %v972
        %1553 = vmatpush.msra.mxu0 %v968
        %1554 = vmatpush.msra.mxu0 %v964
        %1555 = vmatpush.msra.mxu0 %v960
        %1556 = vmatpush.msra.mxu0 %v956
        %1557 = vmatpush.msra.mxu0 %v952
        %1558 = vmatpush.msra.mxu0 %v948
        %1559 = vmatpush.msra.mxu0 %v944
        %1560 = vmatpush.msra.mxu0 %v940
        %1561 = vmatpush.msra.mxu0 %v936
        %1562 = vmatmul.f32.gmra.mxu0 %v554
        %v1563 = vpop.f32.mrf.mxu0
        %v1564 = vadd.f32 %v1451, %v1563
        %1565 = vmatmul.f32.gmra.mxu0 %v562
        %v1566 = vpop.f32.mrf.mxu0
        %v1567 = vadd.f32 %v1454, %v1566
        %1568 = vmatmul.f32.gmra.mxu0 %v570
        %v1569 = vpop.f32.mrf.mxu0
        %v1570 = vadd.f32 %v1457, %v1569
        %1571 = vmatmul.f32.gmra.mxu0 %v578
        %v1572 = vpop.f32.mrf.mxu0
        %v1573 = vadd.f32 %v1460, %v1572
        %1574 = vmatmul.f32.gmra.mxu0 %v586
        %v1575 = vpop.f32.mrf.mxu0
        %v1576 = vadd.f32 %v1463, %v1575
        %1577 = vmatmul.f32.gmra.mxu0 %v594
        %v1578 = vpop.f32.mrf.mxu0
        %v1579 = vadd.f32 %v1466, %v1578
        %1580 = vmatmul.f32.gmra.mxu0 %v602
        %v1581 = vpop.f32.mrf.mxu0
        %v1582 = vadd.f32 %v1469, %v1581
        %1583 = vmatmul.f32.gmra.mxu0 %v610
        %v1584 = vpop.f32.mrf.mxu0
        %v1585 = vadd.f32 %v1472, %v1584
        %1586 = vmatmul.f32.gmra.mxu0 %v618
        %v1587 = vpop.f32.mrf.mxu0
        %v1588 = vadd.f32 %v1475, %v1587
        %1589 = vmatmul.f32.gmra.mxu0 %v626
        %v1590 = vpop.f32.mrf.mxu0
        %v1591 = vadd.f32 %v1478, %v1590
        %1592 = vmatmul.f32.gmra.mxu0 %v634
        %v1593 = vpop.f32.mrf.mxu0
        %v1594 = vadd.f32 %v1481, %v1593
        %1595 = vmatmul.f32.gmra.mxu0 %v642
        %v1596 = vpop.f32.mrf.mxu0
        %v1597 = vadd.f32 %v1484, %v1596
        %1598 = vmatmul.f32.gmra.mxu0 %v650
        %v1599 = vpop.f32.mrf.mxu0
        %v1600 = vadd.f32 %v1487, %v1599
        %1601 = vmatmul.f32.gmra.mxu0 %v658
        %v1602 = vpop.f32.mrf.mxu0
        %v1603 = vadd.f32 %v1490, %v1602
        %1604 = vmatmul.f32.gmra.mxu0 %v666
        %v1605 = vpop.f32.mrf.mxu0
        %v1606 = vadd.f32 %v1493, %v1605
        %1607 = vmatmul.f32.gmra.mxu0 %v674
        %v1608 = vpop.f32.mrf.mxu0
        %v1609 = vadd.f32 %v1496, %v1608
        %1610 = vmatmul.f32.gmra.mxu0 %v682
        %v1611 = vpop.f32.mrf.mxu0
        %v1612 = vadd.f32 %v1499, %v1611
        %1613 = vmatmul.f32.gmra.mxu0 %v690
        %v1614 = vpop.f32.mrf.mxu0
        %v1615 = vadd.f32 %v1502, %v1614
        %1616 = vmatmul.f32.gmra.mxu0 %v698
        %v1617 = vpop.f32.mrf.mxu0
        %v1618 = vadd.f32 %v1505, %v1617
        %1619 = vmatmul.f32.gmra.mxu0 %v706
        %v1620 = vpop.f32.mrf.mxu0
        %v1621 = vadd.f32 %v1508, %v1620
        %1622 = vmatmul.f32.gmra.mxu0 %v714
        %v1623 = vpop.f32.mrf.mxu0
        %v1624 = vadd.f32 %v1511, %v1623
        %1625 = vmatmul.f32.gmra.mxu0 %v722
        %v1626 = vpop.f32.mrf.mxu0
        %v1627 = vadd.f32 %v1514, %v1626
        %1628 = vmatmul.f32.gmra.mxu0 %v730
        %v1629 = vpop.f32.mrf.mxu0
        %v1630 = vadd.f32 %v1517, %v1629
        %1631 = vmatmul.f32.gmra.mxu0 %v738
        %v1632 = vpop.f32.mrf.mxu0
        %v1633 = vadd.f32 %v1520, %v1632
        %1634 = vmatmul.f32.gmra.mxu0 %v746
        %v1635 = vpop.f32.mrf.mxu0
        %v1636 = vadd.f32 %v1523, %v1635
        %1637 = vmatmul.f32.gmra.mxu0 %v754
        %v1638 = vpop.f32.mrf.mxu0
        %v1639 = vadd.f32 %v1526, %v1638
        %1640 = vmatmul.f32.gmra.mxu0 %v762
        %v1641 = vpop.f32.mrf.mxu0
        %v1642 = vadd.f32 %v1529, %v1641
        %1643 = vmatmul.f32.gmra.mxu0 %v770
        %v1644 = vpop.f32.mrf.mxu0
        %v1645 = vadd.f32 %v1532, %v1644
        %1646 = vmatmul.f32.gmra.mxu0 %v778
        %v1647 = vpop.f32.mrf.mxu0
        %v1648 = vadd.f32 %v1535, %v1647
        %1649 = vmatmul.f32.gmra.mxu0 %v786
        %v1650 = vpop.f32.mrf.mxu0
        %v1651 = vadd.f32 %v1538, %v1650
        %1652 = vmatmul.f32.gmra.mxu0 %v794
        %v1653 = vpop.f32.mrf.mxu0
        %v1654 = vadd.f32 %v1541, %v1653
        %1655 = vmatmul.f32.gmra.mxu0 %v802
        %v1656 = vpop.f32.mrf.mxu0
        %v1657 = vadd.f32 %v1544, %v1656
        %1658 = vdwg.mxu0
        %1659 = vmatpush.msra.mxu0 %v1060
        %1660 = vmatpush.msra.mxu0 %v1056
        %1661 = vmatpush.msra.mxu0 %v1052
        %1662 = vmatpush.msra.mxu0 %v1048
        %1663 = vmatpush.msra.mxu0 %v1044
        %1664 = vmatpush.msra.mxu0 %v1040
        %1665 = vmatpush.msra.mxu0 %v1036
        %1666 = vmatpush.msra.mxu0 %v1032
        %1667 = vmatpush.msra.mxu0 %v1028
        %1668 = vmatpush.msra.mxu0 %v1024
        %1669 = vmatpush.msra.mxu0 %v1020
        %1670 = vmatpush.msra.mxu0 %v1016
        %1671 = vmatpush.msra.mxu0 %v1012
        %1672 = vmatpush.msra.mxu0 %v1008
        %1673 = vmatpush.msra.mxu0 %v1004
        %1674 = vmatpush.msra.mxu0 %v1000
        %1675 = vmatmul.f32.gmra.mxu0 %v555
        %v1676 = vpop.f32.mrf.mxu0
        %v1677 = vadd.f32 %v1564, %v1676
        %1678 = vmatmul.f32.gmra.mxu0 %v563
        %v1679 = vpop.f32.mrf.mxu0
        %v1680 = vadd.f32 %v1567, %v1679
        %1681 = vmatmul.f32.gmra.mxu0 %v571
        %v1682 = vpop.f32.mrf.mxu0
        %v1683 = vadd.f32 %v1570, %v1682
        %1684 = vmatmul.f32.gmra.mxu0 %v579
        %v1685 = vpop.f32.mrf.mxu0
        %v1686 = vadd.f32 %v1573, %v1685
        %1687 = vmatmul.f32.gmra.mxu0 %v587
        %v1688 = vpop.f32.mrf.mxu0
        %v1689 = vadd.f32 %v1576, %v1688
        %1690 = vmatmul.f32.gmra.mxu0 %v595
        %v1691 = vpop.f32.mrf.mxu0
        %v1692 = vadd.f32 %v1579, %v1691
        %1693 = vmatmul.f32.gmra.mxu0 %v603
        %v1694 = vpop.f32.mrf.mxu0
        %v1695 = vadd.f32 %v1582, %v1694
        %1696 = vmatmul.f32.gmra.mxu0 %v611
        %v1697 = vpop.f32.mrf.mxu0
        %v1698 = vadd.f32 %v1585, %v1697
        %1699 = vmatmul.f32.gmra.mxu0 %v619
        %v1700 = vpop.f32.mrf.mxu0
        %v1701 = vadd.f32 %v1588, %v1700
        %1702 = vmatmul.f32.gmra.mxu0 %v627
        %v1703 = vpop.f32.mrf.mxu0
        %v1704 = vadd.f32 %v1591, %v1703
        %1705 = vmatmul.f32.gmra.mxu0 %v635
        %v1706 = vpop.f32.mrf.mxu0
        %v1707 = vadd.f32 %v1594, %v1706
        %1708 = vmatmul.f32.gmra.mxu0 %v643
        %v1709 = vpop.f32.mrf.mxu0
        %v1710 = vadd.f32 %v1597, %v1709
        %1711 = vmatmul.f32.gmra.mxu0 %v651
        %v1712 = vpop.f32.mrf.mxu0
        %v1713 = vadd.f32 %v1600, %v1712
        %1714 = vmatmul.f32.gmra.mxu0 %v659
        %v1715 = vpop.f32.mrf.mxu0
        %v1716 = vadd.f32 %v1603, %v1715
        %1717 = vmatmul.f32.gmra.mxu0 %v667
        %v1718 = vpop.f32.mrf.mxu0
        %v1719 = vadd.f32 %v1606, %v1718
        %1720 = vmatmul.f32.gmra.mxu0 %v675
        %v1721 = vpop.f32.mrf.mxu0
        %v1722 = vadd.f32 %v1609, %v1721
        %1723 = vmatmul.f32.gmra.mxu0 %v683
        %v1724 = vpop.f32.mrf.mxu0
        %v1725 = vadd.f32 %v1612, %v1724
        %1726 = vmatmul.f32.gmra.mxu0 %v691
        %v1727 = vpop.f32.mrf.mxu0
        %v1728 = vadd.f32 %v1615, %v1727
        %1729 = vmatmul.f32.gmra.mxu0 %v699
        %v1730 = vpop.f32.mrf.mxu0
        %v1731 = vadd.f32 %v1618, %v1730
        %1732 = vmatmul.f32.gmra.mxu0 %v707
        %v1733 = vpop.f32.mrf.mxu0
        %v1734 = vadd.f32 %v1621, %v1733
        %1735 = vmatmul.f32.gmra.mxu0 %v715
        %v1736 = vpop.f32.mrf.mxu0
        %v1737 = vadd.f32 %v1624, %v1736
        %1738 = vmatmul.f32.gmra.mxu0 %v723
        %v1739 = vpop.f32.mrf.mxu0
        %v1740 = vadd.f32 %v1627, %v1739
        %1741 = vmatmul.f32.gmra.mxu0 %v731
        %v1742 = vpop.f32.mrf.mxu0
        %v1743 = vadd.f32 %v1630, %v1742
        %1744 = vmatmul.f32.gmra.mxu0 %v739
        %v1745 = vpop.f32.mrf.mxu0
        %v1746 = vadd.f32 %v1633, %v1745
        %1747 = vmatmul.f32.gmra.mxu0 %v747
        %v1748 = vpop.f32.mrf.mxu0
        %v1749 = vadd.f32 %v1636, %v1748
        %1750 = vmatmul.f32.gmra.mxu0 %v755
        %v1751 = vpop.f32.mrf.mxu0
        %v1752 = vadd.f32 %v1639, %v1751
        %1753 = vmatmul.f32.gmra.mxu0 %v763
        %v1754 = vpop.f32.mrf.mxu0
        %v1755 = vadd.f32 %v1642, %v1754
        %1756 = vmatmul.f32.gmra.mxu0 %v771
        %v1757 = vpop.f32.mrf.mxu0
        %v1758 = vadd.f32 %v1645, %v1757
        %1759 = vmatmul.f32.gmra.mxu0 %v779
        %v1760 = vpop.f32.mrf.mxu0
        %v1761 = vadd.f32 %v1648, %v1760
        %1762 = vmatmul.f32.gmra.mxu0 %v787
        %v1763 = vpop.f32.mrf.mxu0
        %v1764 = vadd.f32 %v1651, %v1763
        %1765 = vmatmul.f32.gmra.mxu0 %v795
        %v1766 = vpop.f32.mrf.mxu0
        %v1767 = vadd.f32 %v1654, %v1766
        %1768 = vmatmul.f32.gmra.mxu0 %v803
        %v1769 = vpop.f32.mrf.mxu0
        %v1770 = vadd.f32 %v1657, %v1769
        %1771 = vdwg.mxu0
        %1772 = vmatpush.msra.mxu0 %v1124
        %1773 = vmatpush.msra.mxu0 %v1120
        %1774 = vmatpush.msra.mxu0 %v1116
        %1775 = vmatpush.msra.mxu0 %v1112
        %1776 = vmatpush.msra.mxu0 %v1108
        %1777 = vmatpush.msra.mxu0 %v1104
        %1778 = vmatpush.msra.mxu0 %v1100
        %1779 = vmatpush.msra.mxu0 %v1096
        %1780 = vmatpush.msra.mxu0 %v1092
        %1781 = vmatpush.msra.mxu0 %v1088
        %1782 = vmatpush.msra.mxu0 %v1084
        %1783 = vmatpush.msra.mxu0 %v1080
        %1784 = vmatpush.msra.mxu0 %v1076
        %1785 = vmatpush.msra.mxu0 %v1072
        %1786 = vmatpush.msra.mxu0 %v1068
        %1787 = vmatpush.msra.mxu0 %v1064
        %1788 = vmatmul.f32.gmra.mxu0 %v556
        %v1789 = vpop.f32.mrf.mxu0
        %v1790 = vadd.f32 %v1677, %v1789
        %1791 = vmatmul.f32.gmra.mxu0 %v564
        %v1792 = vpop.f32.mrf.mxu0
        %v1793 = vadd.f32 %v1680, %v1792
        %1794 = vmatmul.f32.gmra.mxu0 %v572
        %v1795 = vpop.f32.mrf.mxu0
        %v1796 = vadd.f32 %v1683, %v1795
        %1797 = vmatmul.f32.gmra.mxu0 %v580
        %v1798 = vpop.f32.mrf.mxu0
        %v1799 = vadd.f32 %v1686, %v1798
        %1800 = vmatmul.f32.gmra.mxu0 %v588
        %v1801 = vpop.f32.mrf.mxu0
        %v1802 = vadd.f32 %v1689, %v1801
        %1803 = vmatmul.f32.gmra.mxu0 %v596
        %v1804 = vpop.f32.mrf.mxu0
        %v1805 = vadd.f32 %v1692, %v1804
        %1806 = vmatmul.f32.gmra.mxu0 %v604
        %v1807 = vpop.f32.mrf.mxu0
        %v1808 = vadd.f32 %v1695, %v1807
        %1809 = vmatmul.f32.gmra.mxu0 %v612
        %v1810 = vpop.f32.mrf.mxu0
        %v1811 = vadd.f32 %v1698, %v1810
        %1812 = vmatmul.f32.gmra.mxu0 %v620
        %v1813 = vpop.f32.mrf.mxu0
        %v1814 = vadd.f32 %v1701, %v1813
        %1815 = vmatmul.f32.gmra.mxu0 %v628
        %v1816 = vpop.f32.mrf.mxu0
        %v1817 = vadd.f32 %v1704, %v1816
        %1818 = vmatmul.f32.gmra.mxu0 %v636
        %v1819 = vpop.f32.mrf.mxu0
        %v1820 = vadd.f32 %v1707, %v1819
        %1821 = vmatmul.f32.gmra.mxu0 %v644
        %v1822 = vpop.f32.mrf.mxu0
        %v1823 = vadd.f32 %v1710, %v1822
        %1824 = vmatmul.f32.gmra.mxu0 %v652
        %v1825 = vpop.f32.mrf.mxu0
        %v1826 = vadd.f32 %v1713, %v1825
        %1827 = vmatmul.f32.gmra.mxu0 %v660
        %v1828 = vpop.f32.mrf.mxu0
        %v1829 = vadd.f32 %v1716, %v1828
        %1830 = vmatmul.f32.gmra.mxu0 %v668
        %v1831 = vpop.f32.mrf.mxu0
        %v1832 = vadd.f32 %v1719, %v1831
        %1833 = vmatmul.f32.gmra.mxu0 %v676
        %v1834 = vpop.f32.mrf.mxu0
        %v1835 = vadd.f32 %v1722, %v1834
        %1836 = vmatmul.f32.gmra.mxu0 %v684
        %v1837 = vpop.f32.mrf.mxu0
        %v1838 = vadd.f32 %v1725, %v1837
        %1839 = vmatmul.f32.gmra.mxu0 %v692
        %v1840 = vpop.f32.mrf.mxu0
        %v1841 = vadd.f32 %v1728, %v1840
        %1842 = vmatmul.f32.gmra.mxu0 %v700
        %v1843 = vpop.f32.mrf.mxu0
        %v1844 = vadd.f32 %v1731, %v1843
        %1845 = vmatmul.f32.gmra.mxu0 %v708
        %v1846 = vpop.f32.mrf.mxu0
        %v1847 = vadd.f32 %v1734, %v1846
        %1848 = vmatmul.f32.gmra.mxu0 %v716
        %v1849 = vpop.f32.mrf.mxu0
        %v1850 = vadd.f32 %v1737, %v1849
        %1851 = vmatmul.f32.gmra.mxu0 %v724
        %v1852 = vpop.f32.mrf.mxu0
        %v1853 = vadd.f32 %v1740, %v1852
        %1854 = vmatmul.f32.gmra.mxu0 %v732
        %v1855 = vpop.f32.mrf.mxu0
        %v1856 = vadd.f32 %v1743, %v1855
        %1857 = vmatmul.f32.gmra.mxu0 %v740
        %v1858 = vpop.f32.mrf.mxu0
        %v1859 = vadd.f32 %v1746, %v1858
        %1860 = vmatmul.f32.gmra.mxu0 %v748
        %v1861 = vpop.f32.mrf.mxu0
        %v1862 = vadd.f32 %v1749, %v1861
        %1863 = vmatmul.f32.gmra.mxu0 %v756
        %v1864 = vpop.f32.mrf.mxu0
        %v1865 = vadd.f32 %v1752, %v1864
        %1866 = vmatmul.f32.gmra.mxu0 %v764
        %v1867 = vpop.f32.mrf.mxu0
        %v1868 = vadd.f32 %v1755, %v1867
        %1869 = vmatmul.f32.gmra.mxu0 %v772
        %v1870 = vpop.f32.mrf.mxu0
        %v1871 = vadd.f32 %v1758, %v1870
        %1872 = vmatmul.f32.gmra.mxu0 %v780
        %v1873 = vpop.f32.mrf.mxu0
        %v1874 = vadd.f32 %v1761, %v1873
        %1875 = vmatmul.f32.gmra.mxu0 %v788
        %v1876 = vpop.f32.mrf.mxu0
        %v1877 = vadd.f32 %v1764, %v1876
        %1878 = vmatmul.f32.gmra.mxu0 %v796
        %v1879 = vpop.f32.mrf.mxu0
        %v1880 = vadd.f32 %v1767, %v1879
        %1881 = vmatmul.f32.gmra.mxu0 %v804
        %v1882 = vpop.f32.mrf.mxu0
        %v1883 = vadd.f32 %v1770, %v1882
        %1884 = vdwg.mxu0
        %1885 = vmatpush.msra.mxu0 %v1188
        %1886 = vmatpush.msra.mxu0 %v1184
        %1887 = vmatpush.msra.mxu0 %v1180
        %1888 = vmatpush.msra.mxu0 %v1176
        %1889 = vmatpush.msra.mxu0 %v1172
        %1890 = vmatpush.msra.mxu0 %v1168
        %1891 = vmatpush.msra.mxu0 %v1164
        %1892 = vmatpush.msra.mxu0 %v1160
        %1893 = vmatpush.msra.mxu0 %v1156
        %1894 = vmatpush.msra.mxu0 %v1152
        %1895 = vmatpush.msra.mxu0 %v1148
        %1896 = vmatpush.msra.mxu0 %v1144
        %1897 = vmatpush.msra.mxu0 %v1140
        %1898 = vmatpush.msra.mxu0 %v1136
        %1899 = vmatpush.msra.mxu0 %v1132
        %1900 = vmatpush.msra.mxu0 %v1128
        %1901 = vmatmul.f32.gmra.mxu0 %v557
        %v1902 = vpop.f32.mrf.mxu0
        %v1903 = vadd.f32 %v1790, %v1902
        %1904 = vmatmul.f32.gmra.mxu0 %v565
        %v1905 = vpop.f32.mrf.mxu0
        %v1906 = vadd.f32 %v1793, %v1905
        %1907 = vmatmul.f32.gmra.mxu0 %v573
        %v1908 = vpop.f32.mrf.mxu0
        %v1909 = vadd.f32 %v1796, %v1908
        %1910 = vmatmul.f32.gmra.mxu0 %v581
        %v1911 = vpop.f32.mrf.mxu0
        %v1912 = vadd.f32 %v1799, %v1911
        %1913 = vmatmul.f32.gmra.mxu0 %v589
        %v1914 = vpop.f32.mrf.mxu0
        %v1915 = vadd.f32 %v1802, %v1914
        %1916 = vmatmul.f32.gmra.mxu0 %v597
        %v1917 = vpop.f32.mrf.mxu0
        %v1918 = vadd.f32 %v1805, %v1917
        %1919 = vmatmul.f32.gmra.mxu0 %v605
        %v1920 = vpop.f32.mrf.mxu0
        %v1921 = vadd.f32 %v1808, %v1920
        %1922 = vmatmul.f32.gmra.mxu0 %v613
        %v1923 = vpop.f32.mrf.mxu0
        %v1924 = vadd.f32 %v1811, %v1923
        %1925 = vmatmul.f32.gmra.mxu0 %v621
        %v1926 = vpop.f32.mrf.mxu0
        %v1927 = vadd.f32 %v1814, %v1926
        %1928 = vmatmul.f32.gmra.mxu0 %v629
        %v1929 = vpop.f32.mrf.mxu0
        %v1930 = vadd.f32 %v1817, %v1929
        %1931 = vmatmul.f32.gmra.mxu0 %v637
        %v1932 = vpop.f32.mrf.mxu0
        %v1933 = vadd.f32 %v1820, %v1932
        %1934 = vmatmul.f32.gmra.mxu0 %v645
        %v1935 = vpop.f32.mrf.mxu0
        %v1936 = vadd.f32 %v1823, %v1935
        %1937 = vmatmul.f32.gmra.mxu0 %v653
        %v1938 = vpop.f32.mrf.mxu0
        %v1939 = vadd.f32 %v1826, %v1938
        %1940 = vmatmul.f32.gmra.mxu0 %v661
        %v1941 = vpop.f32.mrf.mxu0
        %v1942 = vadd.f32 %v1829, %v1941
        %1943 = vmatmul.f32.gmra.mxu0 %v669
        %v1944 = vpop.f32.mrf.mxu0
        %v1945 = vadd.f32 %v1832, %v1944
        %1946 = vmatmul.f32.gmra.mxu0 %v677
        %v1947 = vpop.f32.mrf.mxu0
        %v1948 = vadd.f32 %v1835, %v1947
        %1949 = vmatmul.f32.gmra.mxu0 %v685
        %v1950 = vpop.f32.mrf.mxu0
        %v1951 = vadd.f32 %v1838, %v1950
        %1952 = vmatmul.f32.gmra.mxu0 %v693
        %v1953 = vpop.f32.mrf.mxu0
        %v1954 = vadd.f32 %v1841, %v1953
        %1955 = vmatmul.f32.gmra.mxu0 %v701
        %v1956 = vpop.f32.mrf.mxu0
        %v1957 = vadd.f32 %v1844, %v1956
        %1958 = vmatmul.f32.gmra.mxu0 %v709
        %v1959 = vpop.f32.mrf.mxu0
        %v1960 = vadd.f32 %v1847, %v1959
        %1961 = vmatmul.f32.gmra.mxu0 %v717
        %v1962 = vpop.f32.mrf.mxu0
        %v1963 = vadd.f32 %v1850, %v1962
        %1964 = vmatmul.f32.gmra.mxu0 %v725
        %v1965 = vpop.f32.mrf.mxu0
        %v1966 = vadd.f32 %v1853, %v1965
        %1967 = vmatmul.f32.gmra.mxu0 %v733
        %v1968 = vpop.f32.mrf.mxu0
        %v1969 = vadd.f32 %v1856, %v1968
        %1970 = vmatmul.f32.gmra.mxu0 %v741
        %v1971 = vpop.f32.mrf.mxu0
        %v1972 = vadd.f32 %v1859, %v1971
        %1973 = vmatmul.f32.gmra.mxu0 %v749
        %v1974 = vpop.f32.mrf.mxu0
        %v1975 = vadd.f32 %v1862, %v1974
        %1976 = vmatmul.f32.gmra.mxu0 %v757
        %v1977 = vpop.f32.mrf.mxu0
        %v1978 = vadd.f32 %v1865, %v1977
        %1979 = vmatmul.f32.gmra.mxu0 %v765
        %v1980 = vpop.f32.mrf.mxu0
        %v1981 = vadd.f32 %v1868, %v1980
        %1982 = vmatmul.f32.gmra.mxu0 %v773
        %v1983 = vpop.f32.mrf.mxu0
        %v1984 = vadd.f32 %v1871, %v1983
        %1985 = vmatmul.f32.gmra.mxu0 %v781
        %v1986 = vpop.f32.mrf.mxu0
        %v1987 = vadd.f32 %v1874, %v1986
        %1988 = vmatmul.f32.gmra.mxu0 %v789
        %v1989 = vpop.f32.mrf.mxu0
        %v1990 = vadd.f32 %v1877, %v1989
        %1991 = vmatmul.f32.gmra.mxu0 %v797
        %v1992 = vpop.f32.mrf.mxu0
        %v1993 = vadd.f32 %v1880, %v1992
        %1994 = vmatmul.f32.gmra.mxu0 %v805
        %v1995 = vpop.f32.mrf.mxu0
        %v1996 = vadd.f32 %v1883, %v1995
        %1997 = vdwg.mxu0
        %1998 = vmatpush.msra.mxu0 %v1252
        %1999 = vmatpush.msra.mxu0 %v1248
        %2000 = vmatpush.msra.mxu0 %v1244
        %2001 = vmatpush.msra.mxu0 %v1240
        %2002 = vmatpush.msra.mxu0 %v1236
        %2003 = vmatpush.msra.mxu0 %v1232
        %2004 = vmatpush.msra.mxu0 %v1228
        %2005 = vmatpush.msra.mxu0 %v1224
        %2006 = vmatpush.msra.mxu0 %v1220
        %2007 = vmatpush.msra.mxu0 %v1216
        %2008 = vmatpush.msra.mxu0 %v1212
        %2009 = vmatpush.msra.mxu0 %v1208
        %2010 = vmatpush.msra.mxu0 %v1204
        %2011 = vmatpush.msra.mxu0 %v1200
        %2012 = vmatpush.msra.mxu0 %v1196
        %2013 = vmatpush.msra.mxu0 %v1192
        %2014 = vmatmul.f32.gmra.mxu0 %v558
        %v2015 = vpop.f32.mrf.mxu0
        %v2016 = vadd.f32 %v1903, %v2015
        %2017 = vmatmul.f32.gmra.mxu0 %v566
        %v2018 = vpop.f32.mrf.mxu0
        %v2019 = vadd.f32 %v1906, %v2018
        %2020 = vmatmul.f32.gmra.mxu0 %v574
        %v2021 = vpop.f32.mrf.mxu0
        %v2022 = vadd.f32 %v1909, %v2021
        %2023 = vmatmul.f32.gmra.mxu0 %v582
        %v2024 = vpop.f32.mrf.mxu0
        %v2025 = vadd.f32 %v1912, %v2024
        %2026 = vmatmul.f32.gmra.mxu0 %v590
        %v2027 = vpop.f32.mrf.mxu0
        %v2028 = vadd.f32 %v1915, %v2027
        %2029 = vmatmul.f32.gmra.mxu0 %v598
        %v2030 = vpop.f32.mrf.mxu0
        %v2031 = vadd.f32 %v1918, %v2030
        %2032 = vmatmul.f32.gmra.mxu0 %v606
        %v2033 = vpop.f32.mrf.mxu0
        %v2034 = vadd.f32 %v1921, %v2033
        %2035 = vmatmul.f32.gmra.mxu0 %v614
        %v2036 = vpop.f32.mrf.mxu0
        %v2037 = vadd.f32 %v1924, %v2036
        %2038 = vmatmul.f32.gmra.mxu0 %v622
        %v2039 = vpop.f32.mrf.mxu0
        %v2040 = vadd.f32 %v1927, %v2039
        %2041 = vmatmul.f32.gmra.mxu0 %v630
        %v2042 = vpop.f32.mrf.mxu0
        %v2043 = vadd.f32 %v1930, %v2042
        %2044 = vmatmul.f32.gmra.mxu0 %v638
        %v2045 = vpop.f32.mrf.mxu0
        %v2046 = vadd.f32 %v1933, %v2045
        %2047 = vmatmul.f32.gmra.mxu0 %v646
        %v2048 = vpop.f32.mrf.mxu0
        %v2049 = vadd.f32 %v1936, %v2048
        %2050 = vmatmul.f32.gmra.mxu0 %v654
        %v2051 = vpop.f32.mrf.mxu0
        %v2052 = vadd.f32 %v1939, %v2051
        %2053 = vmatmul.f32.gmra.mxu0 %v662
        %v2054 = vpop.f32.mrf.mxu0
        %v2055 = vadd.f32 %v1942, %v2054
        %2056 = vmatmul.f32.gmra.mxu0 %v670
        %v2057 = vpop.f32.mrf.mxu0
        %v2058 = vadd.f32 %v1945, %v2057
        %2059 = vmatmul.f32.gmra.mxu0 %v678
        %v2060 = vpop.f32.mrf.mxu0
        %v2061 = vadd.f32 %v1948, %v2060
        %2062 = vmatmul.f32.gmra.mxu0 %v686
        %v2063 = vpop.f32.mrf.mxu0
        %v2064 = vadd.f32 %v1951, %v2063
        %2065 = vmatmul.f32.gmra.mxu0 %v694
        %v2066 = vpop.f32.mrf.mxu0
        %v2067 = vadd.f32 %v1954, %v2066
        %2068 = vmatmul.f32.gmra.mxu0 %v702
        %v2069 = vpop.f32.mrf.mxu0
        %v2070 = vadd.f32 %v1957, %v2069
        %2071 = vmatmul.f32.gmra.mxu0 %v710
        %v2072 = vpop.f32.mrf.mxu0
        %v2073 = vadd.f32 %v1960, %v2072
        %2074 = vmatmul.f32.gmra.mxu0 %v718
        %v2075 = vpop.f32.mrf.mxu0
        %v2076 = vadd.f32 %v1963, %v2075
        %2077 = vmatmul.f32.gmra.mxu0 %v726
        %v2078 = vpop.f32.mrf.mxu0
        %v2079 = vadd.f32 %v1966, %v2078
        %2080 = vmatmul.f32.gmra.mxu0 %v734
        %v2081 = vpop.f32.mrf.mxu0
        %v2082 = vadd.f32 %v1969, %v2081
        %2083 = vmatmul.f32.gmra.mxu0 %v742
        %v2084 = vpop.f32.mrf.mxu0
        %v2085 = vadd.f32 %v1972, %v2084
        %2086 = vmatmul.f32.gmra.mxu0 %v750
        %v2087 = vpop.f32.mrf.mxu0
        %v2088 = vadd.f32 %v1975, %v2087
        %2089 = vmatmul.f32.gmra.mxu0 %v758
        %v2090 = vpop.f32.mrf.mxu0
        %v2091 = vadd.f32 %v1978, %v2090
        %2092 = vmatmul.f32.gmra.mxu0 %v766
        %v2093 = vpop.f32.mrf.mxu0
        %v2094 = vadd.f32 %v1981, %v2093
        %2095 = vmatmul.f32.gmra.mxu0 %v774
        %v2096 = vpop.f32.mrf.mxu0
        %v2097 = vadd.f32 %v1984, %v2096
        %2098 = vmatmul.f32.gmra.mxu0 %v782
        %v2099 = vpop.f32.mrf.mxu0
        %v2100 = vadd.f32 %v1987, %v2099
        %2101 = vmatmul.f32.gmra.mxu0 %v790
        %v2102 = vpop.f32.mrf.mxu0
        %v2103 = vadd.f32 %v1990, %v2102
        %2104 = vmatmul.f32.gmra.mxu0 %v798
        %v2105 = vpop.f32.mrf.mxu0
        %v2106 = vadd.f32 %v1993, %v2105
        %2107 = vmatmul.f32.gmra.mxu0 %v806
        %v2108 = vpop.f32.mrf.mxu0
        %v2109 = vadd.f32 %v1996, %v2108
        %2110 = vdwg.mxu0
        %2111 = vmatpush.msra.mxu0 %v1316
        %2112 = vmatpush.msra.mxu0 %v1312
        %2113 = vmatpush.msra.mxu0 %v1308
        %2114 = vmatpush.msra.mxu0 %v1304
        %2115 = vmatpush.msra.mxu0 %v1300
        %2116 = vmatpush.msra.mxu0 %v1296
        %2117 = vmatpush.msra.mxu0 %v1292
        %2118 = vmatpush.msra.mxu0 %v1288
        %2119 = vmatpush.msra.mxu0 %v1284
        %2120 = vmatpush.msra.mxu0 %v1280
        %2121 = vmatpush.msra.mxu0 %v1276
        %2122 = vmatpush.msra.mxu0 %v1272
        %2123 = vmatpush.msra.mxu0 %v1268
        %2124 = vmatpush.msra.mxu0 %v1264
        %2125 = vmatpush.msra.mxu0 %v1260
        %2126 = vmatpush.msra.mxu0 %v1256
        %2127 = vmatmul.f32.gmra.mxu0 %v559
        %v2128 = vpop.f32.mrf.mxu0
        %v2129 = vadd.f32 %v2016, %v2128
        %2130 = vmatmul.f32.gmra.mxu0 %v567
        %v2131 = vpop.f32.mrf.mxu0
        %v2132 = vadd.f32 %v2019, %v2131
        %2133 = vmatmul.f32.gmra.mxu0 %v575
        %v2134 = vpop.f32.mrf.mxu0
        %v2135 = vadd.f32 %v2022, %v2134
        %2136 = vmatmul.f32.gmra.mxu0 %v583
        %v2137 = vpop.f32.mrf.mxu0
        %v2138 = vadd.f32 %v2025, %v2137
        %2139 = vmatmul.f32.gmra.mxu0 %v591
        %v2140 = vpop.f32.mrf.mxu0
        %v2141 = vadd.f32 %v2028, %v2140
        %2142 = vmatmul.f32.gmra.mxu0 %v599
        %v2143 = vpop.f32.mrf.mxu0
        %v2144 = vadd.f32 %v2031, %v2143
        %2145 = vmatmul.f32.gmra.mxu0 %v607
        %v2146 = vpop.f32.mrf.mxu0
        %v2147 = vadd.f32 %v2034, %v2146
        %2148 = vmatmul.f32.gmra.mxu0 %v615
        %v2149 = vpop.f32.mrf.mxu0
        %v2150 = vadd.f32 %v2037, %v2149
        %2151 = vmatmul.f32.gmra.mxu0 %v623
        %v2152 = vpop.f32.mrf.mxu0
        %v2153 = vadd.f32 %v2040, %v2152
        %2154 = vmatmul.f32.gmra.mxu0 %v631
        %v2155 = vpop.f32.mrf.mxu0
        %v2156 = vadd.f32 %v2043, %v2155
        %2157 = vmatmul.f32.gmra.mxu0 %v639
        %v2158 = vpop.f32.mrf.mxu0
        %v2159 = vadd.f32 %v2046, %v2158
        %2160 = vmatmul.f32.gmra.mxu0 %v647
        %v2161 = vpop.f32.mrf.mxu0
        %v2162 = vadd.f32 %v2049, %v2161
        %2163 = vmatmul.f32.gmra.mxu0 %v655
        %v2164 = vpop.f32.mrf.mxu0
        %v2165 = vadd.f32 %v2052, %v2164
        %2166 = vmatmul.f32.gmra.mxu0 %v663
        %v2167 = vpop.f32.mrf.mxu0
        %v2168 = vadd.f32 %v2055, %v2167
        %2169 = vmatmul.f32.gmra.mxu0 %v671
        %v2170 = vpop.f32.mrf.mxu0
        %v2171 = vadd.f32 %v2058, %v2170
        %2172 = vmatmul.f32.gmra.mxu0 %v679
        %v2173 = vpop.f32.mrf.mxu0
        %v2174 = vadd.f32 %v2061, %v2173
        %2175 = vmatmul.f32.gmra.mxu0 %v687
        %v2176 = vpop.f32.mrf.mxu0
        %v2177 = vadd.f32 %v2064, %v2176
        %2178 = vmatmul.f32.gmra.mxu0 %v695
        %v2179 = vpop.f32.mrf.mxu0
        %v2180 = vadd.f32 %v2067, %v2179
        %2181 = vmatmul.f32.gmra.mxu0 %v703
        %v2182 = vpop.f32.mrf.mxu0
        %v2183 = vadd.f32 %v2070, %v2182
        %2184 = vmatmul.f32.gmra.mxu0 %v711
        %v2185 = vpop.f32.mrf.mxu0
        %v2186 = vadd.f32 %v2073, %v2185
        %2187 = vmatmul.f32.gmra.mxu0 %v719
        %v2188 = vpop.f32.mrf.mxu0
        %v2189 = vadd.f32 %v2076, %v2188
        %2190 = vmatmul.f32.gmra.mxu0 %v727
        %v2191 = vpop.f32.mrf.mxu0
        %v2192 = vadd.f32 %v2079, %v2191
        %2193 = vmatmul.f32.gmra.mxu0 %v735
        %v2194 = vpop.f32.mrf.mxu0
        %v2195 = vadd.f32 %v2082, %v2194
        %2196 = vmatmul.f32.gmra.mxu0 %v743
        %v2197 = vpop.f32.mrf.mxu0
        %v2198 = vadd.f32 %v2085, %v2197
        %2199 = vmatmul.f32.gmra.mxu0 %v751
        %v2200 = vpop.f32.mrf.mxu0
        %v2201 = vadd.f32 %v2088, %v2200
        %2202 = vmatmul.f32.gmra.mxu0 %v759
        %v2203 = vpop.f32.mrf.mxu0
        %v2204 = vadd.f32 %v2091, %v2203
        %2205 = vmatmul.f32.gmra.mxu0 %v767
        %v2206 = vpop.f32.mrf.mxu0
        %v2207 = vadd.f32 %v2094, %v2206
        %2208 = vmatmul.f32.gmra.mxu0 %v775
        %v2209 = vpop.f32.mrf.mxu0
        %v2210 = vadd.f32 %v2097, %v2209
        %2211 = vmatmul.f32.gmra.mxu0 %v783
        %v2212 = vpop.f32.mrf.mxu0
        %v2213 = vadd.f32 %v2100, %v2212
        %2214 = vmatmul.f32.gmra.mxu0 %v791
        %v2215 = vpop.f32.mrf.mxu0
        %v2216 = vadd.f32 %v2103, %v2215
        %2217 = vmatmul.f32.gmra.mxu0 %v799
        %v2218 = vpop.f32.mrf.mxu0
        %v2219 = vadd.f32 %v2106, %v2218
        %2220 = vmatmul.f32.gmra.mxu0 %v807
        %v2221 = vpop.f32.mrf.mxu0
        %v2222 = vadd.f32 %v2109, %v2221
        %2223 = vdwg.mxu0
        %2224 = vmatpush.msra.mxu0 %v869
        %2225 = vmatpush.msra.mxu0 %v865
        %2226 = vmatpush.msra.mxu0 %v861
        %2227 = vmatpush.msra.mxu0 %v857
        %2228 = vmatpush.msra.mxu0 %v853
        %2229 = vmatpush.msra.mxu0 %v849
        %2230 = vmatpush.msra.mxu0 %v845
        %2231 = vmatpush.msra.mxu0 %v841
        %2232 = vmatpush.msra.mxu0 %v837
        %2233 = vmatpush.msra.mxu0 %v833
        %2234 = vmatpush.msra.mxu0 %v829
        %2235 = vmatpush.msra.mxu0 %v825
        %2236 = vmatpush.msra.mxu0 %v821
        %2237 = vmatpush.msra.mxu0 %v817
        %2238 = vmatpush.msra.mxu0 %v813
        %2239 = vmatpush.msra.mxu0 %v809
        %2240 = vmatmul.f32.gmra.mxu0 %v552
        %v2241 = vpop.f32.mrf.mxu0
        %v2242 = vadd.f32 0.0, %v2241
        %2243 = vmatmul.f32.gmra.mxu0 %v560
        %v2244 = vpop.f32.mrf.mxu0
        %v2245 = vadd.f32 0.0, %v2244
        %2246 = vmatmul.f32.gmra.mxu0 %v568
        %v2247 = vpop.f32.mrf.mxu0
        %v2248 = vadd.f32 0.0, %v2247
        %2249 = vmatmul.f32.gmra.mxu0 %v576
        %v2250 = vpop.f32.mrf.mxu0
        %v2251 = vadd.f32 0.0, %v2250
        %2252 = vmatmul.f32.gmra.mxu0 %v584
        %v2253 = vpop.f32.mrf.mxu0
        %v2254 = vadd.f32 0.0, %v2253
        %2255 = vmatmul.f32.gmra.mxu0 %v592
        %v2256 = vpop.f32.mrf.mxu0
        %v2257 = vadd.f32 0.0, %v2256
        %2258 = vmatmul.f32.gmra.mxu0 %v600
        %v2259 = vpop.f32.mrf.mxu0
        %v2260 = vadd.f32 0.0, %v2259
        %2261 = vmatmul.f32.gmra.mxu0 %v608
        %v2262 = vpop.f32.mrf.mxu0
        %v2263 = vadd.f32 0.0, %v2262
        %2264 = vmatmul.f32.gmra.mxu0 %v616
        %v2265 = vpop.f32.mrf.mxu0
        %v2266 = vadd.f32 0.0, %v2265
        %2267 = vmatmul.f32.gmra.mxu0 %v624
        %v2268 = vpop.f32.mrf.mxu0
        %v2269 = vadd.f32 0.0, %v2268
        %2270 = vmatmul.f32.gmra.mxu0 %v632
        %v2271 = vpop.f32.mrf.mxu0
        %v2272 = vadd.f32 0.0, %v2271
        %2273 = vmatmul.f32.gmra.mxu0 %v640
        %v2274 = vpop.f32.mrf.mxu0
        %v2275 = vadd.f32 0.0, %v2274
        %2276 = vmatmul.f32.gmra.mxu0 %v648
        %v2277 = vpop.f32.mrf.mxu0
        %v2278 = vadd.f32 0.0, %v2277
        %2279 = vmatmul.f32.gmra.mxu0 %v656
        %v2280 = vpop.f32.mrf.mxu0
        %v2281 = vadd.f32 0.0, %v2280
        %2282 = vmatmul.f32.gmra.mxu0 %v664
        %v2283 = vpop.f32.mrf.mxu0
        %v2284 = vadd.f32 0.0, %v2283
        %2285 = vmatmul.f32.gmra.mxu0 %v672
        %v2286 = vpop.f32.mrf.mxu0
        %v2287 = vadd.f32 0.0, %v2286
        %2288 = vmatmul.f32.gmra.mxu0 %v680
        %v2289 = vpop.f32.mrf.mxu0
        %v2290 = vadd.f32 0.0, %v2289
        %2291 = vmatmul.f32.gmra.mxu0 %v688
        %v2292 = vpop.f32.mrf.mxu0
        %v2293 = vadd.f32 0.0, %v2292
        %2294 = vmatmul.f32.gmra.mxu0 %v696
        %v2295 = vpop.f32.mrf.mxu0
        %v2296 = vadd.f32 0.0, %v2295
        %2297 = vmatmul.f32.gmra.mxu0 %v704
        %v2298 = vpop.f32.mrf.mxu0
        %v2299 = vadd.f32 0.0, %v2298
        %2300 = vmatmul.f32.gmra.mxu0 %v712
        %v2301 = vpop.f32.mrf.mxu0
        %v2302 = vadd.f32 0.0, %v2301
        %2303 = vmatmul.f32.gmra.mxu0 %v720
        %v2304 = vpop.f32.mrf.mxu0
        %v2305 = vadd.f32 0.0, %v2304
        %2306 = vmatmul.f32.gmra.mxu0 %v728
        %v2307 = vpop.f32.mrf.mxu0
        %v2308 = vadd.f32 0.0, %v2307
        %2309 = vmatmul.f32.gmra.mxu0 %v736
        %v2310 = vpop.f32.mrf.mxu0
        %v2311 = vadd.f32 0.0, %v2310
        %2312 = vmatmul.f32.gmra.mxu0 %v744
        %v2313 = vpop.f32.mrf.mxu0
        %v2314 = vadd.f32 0.0, %v2313
        %2315 = vmatmul.f32.gmra.mxu0 %v752
        %v2316 = vpop.f32.mrf.mxu0
        %v2317 = vadd.f32 0.0, %v2316
        %2318 = vmatmul.f32.gmra.mxu0 %v760
        %v2319 = vpop.f32.mrf.mxu0
        %v2320 = vadd.f32 0.0, %v2319
        %2321 = vmatmul.f32.gmra.mxu0 %v768
        %v2322 = vpop.f32.mrf.mxu0
        %v2323 = vadd.f32 0.0, %v2322
        %2324 = vmatmul.f32.gmra.mxu0 %v776
        %v2325 = vpop.f32.mrf.mxu0
        %v2326 = vadd.f32 0.0, %v2325
        %2327 = vmatmul.f32.gmra.mxu0 %v784
        %v2328 = vpop.f32.mrf.mxu0
        %v2329 = vadd.f32 0.0, %v2328
        %2330 = vmatmul.f32.gmra.mxu0 %v792
        %v2331 = vpop.f32.mrf.mxu0
        %v2332 = vadd.f32 0.0, %v2331
        %2333 = vmatmul.f32.gmra.mxu0 %v800
        %v2334 = vpop.f32.mrf.mxu0
        %v2335 = vadd.f32 0.0, %v2334
        %2336 = vdwg.mxu0
        %2337 = vmatpush.msra.mxu0 %v933
        %2338 = vmatpush.msra.mxu0 %v929
        %2339 = vmatpush.msra.mxu0 %v925
        %2340 = vmatpush.msra.mxu0 %v921
        %2341 = vmatpush.msra.mxu0 %v917
        %2342 = vmatpush.msra.mxu0 %v913
        %2343 = vmatpush.msra.mxu0 %v909
        %2344 = vmatpush.msra.mxu0 %v905
        %2345 = vmatpush.msra.mxu0 %v901
        %2346 = vmatpush.msra.mxu0 %v897
        %2347 = vmatpush.msra.mxu0 %v893
        %2348 = vmatpush.msra.mxu0 %v889
        %2349 = vmatpush.msra.mxu0 %v885
        %2350 = vmatpush.msra.mxu0 %v881
        %2351 = vmatpush.msra.mxu0 %v877
        %2352 = vmatpush.msra.mxu0 %v873
        %2353 = vmatmul.f32.gmra.mxu0 %v553
        %v2354 = vpop.f32.mrf.mxu0
        %v2355 = vadd.f32 %v2242, %v2354
        %2356 = vmatmul.f32.gmra.mxu0 %v561
        %v2357 = vpop.f32.mrf.mxu0
        %v2358 = vadd.f32 %v2245, %v2357
        %2359 = vmatmul.f32.gmra.mxu0 %v569
        %v2360 = vpop.f32.mrf.mxu0
        %v2361 = vadd.f32 %v2248, %v2360
        %2362 = vmatmul.f32.gmra.mxu0 %v577
        %v2363 = vpop.f32.mrf.mxu0
        %v2364 = vadd.f32 %v2251, %v2363
        %2365 = vmatmul.f32.gmra.mxu0 %v585
        %v2366 = vpop.f32.mrf.mxu0
        %v2367 = vadd.f32 %v2254, %v2366
        %2368 = vmatmul.f32.gmra.mxu0 %v593
        %v2369 = vpop.f32.mrf.mxu0
        %v2370 = vadd.f32 %v2257, %v2369
        %2371 = vmatmul.f32.gmra.mxu0 %v601
        %v2372 = vpop.f32.mrf.mxu0
        %v2373 = vadd.f32 %v2260, %v2372
        %2374 = vmatmul.f32.gmra.mxu0 %v609
        %v2375 = vpop.f32.mrf.mxu0
        %v2376 = vadd.f32 %v2263, %v2375
        %2377 = vmatmul.f32.gmra.mxu0 %v617
        %v2378 = vpop.f32.mrf.mxu0
        %v2379 = vadd.f32 %v2266, %v2378
        %2380 = vmatmul.f32.gmra.mxu0 %v625
        %v2381 = vpop.f32.mrf.mxu0
        %v2382 = vadd.f32 %v2269, %v2381
        %2383 = vmatmul.f32.gmra.mxu0 %v633
        %v2384 = vpop.f32.mrf.mxu0
        %v2385 = vadd.f32 %v2272, %v2384
        %2386 = vmatmul.f32.gmra.mxu0 %v641
        %v2387 = vpop.f32.mrf.mxu0
        %v2388 = vadd.f32 %v2275, %v2387
        %2389 = vmatmul.f32.gmra.mxu0 %v649
        %v2390 = vpop.f32.mrf.mxu0
        %v2391 = vadd.f32 %v2278, %v2390
        %2392 = vmatmul.f32.gmra.mxu0 %v657
        %v2393 = vpop.f32.mrf.mxu0
        %v2394 = vadd.f32 %v2281, %v2393
        %2395 = vmatmul.f32.gmra.mxu0 %v665
        %v2396 = vpop.f32.mrf.mxu0
        %v2397 = vadd.f32 %v2284, %v2396
        %2398 = vmatmul.f32.gmra.mxu0 %v673
        %v2399 = vpop.f32.mrf.mxu0
        %v2400 = vadd.f32 %v2287, %v2399
        %2401 = vmatmul.f32.gmra.mxu0 %v681
        %v2402 = vpop.f32.mrf.mxu0
        %v2403 = vadd.f32 %v2290, %v2402
        %2404 = vmatmul.f32.gmra.mxu0 %v689
        %v2405 = vpop.f32.mrf.mxu0
        %v2406 = vadd.f32 %v2293, %v2405
        %2407 = vmatmul.f32.gmra.mxu0 %v697
        %v2408 = vpop.f32.mrf.mxu0
        %v2409 = vadd.f32 %v2296, %v2408
        %2410 = vmatmul.f32.gmra.mxu0 %v705
        %v2411 = vpop.f32.mrf.mxu0
        %v2412 = vadd.f32 %v2299, %v2411
        %2413 = vmatmul.f32.gmra.mxu0 %v713
        %v2414 = vpop.f32.mrf.mxu0
        %v2415 = vadd.f32 %v2302, %v2414
        %2416 = vmatmul.f32.gmra.mxu0 %v721
        %v2417 = vpop.f32.mrf.mxu0
        %v2418 = vadd.f32 %v2305, %v2417
        %2419 = vmatmul.f32.gmra.mxu0 %v729
        %v2420 = vpop.f32.mrf.mxu0
        %v2421 = vadd.f32 %v2308, %v2420
        %2422 = vmatmul.f32.gmra.mxu0 %v737
        %v2423 = vpop.f32.mrf.mxu0
        %v2424 = vadd.f32 %v2311, %v2423
        %2425 = vmatmul.f32.gmra.mxu0 %v745
        %v2426 = vpop.f32.mrf.mxu0
        %v2427 = vadd.f32 %v2314, %v2426
        %2428 = vmatmul.f32.gmra.mxu0 %v753
        %v2429 = vpop.f32.mrf.mxu0
        %v2430 = vadd.f32 %v2317, %v2429
        %2431 = vmatmul.f32.gmra.mxu0 %v761
        %v2432 = vpop.f32.mrf.mxu0
        %v2433 = vadd.f32 %v2320, %v2432
        %2434 = vmatmul.f32.gmra.mxu0 %v769
        %v2435 = vpop.f32.mrf.mxu0
        %v2436 = vadd.f32 %v2323, %v2435
        %2437 = vmatmul.f32.gmra.mxu0 %v777
        %v2438 = vpop.f32.mrf.mxu0
        %v2439 = vadd.f32 %v2326, %v2438
        %2440 = vmatmul.f32.gmra.mxu0 %v785
        %v2441 = vpop.f32.mrf.mxu0
        %v2442 = vadd.f32 %v2329, %v2441
        %2443 = vmatmul.f32.gmra.mxu0 %v793
        %v2444 = vpop.f32.mrf.mxu0
        %v2445 = vadd.f32 %v2332, %v2444
        %2446 = vmatmul.f32.gmra.mxu0 %v801
        %v2447 = vpop.f32.mrf.mxu0
        %v2448 = vadd.f32 %v2335, %v2447
        %2449 = vdwg.mxu0
        %2450 = vmatpush.msra.mxu0 %v997
        %2451 = vmatpush.msra.mxu0 %v993
        %2452 = vmatpush.msra.mxu0 %v989
        %2453 = vmatpush.msra.mxu0 %v985
        %2454 = vmatpush.msra.mxu0 %v981
        %2455 = vmatpush.msra.mxu0 %v977
        %2456 = vmatpush.msra.mxu0 %v973
        %2457 = vmatpush.msra.mxu0 %v969
        %2458 = vmatpush.msra.mxu0 %v965
        %2459 = vmatpush.msra.mxu0 %v961
        %2460 = vmatpush.msra.mxu0 %v957
        %2461 = vmatpush.msra.mxu0 %v953
        %2462 = vmatpush.msra.mxu0 %v949
        %2463 = vmatpush.msra.mxu0 %v945
        %2464 = vmatpush.msra.mxu0 %v941
        %2465 = vmatpush.msra.mxu0 %v937
        %2466 = vmatmul.f32.gmra.mxu0 %v554
        %v2467 = vpop.f32.mrf.mxu0
        %v2468 = vadd.f32 %v2355, %v2467
        %2469 = vmatmul.f32.gmra.mxu0 %v562
        %v2470 = vpop.f32.mrf.mxu0
        %v2471 = vadd.f32 %v2358, %v2470
        %2472 = vmatmul.f32.gmra.mxu0 %v570
        %v2473 = vpop.f32.mrf.mxu0
        %v2474 = vadd.f32 %v2361, %v2473
        %2475 = vmatmul.f32.gmra.mxu0 %v578
        %v2476 = vpop.f32.mrf.mxu0
        %v2477 = vadd.f32 %v2364, %v2476
        %2478 = vmatmul.f32.gmra.mxu0 %v586
        %v2479 = vpop.f32.mrf.mxu0
        %v2480 = vadd.f32 %v2367, %v2479
        %2481 = vmatmul.f32.gmra.mxu0 %v594
        %v2482 = vpop.f32.mrf.mxu0
        %v2483 = vadd.f32 %v2370, %v2482
        %2484 = vmatmul.f32.gmra.mxu0 %v602
        %v2485 = vpop.f32.mrf.mxu0
        %v2486 = vadd.f32 %v2373, %v2485
        %2487 = vmatmul.f32.gmra.mxu0 %v610
        %v2488 = vpop.f32.mrf.mxu0
        %v2489 = vadd.f32 %v2376, %v2488
        %2490 = vmatmul.f32.gmra.mxu0 %v618
        %v2491 = vpop.f32.mrf.mxu0
        %v2492 = vadd.f32 %v2379, %v2491
        %2493 = vmatmul.f32.gmra.mxu0 %v626
        %v2494 = vpop.f32.mrf.mxu0
        %v2495 = vadd.f32 %v2382, %v2494
        %2496 = vmatmul.f32.gmra.mxu0 %v634
        %v2497 = vpop.f32.mrf.mxu0
        %v2498 = vadd.f32 %v2385, %v2497
        %2499 = vmatmul.f32.gmra.mxu0 %v642
        %v2500 = vpop.f32.mrf.mxu0
        %v2501 = vadd.f32 %v2388, %v2500
        %2502 = vmatmul.f32.gmra.mxu0 %v650
        %v2503 = vpop.f32.mrf.mxu0
        %v2504 = vadd.f32 %v2391, %v2503
        %2505 = vmatmul.f32.gmra.mxu0 %v658
        %v2506 = vpop.f32.mrf.mxu0
        %v2507 = vadd.f32 %v2394, %v2506
        %2508 = vmatmul.f32.gmra.mxu0 %v666
        %v2509 = vpop.f32.mrf.mxu0
        %v2510 = vadd.f32 %v2397, %v2509
        %2511 = vmatmul.f32.gmra.mxu0 %v674
        %v2512 = vpop.f32.mrf.mxu0
        %v2513 = vadd.f32 %v2400, %v2512
        %2514 = vmatmul.f32.gmra.mxu0 %v682
        %v2515 = vpop.f32.mrf.mxu0
        %v2516 = vadd.f32 %v2403, %v2515
        %2517 = vmatmul.f32.gmra.mxu0 %v690
        %v2518 = vpop.f32.mrf.mxu0
        %v2519 = vadd.f32 %v2406, %v2518
        %2520 = vmatmul.f32.gmra.mxu0 %v698
        %v2521 = vpop.f32.mrf.mxu0
        %v2522 = vadd.f32 %v2409, %v2521
        %2523 = vmatmul.f32.gmra.mxu0 %v706
        %v2524 = vpop.f32.mrf.mxu0
        %v2525 = vadd.f32 %v2412, %v2524
        %2526 = vmatmul.f32.gmra.mxu0 %v714
        %v2527 = vpop.f32.mrf.mxu0
        %v2528 = vadd.f32 %v2415, %v2527
        %2529 = vmatmul.f32.gmra.mxu0 %v722
        %v2530 = vpop.f32.mrf.mxu0
        %v2531 = vadd.f32 %v2418, %v2530
        %2532 = vmatmul.f32.gmra.mxu0 %v730
        %v2533 = vpop.f32.mrf.mxu0
        %v2534 = vadd.f32 %v2421, %v2533
        %2535 = vmatmul.f32.gmra.mxu0 %v738
        %v2536 = vpop.f32.mrf.mxu0
        %v2537 = vadd.f32 %v2424, %v2536
        %2538 = vmatmul.f32.gmra.mxu0 %v746
        %v2539 = vpop.f32.mrf.mxu0
        %v2540 = vadd.f32 %v2427, %v2539
        %2541 = vmatmul.f32.gmra.mxu0 %v754
        %v2542 = vpop.f32.mrf.mxu0
        %v2543 = vadd.f32 %v2430, %v2542
        %2544 = vmatmul.f32.gmra.mxu0 %v762
        %v2545 = vpop.f32.mrf.mxu0
        %v2546 = vadd.f32 %v2433, %v2545
        %2547 = vmatmul.f32.gmra.mxu0 %v770
        %v2548 = vpop.f32.mrf.mxu0
        %v2549 = vadd.f32 %v2436, %v2548
        %2550 = vmatmul.f32.gmra.mxu0 %v778
        %v2551 = vpop.f32.mrf.mxu0
        %v2552 = vadd.f32 %v2439, %v2551
        %2553 = vmatmul.f32.gmra.mxu0 %v786
        %v2554 = vpop.f32.mrf.mxu0
        %v2555 = vadd.f32 %v2442, %v2554
        %2556 = vmatmul.f32.gmra.mxu0 %v794
        %v2557 = vpop.f32.mrf.mxu0
        %v2558 = vadd.f32 %v2445, %v2557
        %2559 = vmatmul.f32.gmra.mxu0 %v802
        %v2560 = vpop.f32.mrf.mxu0
        %v2561 = vadd.f32 %v2448, %v2560
        %2562 = vdwg.mxu0
        %2563 = vmatpush.msra.mxu0 %v1061
        %2564 = vmatpush.msra.mxu0 %v1057
        %2565 = vmatpush.msra.mxu0 %v1053
        %2566 = vmatpush.msra.mxu0 %v1049
        %2567 = vmatpush.msra.mxu0 %v1045
        %2568 = vmatpush.msra.mxu0 %v1041
        %2569 = vmatpush.msra.mxu0 %v1037
        %2570 = vmatpush.msra.mxu0 %v1033
        %2571 = vmatpush.msra.mxu0 %v1029
        %2572 = vmatpush.msra.mxu0 %v1025
        %2573 = vmatpush.msra.mxu0 %v1021
        %2574 = vmatpush.msra.mxu0 %v1017
        %2575 = vmatpush.msra.mxu0 %v1013
        %2576 = vmatpush.msra.mxu0 %v1009
        %2577 = vmatpush.msra.mxu0 %v1005
        %2578 = vmatpush.msra.mxu0 %v1001
        %2579 = vmatmul.f32.gmra.mxu0 %v555
        %v2580 = vpop.f32.mrf.mxu0
        %v2581 = vadd.f32 %v2468, %v2580
        %2582 = vmatmul.f32.gmra.mxu0 %v563
        %v2583 = vpop.f32.mrf.mxu0
        %v2584 = vadd.f32 %v2471, %v2583
        %2585 = vmatmul.f32.gmra.mxu0 %v571
        %v2586 = vpop.f32.mrf.mxu0
        %v2587 = vadd.f32 %v2474, %v2586
        %2588 = vmatmul.f32.gmra.mxu0 %v579
        %v2589 = vpop.f32.mrf.mxu0
        %v2590 = vadd.f32 %v2477, %v2589
        %2591 = vmatmul.f32.gmra.mxu0 %v587
        %v2592 = vpop.f32.mrf.mxu0
        %v2593 = vadd.f32 %v2480, %v2592
        %2594 = vmatmul.f32.gmra.mxu0 %v595
        %v2595 = vpop.f32.mrf.mxu0
        %v2596 = vadd.f32 %v2483, %v2595
        %2597 = vmatmul.f32.gmra.mxu0 %v603
        %v2598 = vpop.f32.mrf.mxu0
        %v2599 = vadd.f32 %v2486, %v2598
        %2600 = vmatmul.f32.gmra.mxu0 %v611
        %v2601 = vpop.f32.mrf.mxu0
        %v2602 = vadd.f32 %v2489, %v2601
        %2603 = vmatmul.f32.gmra.mxu0 %v619
        %v2604 = vpop.f32.mrf.mxu0
        %v2605 = vadd.f32 %v2492, %v2604
        %2606 = vmatmul.f32.gmra.mxu0 %v627
        %v2607 = vpop.f32.mrf.mxu0
        %v2608 = vadd.f32 %v2495, %v2607
        %2609 = vmatmul.f32.gmra.mxu0 %v635
        %v2610 = vpop.f32.mrf.mxu0
        %v2611 = vadd.f32 %v2498, %v2610
        %2612 = vmatmul.f32.gmra.mxu0 %v643
        %v2613 = vpop.f32.mrf.mxu0
        %v2614 = vadd.f32 %v2501, %v2613
        %2615 = vmatmul.f32.gmra.mxu0 %v651
        %v2616 = vpop.f32.mrf.mxu0
        %v2617 = vadd.f32 %v2504, %v2616
        %2618 = vmatmul.f32.gmra.mxu0 %v659
        %v2619 = vpop.f32.mrf.mxu0
        %v2620 = vadd.f32 %v2507, %v2619
        %2621 = vmatmul.f32.gmra.mxu0 %v667
        %v2622 = vpop.f32.mrf.mxu0
        %v2623 = vadd.f32 %v2510, %v2622
        %2624 = vmatmul.f32.gmra.mxu0 %v675
        %v2625 = vpop.f32.mrf.mxu0
        %v2626 = vadd.f32 %v2513, %v2625
        %2627 = vmatmul.f32.gmra.mxu0 %v683
        %v2628 = vpop.f32.mrf.mxu0
        %v2629 = vadd.f32 %v2516, %v2628
        %2630 = vmatmul.f32.gmra.mxu0 %v691
        %v2631 = vpop.f32.mrf.mxu0
        %v2632 = vadd.f32 %v2519, %v2631
        %2633 = vmatmul.f32.gmra.mxu0 %v699
        %v2634 = vpop.f32.mrf.mxu0
        %v2635 = vadd.f32 %v2522, %v2634
        %2636 = vmatmul.f32.gmra.mxu0 %v707
        %v2637 = vpop.f32.mrf.mxu0
        %v2638 = vadd.f32 %v2525, %v2637
        %2639 = vmatmul.f32.gmra.mxu0 %v715
        %v2640 = vpop.f32.mrf.mxu0
        %v2641 = vadd.f32 %v2528, %v2640
        %2642 = vmatmul.f32.gmra.mxu0 %v723
        %v2643 = vpop.f32.mrf.mxu0
        %v2644 = vadd.f32 %v2531, %v2643
        %2645 = vmatmul.f32.gmra.mxu0 %v731
        %v2646 = vpop.f32.mrf.mxu0
        %v2647 = vadd.f32 %v2534, %v2646
        %2648 = vmatmul.f32.gmra.mxu0 %v739
        %v2649 = vpop.f32.mrf.mxu0
        %v2650 = vadd.f32 %v2537, %v2649
        %2651 = vmatmul.f32.gmra.mxu0 %v747
        %v2652 = vpop.f32.mrf.mxu0
        %v2653 = vadd.f32 %v2540, %v2652
        %2654 = vmatmul.f32.gmra.mxu0 %v755
        %v2655 = vpop.f32.mrf.mxu0
        %v2656 = vadd.f32 %v2543, %v2655
        %2657 = vmatmul.f32.gmra.mxu0 %v763
        %v2658 = vpop.f32.mrf.mxu0
        %v2659 = vadd.f32 %v2546, %v2658
        %2660 = vmatmul.f32.gmra.mxu0 %v771
        %v2661 = vpop.f32.mrf.mxu0
        %v2662 = vadd.f32 %v2549, %v2661
        %2663 = vmatmul.f32.gmra.mxu0 %v779
        %v2664 = vpop.f32.mrf.mxu0
        %v2665 = vadd.f32 %v2552, %v2664
        %2666 = vmatmul.f32.gmra.mxu0 %v787
        %v2667 = vpop.f32.mrf.mxu0
        %v2668 = vadd.f32 %v2555, %v2667
        %2669 = vmatmul.f32.gmra.mxu0 %v795
        %v2670 = vpop.f32.mrf.mxu0
        %v2671 = vadd.f32 %v2558, %v2670
        %2672 = vmatmul.f32.gmra.mxu0 %v803
        %v2673 = vpop.f32.mrf.mxu0
        %v2674 = vadd.f32 %v2561, %v2673
        %2675 = vdwg.mxu0
        %2676 = vmatpush.msra.mxu0 %v1125
        %2677 = vmatpush.msra.mxu0 %v1121
        %2678 = vmatpush.msra.mxu0 %v1117
        %2679 = vmatpush.msra.mxu0 %v1113
        %2680 = vmatpush.msra.mxu0 %v1109
        %2681 = vmatpush.msra.mxu0 %v1105
        %2682 = vmatpush.msra.mxu0 %v1101
        %2683 = vmatpush.msra.mxu0 %v1097
        %2684 = vmatpush.msra.mxu0 %v1093
        %2685 = vmatpush.msra.mxu0 %v1089
        %2686 = vmatpush.msra.mxu0 %v1085
        %2687 = vmatpush.msra.mxu0 %v1081
        %2688 = vmatpush.msra.mxu0 %v1077
        %2689 = vmatpush.msra.mxu0 %v1073
        %2690 = vmatpush.msra.mxu0 %v1069
        %2691 = vmatpush.msra.mxu0 %v1065
        %2692 = vmatmul.f32.gmra.mxu0 %v556
        %v2693 = vpop.f32.mrf.mxu0
        %v2694 = vadd.f32 %v2581, %v2693
        %2695 = vmatmul.f32.gmra.mxu0 %v564
        %v2696 = vpop.f32.mrf.mxu0
        %v2697 = vadd.f32 %v2584, %v2696
        %2698 = vmatmul.f32.gmra.mxu0 %v572
        %v2699 = vpop.f32.mrf.mxu0
        %v2700 = vadd.f32 %v2587, %v2699
        %2701 = vmatmul.f32.gmra.mxu0 %v580
        %v2702 = vpop.f32.mrf.mxu0
        %v2703 = vadd.f32 %v2590, %v2702
        %2704 = vmatmul.f32.gmra.mxu0 %v588
        %v2705 = vpop.f32.mrf.mxu0
        %v2706 = vadd.f32 %v2593, %v2705
        %2707 = vmatmul.f32.gmra.mxu0 %v596
        %v2708 = vpop.f32.mrf.mxu0
        %v2709 = vadd.f32 %v2596, %v2708
        %2710 = vmatmul.f32.gmra.mxu0 %v604
        %v2711 = vpop.f32.mrf.mxu0
        %v2712 = vadd.f32 %v2599, %v2711
        %2713 = vmatmul.f32.gmra.mxu0 %v612
        %v2714 = vpop.f32.mrf.mxu0
        %v2715 = vadd.f32 %v2602, %v2714
        %2716 = vmatmul.f32.gmra.mxu0 %v620
        %v2717 = vpop.f32.mrf.mxu0
        %v2718 = vadd.f32 %v2605, %v2717
        %2719 = vmatmul.f32.gmra.mxu0 %v628
        %v2720 = vpop.f32.mrf.mxu0
        %v2721 = vadd.f32 %v2608, %v2720
        %2722 = vmatmul.f32.gmra.mxu0 %v636
        %v2723 = vpop.f32.mrf.mxu0
        %v2724 = vadd.f32 %v2611, %v2723
        %2725 = vmatmul.f32.gmra.mxu0 %v644
        %v2726 = vpop.f32.mrf.mxu0
        %v2727 = vadd.f32 %v2614, %v2726
        %2728 = vmatmul.f32.gmra.mxu0 %v652
        %v2729 = vpop.f32.mrf.mxu0
        %v2730 = vadd.f32 %v2617, %v2729
        %2731 = vmatmul.f32.gmra.mxu0 %v660
        %v2732 = vpop.f32.mrf.mxu0
        %v2733 = vadd.f32 %v2620, %v2732
        %2734 = vmatmul.f32.gmra.mxu0 %v668
        %v2735 = vpop.f32.mrf.mxu0
        %v2736 = vadd.f32 %v2623, %v2735
        %2737 = vmatmul.f32.gmra.mxu0 %v676
        %v2738 = vpop.f32.mrf.mxu0
        %v2739 = vadd.f32 %v2626, %v2738
        %2740 = vmatmul.f32.gmra.mxu0 %v684
        %v2741 = vpop.f32.mrf.mxu0
        %v2742 = vadd.f32 %v2629, %v2741
        %2743 = vmatmul.f32.gmra.mxu0 %v692
        %v2744 = vpop.f32.mrf.mxu0
        %v2745 = vadd.f32 %v2632, %v2744
        %2746 = vmatmul.f32.gmra.mxu0 %v700
        %v2747 = vpop.f32.mrf.mxu0
        %v2748 = vadd.f32 %v2635, %v2747
        %2749 = vmatmul.f32.gmra.mxu0 %v708
        %v2750 = vpop.f32.mrf.mxu0
        %v2751 = vadd.f32 %v2638, %v2750
        %2752 = vmatmul.f32.gmra.mxu0 %v716
        %v2753 = vpop.f32.mrf.mxu0
        %v2754 = vadd.f32 %v2641, %v2753
        %2755 = vmatmul.f32.gmra.mxu0 %v724
        %v2756 = vpop.f32.mrf.mxu0
        %v2757 = vadd.f32 %v2644, %v2756
        %2758 = vmatmul.f32.gmra.mxu0 %v732
        %v2759 = vpop.f32.mrf.mxu0
        %v2760 = vadd.f32 %v2647, %v2759
        %2761 = vmatmul.f32.gmra.mxu0 %v740
        %v2762 = vpop.f32.mrf.mxu0
        %v2763 = vadd.f32 %v2650, %v2762
        %2764 = vmatmul.f32.gmra.mxu0 %v748
        %v2765 = vpop.f32.mrf.mxu0
        %v2766 = vadd.f32 %v2653, %v2765
        %2767 = vmatmul.f32.gmra.mxu0 %v756
        %v2768 = vpop.f32.mrf.mxu0
        %v2769 = vadd.f32 %v2656, %v2768
        %2770 = vmatmul.f32.gmra.mxu0 %v764
        %v2771 = vpop.f32.mrf.mxu0
        %v2772 = vadd.f32 %v2659, %v2771
        %2773 = vmatmul.f32.gmra.mxu0 %v772
        %v2774 = vpop.f32.mrf.mxu0
        %v2775 = vadd.f32 %v2662, %v2774
        %2776 = vmatmul.f32.gmra.mxu0 %v780
        %v2777 = vpop.f32.mrf.mxu0
        %v2778 = vadd.f32 %v2665, %v2777
        %2779 = vmatmul.f32.gmra.mxu0 %v788
        %v2780 = vpop.f32.mrf.mxu0
        %v2781 = vadd.f32 %v2668, %v2780
        %2782 = vmatmul.f32.gmra.mxu0 %v796
        %v2783 = vpop.f32.mrf.mxu0
        %v2784 = vadd.f32 %v2671, %v2783
        %2785 = vmatmul.f32.gmra.mxu0 %v804
        %v2786 = vpop.f32.mrf.mxu0
        %v2787 = vadd.f32 %v2674, %v2786
        %2788 = vdwg.mxu0
        %2789 = vmatpush.msra.mxu0 %v1189
        %2790 = vmatpush.msra.mxu0 %v1185
        %2791 = vmatpush.msra.mxu0 %v1181
        %2792 = vmatpush.msra.mxu0 %v1177
        %2793 = vmatpush.msra.mxu0 %v1173
        %2794 = vmatpush.msra.mxu0 %v1169
        %2795 = vmatpush.msra.mxu0 %v1165
        %2796 = vmatpush.msra.mxu0 %v1161
        %2797 = vmatpush.msra.mxu0 %v1157
        %2798 = vmatpush.msra.mxu0 %v1153
        %2799 = vmatpush.msra.mxu0 %v1149
        %2800 = vmatpush.msra.mxu0 %v1145
        %2801 = vmatpush.msra.mxu0 %v1141
        %2802 = vmatpush.msra.mxu0 %v1137
        %2803 = vmatpush.msra.mxu0 %v1133
        %2804 = vmatpush.msra.mxu0 %v1129
        %2805 = vmatmul.f32.gmra.mxu0 %v557
        %v2806 = vpop.f32.mrf.mxu0
        %v2807 = vadd.f32 %v2694, %v2806
        %2808 = vmatmul.f32.gmra.mxu0 %v565
        %v2809 = vpop.f32.mrf.mxu0
        %v2810 = vadd.f32 %v2697, %v2809
        %2811 = vmatmul.f32.gmra.mxu0 %v573
        %v2812 = vpop.f32.mrf.mxu0
        %v2813 = vadd.f32 %v2700, %v2812
        %2814 = vmatmul.f32.gmra.mxu0 %v581
        %v2815 = vpop.f32.mrf.mxu0
        %v2816 = vadd.f32 %v2703, %v2815
        %2817 = vmatmul.f32.gmra.mxu0 %v589
        %v2818 = vpop.f32.mrf.mxu0
        %v2819 = vadd.f32 %v2706, %v2818
        %2820 = vmatmul.f32.gmra.mxu0 %v597
        %v2821 = vpop.f32.mrf.mxu0
        %v2822 = vadd.f32 %v2709, %v2821
        %2823 = vmatmul.f32.gmra.mxu0 %v605
        %v2824 = vpop.f32.mrf.mxu0
        %v2825 = vadd.f32 %v2712, %v2824
        %2826 = vmatmul.f32.gmra.mxu0 %v613
        %v2827 = vpop.f32.mrf.mxu0
        %v2828 = vadd.f32 %v2715, %v2827
        %2829 = vmatmul.f32.gmra.mxu0 %v621
        %v2830 = vpop.f32.mrf.mxu0
        %v2831 = vadd.f32 %v2718, %v2830
        %2832 = vmatmul.f32.gmra.mxu0 %v629
        %v2833 = vpop.f32.mrf.mxu0
        %v2834 = vadd.f32 %v2721, %v2833
        %2835 = vmatmul.f32.gmra.mxu0 %v637
        %v2836 = vpop.f32.mrf.mxu0
        %v2837 = vadd.f32 %v2724, %v2836
        %2838 = vmatmul.f32.gmra.mxu0 %v645
        %v2839 = vpop.f32.mrf.mxu0
        %v2840 = vadd.f32 %v2727, %v2839
        %2841 = vmatmul.f32.gmra.mxu0 %v653
        %v2842 = vpop.f32.mrf.mxu0
        %v2843 = vadd.f32 %v2730, %v2842
        %2844 = vmatmul.f32.gmra.mxu0 %v661
        %v2845 = vpop.f32.mrf.mxu0
        %v2846 = vadd.f32 %v2733, %v2845
        %2847 = vmatmul.f32.gmra.mxu0 %v669
        %v2848 = vpop.f32.mrf.mxu0
        %v2849 = vadd.f32 %v2736, %v2848
        %2850 = vmatmul.f32.gmra.mxu0 %v677
        %v2851 = vpop.f32.mrf.mxu0
        %v2852 = vadd.f32 %v2739, %v2851
        %2853 = vmatmul.f32.gmra.mxu0 %v685
        %v2854 = vpop.f32.mrf.mxu0
        %v2855 = vadd.f32 %v2742, %v2854
        %2856 = vmatmul.f32.gmra.mxu0 %v693
        %v2857 = vpop.f32.mrf.mxu0
        %v2858 = vadd.f32 %v2745, %v2857
        %2859 = vmatmul.f32.gmra.mxu0 %v701
        %v2860 = vpop.f32.mrf.mxu0
        %v2861 = vadd.f32 %v2748, %v2860
        %2862 = vmatmul.f32.gmra.mxu0 %v709
        %v2863 = vpop.f32.mrf.mxu0
        %v2864 = vadd.f32 %v2751, %v2863
        %2865 = vmatmul.f32.gmra.mxu0 %v717
        %v2866 = vpop.f32.mrf.mxu0
        %v2867 = vadd.f32 %v2754, %v2866
        %2868 = vmatmul.f32.gmra.mxu0 %v725
        %v2869 = vpop.f32.mrf.mxu0
        %v2870 = vadd.f32 %v2757, %v2869
        %2871 = vmatmul.f32.gmra.mxu0 %v733
        %v2872 = vpop.f32.mrf.mxu0
        %v2873 = vadd.f32 %v2760, %v2872
        %2874 = vmatmul.f32.gmra.mxu0 %v741
        %v2875 = vpop.f32.mrf.mxu0
        %v2876 = vadd.f32 %v2763, %v2875
        %2877 = vmatmul.f32.gmra.mxu0 %v749
        %v2878 = vpop.f32.mrf.mxu0
        %v2879 = vadd.f32 %v2766, %v2878
        %2880 = vmatmul.f32.gmra.mxu0 %v757
        %v2881 = vpop.f32.mrf.mxu0
        %v2882 = vadd.f32 %v2769, %v2881
        %2883 = vmatmul.f32.gmra.mxu0 %v765
        %v2884 = vpop.f32.mrf.mxu0
        %v2885 = vadd.f32 %v2772, %v2884
        %2886 = vmatmul.f32.gmra.mxu0 %v773
        %v2887 = vpop.f32.mrf.mxu0
        %v2888 = vadd.f32 %v2775, %v2887
        %2889 = vmatmul.f32.gmra.mxu0 %v781
        %v2890 = vpop.f32.mrf.mxu0
        %v2891 = vadd.f32 %v2778, %v2890
        %2892 = vmatmul.f32.gmra.mxu0 %v789
        %v2893 = vpop.f32.mrf.mxu0
        %v2894 = vadd.f32 %v2781, %v2893
        %2895 = vmatmul.f32.gmra.mxu0 %v797
        %v2896 = vpop.f32.mrf.mxu0
        %v2897 = vadd.f32 %v2784, %v2896
        %2898 = vmatmul.f32.gmra.mxu0 %v805
        %v2899 = vpop.f32.mrf.mxu0
        %v2900 = vadd.f32 %v2787, %v2899
        %2901 = vdwg.mxu0
        %2902 = vmatpush.msra.mxu0 %v1253
        %2903 = vmatpush.msra.mxu0 %v1249
        %2904 = vmatpush.msra.mxu0 %v1245
        %2905 = vmatpush.msra.mxu0 %v1241
        %2906 = vmatpush.msra.mxu0 %v1237
        %2907 = vmatpush.msra.mxu0 %v1233
        %2908 = vmatpush.msra.mxu0 %v1229
        %2909 = vmatpush.msra.mxu0 %v1225
        %2910 = vmatpush.msra.mxu0 %v1221
        %2911 = vmatpush.msra.mxu0 %v1217
        %2912 = vmatpush.msra.mxu0 %v1213
        %2913 = vmatpush.msra.mxu0 %v1209
        %2914 = vmatpush.msra.mxu0 %v1205
        %2915 = vmatpush.msra.mxu0 %v1201
        %2916 = vmatpush.msra.mxu0 %v1197
        %2917 = vmatpush.msra.mxu0 %v1193
        %2918 = vmatmul.f32.gmra.mxu0 %v558
        %v2919 = vpop.f32.mrf.mxu0
        %v2920 = vadd.f32 %v2807, %v2919
        %2921 = vmatmul.f32.gmra.mxu0 %v566
        %v2922 = vpop.f32.mrf.mxu0
        %v2923 = vadd.f32 %v2810, %v2922
        %2924 = vmatmul.f32.gmra.mxu0 %v574
        %v2925 = vpop.f32.mrf.mxu0
        %v2926 = vadd.f32 %v2813, %v2925
        %2927 = vmatmul.f32.gmra.mxu0 %v582
        %v2928 = vpop.f32.mrf.mxu0
        %v2929 = vadd.f32 %v2816, %v2928
        %2930 = vmatmul.f32.gmra.mxu0 %v590
        %v2931 = vpop.f32.mrf.mxu0
        %v2932 = vadd.f32 %v2819, %v2931
        %2933 = vmatmul.f32.gmra.mxu0 %v598
        %v2934 = vpop.f32.mrf.mxu0
        %v2935 = vadd.f32 %v2822, %v2934
        %2936 = vmatmul.f32.gmra.mxu0 %v606
        %v2937 = vpop.f32.mrf.mxu0
        %v2938 = vadd.f32 %v2825, %v2937
        %2939 = vmatmul.f32.gmra.mxu0 %v614
        %v2940 = vpop.f32.mrf.mxu0
        %v2941 = vadd.f32 %v2828, %v2940
        %2942 = vmatmul.f32.gmra.mxu0 %v622
        %v2943 = vpop.f32.mrf.mxu0
        %v2944 = vadd.f32 %v2831, %v2943
        %2945 = vmatmul.f32.gmra.mxu0 %v630
        %v2946 = vpop.f32.mrf.mxu0
        %v2947 = vadd.f32 %v2834, %v2946
        %2948 = vmatmul.f32.gmra.mxu0 %v638
        %v2949 = vpop.f32.mrf.mxu0
        %v2950 = vadd.f32 %v2837, %v2949
        %2951 = vmatmul.f32.gmra.mxu0 %v646
        %v2952 = vpop.f32.mrf.mxu0
        %v2953 = vadd.f32 %v2840, %v2952
        %2954 = vmatmul.f32.gmra.mxu0 %v654
        %v2955 = vpop.f32.mrf.mxu0
        %v2956 = vadd.f32 %v2843, %v2955
        %2957 = vmatmul.f32.gmra.mxu0 %v662
        %v2958 = vpop.f32.mrf.mxu0
        %v2959 = vadd.f32 %v2846, %v2958
        %2960 = vmatmul.f32.gmra.mxu0 %v670
        %v2961 = vpop.f32.mrf.mxu0
        %v2962 = vadd.f32 %v2849, %v2961
        %2963 = vmatmul.f32.gmra.mxu0 %v678
        %v2964 = vpop.f32.mrf.mxu0
        %v2965 = vadd.f32 %v2852, %v2964
        %2966 = vmatmul.f32.gmra.mxu0 %v686
        %v2967 = vpop.f32.mrf.mxu0
        %v2968 = vadd.f32 %v2855, %v2967
        %2969 = vmatmul.f32.gmra.mxu0 %v694
        %v2970 = vpop.f32.mrf.mxu0
        %v2971 = vadd.f32 %v2858, %v2970
        %2972 = vmatmul.f32.gmra.mxu0 %v702
        %v2973 = vpop.f32.mrf.mxu0
        %v2974 = vadd.f32 %v2861, %v2973
        %2975 = vmatmul.f32.gmra.mxu0 %v710
        %v2976 = vpop.f32.mrf.mxu0
        %v2977 = vadd.f32 %v2864, %v2976
        %2978 = vmatmul.f32.gmra.mxu0 %v718
        %v2979 = vpop.f32.mrf.mxu0
        %v2980 = vadd.f32 %v2867, %v2979
        %2981 = vmatmul.f32.gmra.mxu0 %v726
        %v2982 = vpop.f32.mrf.mxu0
        %v2983 = vadd.f32 %v2870, %v2982
        %2984 = vmatmul.f32.gmra.mxu0 %v734
        %v2985 = vpop.f32.mrf.mxu0
        %v2986 = vadd.f32 %v2873, %v2985
        %2987 = vmatmul.f32.gmra.mxu0 %v742
        %v2988 = vpop.f32.mrf.mxu0
        %v2989 = vadd.f32 %v2876, %v2988
        %2990 = vmatmul.f32.gmra.mxu0 %v750
        %v2991 = vpop.f32.mrf.mxu0
        %v2992 = vadd.f32 %v2879, %v2991
        %2993 = vmatmul.f32.gmra.mxu0 %v758
        %v2994 = vpop.f32.mrf.mxu0
        %v2995 = vadd.f32 %v2882, %v2994
        %2996 = vmatmul.f32.gmra.mxu0 %v766
        %v2997 = vpop.f32.mrf.mxu0
        %v2998 = vadd.f32 %v2885, %v2997
        %2999 = vmatmul.f32.gmra.mxu0 %v774
        %v3000 = vpop.f32.mrf.mxu0
        %v3001 = vadd.f32 %v2888, %v3000
        %3002 = vmatmul.f32.gmra.mxu0 %v782
        %v3003 = vpop.f32.mrf.mxu0
        %v3004 = vadd.f32 %v2891, %v3003
        %3005 = vmatmul.f32.gmra.mxu0 %v790
        %v3006 = vpop.f32.mrf.mxu0
        %v3007 = vadd.f32 %v2894, %v3006
        %3008 = vmatmul.f32.gmra.mxu0 %v798
        %v3009 = vpop.f32.mrf.mxu0
        %v3010 = vadd.f32 %v2897, %v3009
        %3011 = vmatmul.f32.gmra.mxu0 %v806
        %v3012 = vpop.f32.mrf.mxu0
        %v3013 = vadd.f32 %v2900, %v3012
        %3014 = vdwg.mxu0
        %3015 = vmatpush.msra.mxu0 %v1317
        %3016 = vmatpush.msra.mxu0 %v1313
        %3017 = vmatpush.msra.mxu0 %v1309
        %3018 = vmatpush.msra.mxu0 %v1305
        %3019 = vmatpush.msra.mxu0 %v1301
        %3020 = vmatpush.msra.mxu0 %v1297
        %3021 = vmatpush.msra.mxu0 %v1293
        %3022 = vmatpush.msra.mxu0 %v1289
        %3023 = vmatpush.msra.mxu0 %v1285
        %3024 = vmatpush.msra.mxu0 %v1281
        %3025 = vmatpush.msra.mxu0 %v1277
        %3026 = vmatpush.msra.mxu0 %v1273
        %3027 = vmatpush.msra.mxu0 %v1269
        %3028 = vmatpush.msra.mxu0 %v1265
        %3029 = vmatpush.msra.mxu0 %v1261
        %3030 = vmatpush.msra.mxu0 %v1257
        %3031 = vmatmul.f32.gmra.mxu0 %v559
        %v3032 = vpop.f32.mrf.mxu0
        %v3033 = vadd.f32 %v2920, %v3032
        %3034 = vmatmul.f32.gmra.mxu0 %v567
        %v3035 = vpop.f32.mrf.mxu0
        %v3036 = vadd.f32 %v2923, %v3035
        %3037 = vmatmul.f32.gmra.mxu0 %v575
        %v3038 = vpop.f32.mrf.mxu0
        %v3039 = vadd.f32 %v2926, %v3038
        %3040 = vmatmul.f32.gmra.mxu0 %v583
        %v3041 = vpop.f32.mrf.mxu0
        %v3042 = vadd.f32 %v2929, %v3041
        %3043 = vmatmul.f32.gmra.mxu0 %v591
        %v3044 = vpop.f32.mrf.mxu0
        %v3045 = vadd.f32 %v2932, %v3044
        %3046 = vmatmul.f32.gmra.mxu0 %v599
        %v3047 = vpop.f32.mrf.mxu0
        %v3048 = vadd.f32 %v2935, %v3047
        %3049 = vmatmul.f32.gmra.mxu0 %v607
        %v3050 = vpop.f32.mrf.mxu0
        %v3051 = vadd.f32 %v2938, %v3050
        %3052 = vmatmul.f32.gmra.mxu0 %v615
        %v3053 = vpop.f32.mrf.mxu0
        %v3054 = vadd.f32 %v2941, %v3053
        %3055 = vmatmul.f32.gmra.mxu0 %v623
        %v3056 = vpop.f32.mrf.mxu0
        %v3057 = vadd.f32 %v2944, %v3056
        %3058 = vmatmul.f32.gmra.mxu0 %v631
        %v3059 = vpop.f32.mrf.mxu0
        %v3060 = vadd.f32 %v2947, %v3059
        %3061 = vmatmul.f32.gmra.mxu0 %v639
        %v3062 = vpop.f32.mrf.mxu0
        %v3063 = vadd.f32 %v2950, %v3062
        %3064 = vmatmul.f32.gmra.mxu0 %v647
        %v3065 = vpop.f32.mrf.mxu0
        %v3066 = vadd.f32 %v2953, %v3065
        %3067 = vmatmul.f32.gmra.mxu0 %v655
        %v3068 = vpop.f32.mrf.mxu0
        %v3069 = vadd.f32 %v2956, %v3068
        %3070 = vmatmul.f32.gmra.mxu0 %v663
        %v3071 = vpop.f32.mrf.mxu0
        %v3072 = vadd.f32 %v2959, %v3071
        %3073 = vmatmul.f32.gmra.mxu0 %v671
        %v3074 = vpop.f32.mrf.mxu0
        %v3075 = vadd.f32 %v2962, %v3074
        %3076 = vmatmul.f32.gmra.mxu0 %v679
        %v3077 = vpop.f32.mrf.mxu0
        %v3078 = vadd.f32 %v2965, %v3077
        %3079 = vmatmul.f32.gmra.mxu0 %v687
        %v3080 = vpop.f32.mrf.mxu0
        %v3081 = vadd.f32 %v2968, %v3080
        %3082 = vmatmul.f32.gmra.mxu0 %v695
        %v3083 = vpop.f32.mrf.mxu0
        %v3084 = vadd.f32 %v2971, %v3083
        %3085 = vmatmul.f32.gmra.mxu0 %v703
        %v3086 = vpop.f32.mrf.mxu0
        %v3087 = vadd.f32 %v2974, %v3086
        %3088 = vmatmul.f32.gmra.mxu0 %v711
        %v3089 = vpop.f32.mrf.mxu0
        %v3090 = vadd.f32 %v2977, %v3089
        %3091 = vmatmul.f32.gmra.mxu0 %v719
        %v3092 = vpop.f32.mrf.mxu0
        %v3093 = vadd.f32 %v2980, %v3092
        %3094 = vmatmul.f32.gmra.mxu0 %v727
        %v3095 = vpop.f32.mrf.mxu0
        %v3096 = vadd.f32 %v2983, %v3095
        %3097 = vmatmul.f32.gmra.mxu0 %v735
        %v3098 = vpop.f32.mrf.mxu0
        %v3099 = vadd.f32 %v2986, %v3098
        %3100 = vmatmul.f32.gmra.mxu0 %v743
        %v3101 = vpop.f32.mrf.mxu0
        %v3102 = vadd.f32 %v2989, %v3101
        %3103 = vmatmul.f32.gmra.mxu0 %v751
        %v3104 = vpop.f32.mrf.mxu0
        %v3105 = vadd.f32 %v2992, %v3104
        %3106 = vmatmul.f32.gmra.mxu0 %v759
        %v3107 = vpop.f32.mrf.mxu0
        %v3108 = vadd.f32 %v2995, %v3107
        %3109 = vmatmul.f32.gmra.mxu0 %v767
        %v3110 = vpop.f32.mrf.mxu0
        %v3111 = vadd.f32 %v2998, %v3110
        %3112 = vmatmul.f32.gmra.mxu0 %v775
        %v3113 = vpop.f32.mrf.mxu0
        %v3114 = vadd.f32 %v3001, %v3113
        %3115 = vmatmul.f32.gmra.mxu0 %v783
        %v3116 = vpop.f32.mrf.mxu0
        %v3117 = vadd.f32 %v3004, %v3116
        %3118 = vmatmul.f32.gmra.mxu0 %v791
        %v3119 = vpop.f32.mrf.mxu0
        %v3120 = vadd.f32 %v3007, %v3119
        %3121 = vmatmul.f32.gmra.mxu0 %v799
        %v3122 = vpop.f32.mrf.mxu0
        %v3123 = vadd.f32 %v3010, %v3122
        %3124 = vmatmul.f32.gmra.mxu0 %v807
        %v3125 = vpop.f32.mrf.mxu0
        %v3126 = vadd.f32 %v3013, %v3125
        %3127 = vdwg.mxu0
        %3128 = vmatpush.msra.mxu0 %v870
        %3129 = vmatpush.msra.mxu0 %v866
        %3130 = vmatpush.msra.mxu0 %v862
        %3131 = vmatpush.msra.mxu0 %v858
        %3132 = vmatpush.msra.mxu0 %v854
        %3133 = vmatpush.msra.mxu0 %v850
        %3134 = vmatpush.msra.mxu0 %v846
        %3135 = vmatpush.msra.mxu0 %v842
        %3136 = vmatpush.msra.mxu0 %v838
        %3137 = vmatpush.msra.mxu0 %v834
        %3138 = vmatpush.msra.mxu0 %v830
        %3139 = vmatpush.msra.mxu0 %v826
        %3140 = vmatpush.msra.mxu0 %v822
        %3141 = vmatpush.msra.mxu0 %v818
        %3142 = vmatpush.msra.mxu0 %v814
        %3143 = vmatpush.msra.mxu0 %v810
        %3144 = vmatmul.f32.gmra.mxu0 %v552
        %v3145 = vpop.f32.mrf.mxu0
        %v3146 = vadd.f32 0.0, %v3145
        %3147 = vmatmul.f32.gmra.mxu0 %v560
        %v3148 = vpop.f32.mrf.mxu0
        %v3149 = vadd.f32 0.0, %v3148
        %3150 = vmatmul.f32.gmra.mxu0 %v568
        %v3151 = vpop.f32.mrf.mxu0
        %v3152 = vadd.f32 0.0, %v3151
        %3153 = vmatmul.f32.gmra.mxu0 %v576
        %v3154 = vpop.f32.mrf.mxu0
        %v3155 = vadd.f32 0.0, %v3154
        %3156 = vmatmul.f32.gmra.mxu0 %v584
        %v3157 = vpop.f32.mrf.mxu0
        %v3158 = vadd.f32 0.0, %v3157
        %3159 = vmatmul.f32.gmra.mxu0 %v592
        %v3160 = vpop.f32.mrf.mxu0
        %v3161 = vadd.f32 0.0, %v3160
        %3162 = vmatmul.f32.gmra.mxu0 %v600
        %v3163 = vpop.f32.mrf.mxu0
        %v3164 = vadd.f32 0.0, %v3163
        %3165 = vmatmul.f32.gmra.mxu0 %v608
        %v3166 = vpop.f32.mrf.mxu0
        %v3167 = vadd.f32 0.0, %v3166
        %3168 = vmatmul.f32.gmra.mxu0 %v616
        %v3169 = vpop.f32.mrf.mxu0
        %v3170 = vadd.f32 0.0, %v3169
        %3171 = vmatmul.f32.gmra.mxu0 %v624
        %v3172 = vpop.f32.mrf.mxu0
        %v3173 = vadd.f32 0.0, %v3172
        %3174 = vmatmul.f32.gmra.mxu0 %v632
        %v3175 = vpop.f32.mrf.mxu0
        %v3176 = vadd.f32 0.0, %v3175
        %3177 = vmatmul.f32.gmra.mxu0 %v640
        %v3178 = vpop.f32.mrf.mxu0
        %v3179 = vadd.f32 0.0, %v3178
        %3180 = vmatmul.f32.gmra.mxu0 %v648
        %v3181 = vpop.f32.mrf.mxu0
        %v3182 = vadd.f32 0.0, %v3181
        %3183 = vmatmul.f32.gmra.mxu0 %v656
        %v3184 = vpop.f32.mrf.mxu0
        %v3185 = vadd.f32 0.0, %v3184
        %3186 = vmatmul.f32.gmra.mxu0 %v664
        %v3187 = vpop.f32.mrf.mxu0
        %v3188 = vadd.f32 0.0, %v3187
        %3189 = vmatmul.f32.gmra.mxu0 %v672
        %v3190 = vpop.f32.mrf.mxu0
        %v3191 = vadd.f32 0.0, %v3190
        %3192 = vmatmul.f32.gmra.mxu0 %v680
        %v3193 = vpop.f32.mrf.mxu0
        %v3194 = vadd.f32 0.0, %v3193
        %3195 = vmatmul.f32.gmra.mxu0 %v688
        %v3196 = vpop.f32.mrf.mxu0
        %v3197 = vadd.f32 0.0, %v3196
        %3198 = vmatmul.f32.gmra.mxu0 %v696
        %v3199 = vpop.f32.mrf.mxu0
        %v3200 = vadd.f32 0.0, %v3199
        %3201 = vmatmul.f32.gmra.mxu0 %v704
        %v3202 = vpop.f32.mrf.mxu0
        %v3203 = vadd.f32 0.0, %v3202
        %3204 = vmatmul.f32.gmra.mxu0 %v712
        %v3205 = vpop.f32.mrf.mxu0
        %v3206 = vadd.f32 0.0, %v3205
        %3207 = vmatmul.f32.gmra.mxu0 %v720
        %v3208 = vpop.f32.mrf.mxu0
        %v3209 = vadd.f32 0.0, %v3208
        %3210 = vmatmul.f32.gmra.mxu0 %v728
        %v3211 = vpop.f32.mrf.mxu0
        %v3212 = vadd.f32 0.0, %v3211
        %3213 = vmatmul.f32.gmra.mxu0 %v736
        %v3214 = vpop.f32.mrf.mxu0
        %v3215 = vadd.f32 0.0, %v3214
        %3216 = vmatmul.f32.gmra.mxu0 %v744
        %v3217 = vpop.f32.mrf.mxu0
        %v3218 = vadd.f32 0.0, %v3217
        %3219 = vmatmul.f32.gmra.mxu0 %v752
        %v3220 = vpop.f32.mrf.mxu0
        %v3221 = vadd.f32 0.0, %v3220
        %3222 = vmatmul.f32.gmra.mxu0 %v760
        %v3223 = vpop.f32.mrf.mxu0
        %v3224 = vadd.f32 0.0, %v3223
        %3225 = vmatmul.f32.gmra.mxu0 %v768
        %v3226 = vpop.f32.mrf.mxu0
        %v3227 = vadd.f32 0.0, %v3226
        %3228 = vmatmul.f32.gmra.mxu0 %v776
        %v3229 = vpop.f32.mrf.mxu0
        %v3230 = vadd.f32 0.0, %v3229
        %3231 = vmatmul.f32.gmra.mxu0 %v784
        %v3232 = vpop.f32.mrf.mxu0
        %v3233 = vadd.f32 0.0, %v3232
        %3234 = vmatmul.f32.gmra.mxu0 %v792
        %v3235 = vpop.f32.mrf.mxu0
        %v3236 = vadd.f32 0.0, %v3235
        %3237 = vmatmul.f32.gmra.mxu0 %v800
        %v3238 = vpop.f32.mrf.mxu0
        %v3239 = vadd.f32 0.0, %v3238
        %3240 = vdwg.mxu0
        %3241 = vmatpush.msra.mxu0 %v934
        %3242 = vmatpush.msra.mxu0 %v930
        %3243 = vmatpush.msra.mxu0 %v926
        %3244 = vmatpush.msra.mxu0 %v922
        %3245 = vmatpush.msra.mxu0 %v918
        %3246 = vmatpush.msra.mxu0 %v914
        %3247 = vmatpush.msra.mxu0 %v910
        %3248 = vmatpush.msra.mxu0 %v906
        %3249 = vmatpush.msra.mxu0 %v902
        %3250 = vmatpush.msra.mxu0 %v898
        %3251 = vmatpush.msra.mxu0 %v894
        %3252 = vmatpush.msra.mxu0 %v890
        %3253 = vmatpush.msra.mxu0 %v886
        %3254 = vmatpush.msra.mxu0 %v882
        %3255 = vmatpush.msra.mxu0 %v878
        %3256 = vmatpush.msra.mxu0 %v874
        %3257 = vmatmul.f32.gmra.mxu0 %v553
        %v3258 = vpop.f32.mrf.mxu0
        %v3259 = vadd.f32 %v3146, %v3258
        %3260 = vmatmul.f32.gmra.mxu0 %v561
        %v3261 = vpop.f32.mrf.mxu0
        %v3262 = vadd.f32 %v3149, %v3261
        %3263 = vmatmul.f32.gmra.mxu0 %v569
        %v3264 = vpop.f32.mrf.mxu0
        %v3265 = vadd.f32 %v3152, %v3264
        %3266 = vmatmul.f32.gmra.mxu0 %v577
        %v3267 = vpop.f32.mrf.mxu0
        %v3268 = vadd.f32 %v3155, %v3267
        %3269 = vmatmul.f32.gmra.mxu0 %v585
        %v3270 = vpop.f32.mrf.mxu0
        %v3271 = vadd.f32 %v3158, %v3270
        %3272 = vmatmul.f32.gmra.mxu0 %v593
        %v3273 = vpop.f32.mrf.mxu0
        %v3274 = vadd.f32 %v3161, %v3273
        %3275 = vmatmul.f32.gmra.mxu0 %v601
        %v3276 = vpop.f32.mrf.mxu0
        %v3277 = vadd.f32 %v3164, %v3276
        %3278 = vmatmul.f32.gmra.mxu0 %v609
        %v3279 = vpop.f32.mrf.mxu0
        %v3280 = vadd.f32 %v3167, %v3279
        %3281 = vmatmul.f32.gmra.mxu0 %v617
        %v3282 = vpop.f32.mrf.mxu0
        %v3283 = vadd.f32 %v3170, %v3282
        %3284 = vmatmul.f32.gmra.mxu0 %v625
        %v3285 = vpop.f32.mrf.mxu0
        %v3286 = vadd.f32 %v3173, %v3285
        %3287 = vmatmul.f32.gmra.mxu0 %v633
        %v3288 = vpop.f32.mrf.mxu0
        %v3289 = vadd.f32 %v3176, %v3288
        %3290 = vmatmul.f32.gmra.mxu0 %v641
        %v3291 = vpop.f32.mrf.mxu0
        %v3292 = vadd.f32 %v3179, %v3291
        %3293 = vmatmul.f32.gmra.mxu0 %v649
        %v3294 = vpop.f32.mrf.mxu0
        %v3295 = vadd.f32 %v3182, %v3294
        %3296 = vmatmul.f32.gmra.mxu0 %v657
        %v3297 = vpop.f32.mrf.mxu0
        %v3298 = vadd.f32 %v3185, %v3297
        %3299 = vmatmul.f32.gmra.mxu0 %v665
        %v3300 = vpop.f32.mrf.mxu0
        %v3301 = vadd.f32 %v3188, %v3300
        %3302 = vmatmul.f32.gmra.mxu0 %v673
        %v3303 = vpop.f32.mrf.mxu0
        %v3304 = vadd.f32 %v3191, %v3303
        %3305 = vmatmul.f32.gmra.mxu0 %v681
        %v3306 = vpop.f32.mrf.mxu0
        %v3307 = vadd.f32 %v3194, %v3306
        %3308 = vmatmul.f32.gmra.mxu0 %v689
        %v3309 = vpop.f32.mrf.mxu0
        %v3310 = vadd.f32 %v3197, %v3309
        %3311 = vmatmul.f32.gmra.mxu0 %v697
        %v3312 = vpop.f32.mrf.mxu0
        %v3313 = vadd.f32 %v3200, %v3312
        %3314 = vmatmul.f32.gmra.mxu0 %v705
        %v3315 = vpop.f32.mrf.mxu0
        %v3316 = vadd.f32 %v3203, %v3315
        %3317 = vmatmul.f32.gmra.mxu0 %v713
        %v3318 = vpop.f32.mrf.mxu0
        %v3319 = vadd.f32 %v3206, %v3318
        %3320 = vmatmul.f32.gmra.mxu0 %v721
        %v3321 = vpop.f32.mrf.mxu0
        %v3322 = vadd.f32 %v3209, %v3321
        %3323 = vmatmul.f32.gmra.mxu0 %v729
        %v3324 = vpop.f32.mrf.mxu0
        %v3325 = vadd.f32 %v3212, %v3324
        %3326 = vmatmul.f32.gmra.mxu0 %v737
        %v3327 = vpop.f32.mrf.mxu0
        %v3328 = vadd.f32 %v3215, %v3327
        %3329 = vmatmul.f32.gmra.mxu0 %v745
        %v3330 = vpop.f32.mrf.mxu0
        %v3331 = vadd.f32 %v3218, %v3330
        %3332 = vmatmul.f32.gmra.mxu0 %v753
        %v3333 = vpop.f32.mrf.mxu0
        %v3334 = vadd.f32 %v3221, %v3333
        %3335 = vmatmul.f32.gmra.mxu0 %v761
        %v3336 = vpop.f32.mrf.mxu0
        %v3337 = vadd.f32 %v3224, %v3336
        %3338 = vmatmul.f32.gmra.mxu0 %v769
        %v3339 = vpop.f32.mrf.mxu0
        %v3340 = vadd.f32 %v3227, %v3339
        %3341 = vmatmul.f32.gmra.mxu0 %v777
        %v3342 = vpop.f32.mrf.mxu0
        %v3343 = vadd.f32 %v3230, %v3342
        %3344 = vmatmul.f32.gmra.mxu0 %v785
        %v3345 = vpop.f32.mrf.mxu0
        %v3346 = vadd.f32 %v3233, %v3345
        %3347 = vmatmul.f32.gmra.mxu0 %v793
        %v3348 = vpop.f32.mrf.mxu0
        %v3349 = vadd.f32 %v3236, %v3348
        %3350 = vmatmul.f32.gmra.mxu0 %v801
        %v3351 = vpop.f32.mrf.mxu0
        %v3352 = vadd.f32 %v3239, %v3351
        %3353 = vdwg.mxu0
        %3354 = vmatpush.msra.mxu0 %v998
        %3355 = vmatpush.msra.mxu0 %v994
        %3356 = vmatpush.msra.mxu0 %v990
        %3357 = vmatpush.msra.mxu0 %v986
        %3358 = vmatpush.msra.mxu0 %v982
        %3359 = vmatpush.msra.mxu0 %v978
        %3360 = vmatpush.msra.mxu0 %v974
        %3361 = vmatpush.msra.mxu0 %v970
        %3362 = vmatpush.msra.mxu0 %v966
        %3363 = vmatpush.msra.mxu0 %v962
        %3364 = vmatpush.msra.mxu0 %v958
        %3365 = vmatpush.msra.mxu0 %v954
        %3366 = vmatpush.msra.mxu0 %v950
        %3367 = vmatpush.msra.mxu0 %v946
        %3368 = vmatpush.msra.mxu0 %v942
        %3369 = vmatpush.msra.mxu0 %v938
        %3370 = vmatmul.f32.gmra.mxu0 %v554
        %v3371 = vpop.f32.mrf.mxu0
        %v3372 = vadd.f32 %v3259, %v3371
        %3373 = vmatmul.f32.gmra.mxu0 %v562
        %v3374 = vpop.f32.mrf.mxu0
        %v3375 = vadd.f32 %v3262, %v3374
        %3376 = vmatmul.f32.gmra.mxu0 %v570
        %v3377 = vpop.f32.mrf.mxu0
        %v3378 = vadd.f32 %v3265, %v3377
        %3379 = vmatmul.f32.gmra.mxu0 %v578
        %v3380 = vpop.f32.mrf.mxu0
        %v3381 = vadd.f32 %v3268, %v3380
        %3382 = vmatmul.f32.gmra.mxu0 %v586
        %v3383 = vpop.f32.mrf.mxu0
        %v3384 = vadd.f32 %v3271, %v3383
        %3385 = vmatmul.f32.gmra.mxu0 %v594
        %v3386 = vpop.f32.mrf.mxu0
        %v3387 = vadd.f32 %v3274, %v3386
        %3388 = vmatmul.f32.gmra.mxu0 %v602
        %v3389 = vpop.f32.mrf.mxu0
        %v3390 = vadd.f32 %v3277, %v3389
        %3391 = vmatmul.f32.gmra.mxu0 %v610
        %v3392 = vpop.f32.mrf.mxu0
        %v3393 = vadd.f32 %v3280, %v3392
        %3394 = vmatmul.f32.gmra.mxu0 %v618
        %v3395 = vpop.f32.mrf.mxu0
        %v3396 = vadd.f32 %v3283, %v3395
        %3397 = vmatmul.f32.gmra.mxu0 %v626
        %v3398 = vpop.f32.mrf.mxu0
        %v3399 = vadd.f32 %v3286, %v3398
        %3400 = vmatmul.f32.gmra.mxu0 %v634
        %v3401 = vpop.f32.mrf.mxu0
        %v3402 = vadd.f32 %v3289, %v3401
        %3403 = vmatmul.f32.gmra.mxu0 %v642
        %v3404 = vpop.f32.mrf.mxu0
        %v3405 = vadd.f32 %v3292, %v3404
        %3406 = vmatmul.f32.gmra.mxu0 %v650
        %v3407 = vpop.f32.mrf.mxu0
        %v3408 = vadd.f32 %v3295, %v3407
        %3409 = vmatmul.f32.gmra.mxu0 %v658
        %v3410 = vpop.f32.mrf.mxu0
        %v3411 = vadd.f32 %v3298, %v3410
        %3412 = vmatmul.f32.gmra.mxu0 %v666
        %v3413 = vpop.f32.mrf.mxu0
        %v3414 = vadd.f32 %v3301, %v3413
        %3415 = vmatmul.f32.gmra.mxu0 %v674
        %v3416 = vpop.f32.mrf.mxu0
        %v3417 = vadd.f32 %v3304, %v3416
        %3418 = vmatmul.f32.gmra.mxu0 %v682
        %v3419 = vpop.f32.mrf.mxu0
        %v3420 = vadd.f32 %v3307, %v3419
        %3421 = vmatmul.f32.gmra.mxu0 %v690
        %v3422 = vpop.f32.mrf.mxu0
        %v3423 = vadd.f32 %v3310, %v3422
        %3424 = vmatmul.f32.gmra.mxu0 %v698
        %v3425 = vpop.f32.mrf.mxu0
        %v3426 = vadd.f32 %v3313, %v3425
        %3427 = vmatmul.f32.gmra.mxu0 %v706
        %v3428 = vpop.f32.mrf.mxu0
        %v3429 = vadd.f32 %v3316, %v3428
        %3430 = vmatmul.f32.gmra.mxu0 %v714
        %v3431 = vpop.f32.mrf.mxu0
        %v3432 = vadd.f32 %v3319, %v3431
        %3433 = vmatmul.f32.gmra.mxu0 %v722
        %v3434 = vpop.f32.mrf.mxu0
        %v3435 = vadd.f32 %v3322, %v3434
        %3436 = vmatmul.f32.gmra.mxu0 %v730
        %v3437 = vpop.f32.mrf.mxu0
        %v3438 = vadd.f32 %v3325, %v3437
        %3439 = vmatmul.f32.gmra.mxu0 %v738
        %v3440 = vpop.f32.mrf.mxu0
        %v3441 = vadd.f32 %v3328, %v3440
        %3442 = vmatmul.f32.gmra.mxu0 %v746
        %v3443 = vpop.f32.mrf.mxu0
        %v3444 = vadd.f32 %v3331, %v3443
        %3445 = vmatmul.f32.gmra.mxu0 %v754
        %v3446 = vpop.f32.mrf.mxu0
        %v3447 = vadd.f32 %v3334, %v3446
        %3448 = vmatmul.f32.gmra.mxu0 %v762
        %v3449 = vpop.f32.mrf.mxu0
        %v3450 = vadd.f32 %v3337, %v3449
        %3451 = vmatmul.f32.gmra.mxu0 %v770
        %v3452 = vpop.f32.mrf.mxu0
        %v3453 = vadd.f32 %v3340, %v3452
        %3454 = vmatmul.f32.gmra.mxu0 %v778
        %v3455 = vpop.f32.mrf.mxu0
        %v3456 = vadd.f32 %v3343, %v3455
        %3457 = vmatmul.f32.gmra.mxu0 %v786
        %v3458 = vpop.f32.mrf.mxu0
        %v3459 = vadd.f32 %v3346, %v3458
        %3460 = vmatmul.f32.gmra.mxu0 %v794
        %v3461 = vpop.f32.mrf.mxu0
        %v3462 = vadd.f32 %v3349, %v3461
        %3463 = vmatmul.f32.gmra.mxu0 %v802
        %v3464 = vpop.f32.mrf.mxu0
        %v3465 = vadd.f32 %v3352, %v3464
        %3466 = vdwg.mxu0
        %3467 = vmatpush.msra.mxu0 %v1062
        %3468 = vmatpush.msra.mxu0 %v1058
        %3469 = vmatpush.msra.mxu0 %v1054
        %3470 = vmatpush.msra.mxu0 %v1050
        %3471 = vmatpush.msra.mxu0 %v1046
        %3472 = vmatpush.msra.mxu0 %v1042
        %3473 = vmatpush.msra.mxu0 %v1038
        %3474 = vmatpush.msra.mxu0 %v1034
        %3475 = vmatpush.msra.mxu0 %v1030
        %3476 = vmatpush.msra.mxu0 %v1026
        %3477 = vmatpush.msra.mxu0 %v1022
        %3478 = vmatpush.msra.mxu0 %v1018
        %3479 = vmatpush.msra.mxu0 %v1014
        %3480 = vmatpush.msra.mxu0 %v1010
        %3481 = vmatpush.msra.mxu0 %v1006
        %3482 = vmatpush.msra.mxu0 %v1002
        %3483 = vmatmul.f32.gmra.mxu0 %v555
        %v3484 = vpop.f32.mrf.mxu0
        %v3485 = vadd.f32 %v3372, %v3484
        %3486 = vmatmul.f32.gmra.mxu0 %v563
        %v3487 = vpop.f32.mrf.mxu0
        %v3488 = vadd.f32 %v3375, %v3487
        %3489 = vmatmul.f32.gmra.mxu0 %v571
        %v3490 = vpop.f32.mrf.mxu0
        %v3491 = vadd.f32 %v3378, %v3490
        %3492 = vmatmul.f32.gmra.mxu0 %v579
        %v3493 = vpop.f32.mrf.mxu0
        %v3494 = vadd.f32 %v3381, %v3493
        %3495 = vmatmul.f32.gmra.mxu0 %v587
        %v3496 = vpop.f32.mrf.mxu0
        %v3497 = vadd.f32 %v3384, %v3496
        %3498 = vmatmul.f32.gmra.mxu0 %v595
        %v3499 = vpop.f32.mrf.mxu0
        %v3500 = vadd.f32 %v3387, %v3499
        %3501 = vmatmul.f32.gmra.mxu0 %v603
        %v3502 = vpop.f32.mrf.mxu0
        %v3503 = vadd.f32 %v3390, %v3502
        %3504 = vmatmul.f32.gmra.mxu0 %v611
        %v3505 = vpop.f32.mrf.mxu0
        %v3506 = vadd.f32 %v3393, %v3505
        %3507 = vmatmul.f32.gmra.mxu0 %v619
        %v3508 = vpop.f32.mrf.mxu0
        %v3509 = vadd.f32 %v3396, %v3508
        %3510 = vmatmul.f32.gmra.mxu0 %v627
        %v3511 = vpop.f32.mrf.mxu0
        %v3512 = vadd.f32 %v3399, %v3511
        %3513 = vmatmul.f32.gmra.mxu0 %v635
        %v3514 = vpop.f32.mrf.mxu0
        %v3515 = vadd.f32 %v3402, %v3514
        %3516 = vmatmul.f32.gmra.mxu0 %v643
        %v3517 = vpop.f32.mrf.mxu0
        %v3518 = vadd.f32 %v3405, %v3517
        %3519 = vmatmul.f32.gmra.mxu0 %v651
        %v3520 = vpop.f32.mrf.mxu0
        %v3521 = vadd.f32 %v3408, %v3520
        %3522 = vmatmul.f32.gmra.mxu0 %v659
        %v3523 = vpop.f32.mrf.mxu0
        %v3524 = vadd.f32 %v3411, %v3523
        %3525 = vmatmul.f32.gmra.mxu0 %v667
        %v3526 = vpop.f32.mrf.mxu0
        %v3527 = vadd.f32 %v3414, %v3526
        %3528 = vmatmul.f32.gmra.mxu0 %v675
        %v3529 = vpop.f32.mrf.mxu0
        %v3530 = vadd.f32 %v3417, %v3529
        %3531 = vmatmul.f32.gmra.mxu0 %v683
        %v3532 = vpop.f32.mrf.mxu0
        %v3533 = vadd.f32 %v3420, %v3532
        %3534 = vmatmul.f32.gmra.mxu0 %v691
        %v3535 = vpop.f32.mrf.mxu0
        %v3536 = vadd.f32 %v3423, %v3535
        %3537 = vmatmul.f32.gmra.mxu0 %v699
        %v3538 = vpop.f32.mrf.mxu0
        %v3539 = vadd.f32 %v3426, %v3538
        %3540 = vmatmul.f32.gmra.mxu0 %v707
        %v3541 = vpop.f32.mrf.mxu0
        %v3542 = vadd.f32 %v3429, %v3541
        %3543 = vmatmul.f32.gmra.mxu0 %v715
        %v3544 = vpop.f32.mrf.mxu0
        %v3545 = vadd.f32 %v3432, %v3544
        %3546 = vmatmul.f32.gmra.mxu0 %v723
        %v3547 = vpop.f32.mrf.mxu0
        %v3548 = vadd.f32 %v3435, %v3547
        %3549 = vmatmul.f32.gmra.mxu0 %v731
        %v3550 = vpop.f32.mrf.mxu0
        %v3551 = vadd.f32 %v3438, %v3550
        %3552 = vmatmul.f32.gmra.mxu0 %v739
        %v3553 = vpop.f32.mrf.mxu0
        %v3554 = vadd.f32 %v3441, %v3553
        %3555 = vmatmul.f32.gmra.mxu0 %v747
        %v3556 = vpop.f32.mrf.mxu0
        %v3557 = vadd.f32 %v3444, %v3556
        %3558 = vmatmul.f32.gmra.mxu0 %v755
        %v3559 = vpop.f32.mrf.mxu0
        %v3560 = vadd.f32 %v3447, %v3559
        %3561 = vmatmul.f32.gmra.mxu0 %v763
        %v3562 = vpop.f32.mrf.mxu0
        %v3563 = vadd.f32 %v3450, %v3562
        %3564 = vmatmul.f32.gmra.mxu0 %v771
        %v3565 = vpop.f32.mrf.mxu0
        %v3566 = vadd.f32 %v3453, %v3565
        %3567 = vmatmul.f32.gmra.mxu0 %v779
        %v3568 = vpop.f32.mrf.mxu0
        %v3569 = vadd.f32 %v3456, %v3568
        %3570 = vmatmul.f32.gmra.mxu0 %v787
        %v3571 = vpop.f32.mrf.mxu0
        %v3572 = vadd.f32 %v3459, %v3571
        %3573 = vmatmul.f32.gmra.mxu0 %v795
        %v3574 = vpop.f32.mrf.mxu0
        %v3575 = vadd.f32 %v3462, %v3574
        %3576 = vmatmul.f32.gmra.mxu0 %v803
        %v3577 = vpop.f32.mrf.mxu0
        %v3578 = vadd.f32 %v3465, %v3577
        %3579 = vdwg.mxu0
        %3580 = vmatpush.msra.mxu0 %v1126
        %3581 = vmatpush.msra.mxu0 %v1122
        %3582 = vmatpush.msra.mxu0 %v1118
        %3583 = vmatpush.msra.mxu0 %v1114
        %3584 = vmatpush.msra.mxu0 %v1110
        %3585 = vmatpush.msra.mxu0 %v1106
        %3586 = vmatpush.msra.mxu0 %v1102
        %3587 = vmatpush.msra.mxu0 %v1098
        %3588 = vmatpush.msra.mxu0 %v1094
        %3589 = vmatpush.msra.mxu0 %v1090
        %3590 = vmatpush.msra.mxu0 %v1086
        %3591 = vmatpush.msra.mxu0 %v1082
        %3592 = vmatpush.msra.mxu0 %v1078
        %3593 = vmatpush.msra.mxu0 %v1074
        %3594 = vmatpush.msra.mxu0 %v1070
        %3595 = vmatpush.msra.mxu0 %v1066
        %3596 = vmatmul.f32.gmra.mxu0 %v556
        %v3597 = vpop.f32.mrf.mxu0
        %v3598 = vadd.f32 %v3485, %v3597
        %3599 = vmatmul.f32.gmra.mxu0 %v564
        %v3600 = vpop.f32.mrf.mxu0
        %v3601 = vadd.f32 %v3488, %v3600
        %3602 = vmatmul.f32.gmra.mxu0 %v572
        %v3603 = vpop.f32.mrf.mxu0
        %v3604 = vadd.f32 %v3491, %v3603
        %3605 = vmatmul.f32.gmra.mxu0 %v580
        %v3606 = vpop.f32.mrf.mxu0
        %v3607 = vadd.f32 %v3494, %v3606
        %3608 = vmatmul.f32.gmra.mxu0 %v588
        %v3609 = vpop.f32.mrf.mxu0
        %v3610 = vadd.f32 %v3497, %v3609
        %3611 = vmatmul.f32.gmra.mxu0 %v596
        %v3612 = vpop.f32.mrf.mxu0
        %v3613 = vadd.f32 %v3500, %v3612
        %3614 = vmatmul.f32.gmra.mxu0 %v604
        %v3615 = vpop.f32.mrf.mxu0
        %v3616 = vadd.f32 %v3503, %v3615
        %3617 = vmatmul.f32.gmra.mxu0 %v612
        %v3618 = vpop.f32.mrf.mxu0
        %v3619 = vadd.f32 %v3506, %v3618
        %3620 = vmatmul.f32.gmra.mxu0 %v620
        %v3621 = vpop.f32.mrf.mxu0
        %v3622 = vadd.f32 %v3509, %v3621
        %3623 = vmatmul.f32.gmra.mxu0 %v628
        %v3624 = vpop.f32.mrf.mxu0
        %v3625 = vadd.f32 %v3512, %v3624
        %3626 = vmatmul.f32.gmra.mxu0 %v636
        %v3627 = vpop.f32.mrf.mxu0
        %v3628 = vadd.f32 %v3515, %v3627
        %3629 = vmatmul.f32.gmra.mxu0 %v644
        %v3630 = vpop.f32.mrf.mxu0
        %v3631 = vadd.f32 %v3518, %v3630
        %3632 = vmatmul.f32.gmra.mxu0 %v652
        %v3633 = vpop.f32.mrf.mxu0
        %v3634 = vadd.f32 %v3521, %v3633
        %3635 = vmatmul.f32.gmra.mxu0 %v660
        %v3636 = vpop.f32.mrf.mxu0
        %v3637 = vadd.f32 %v3524, %v3636
        %3638 = vmatmul.f32.gmra.mxu0 %v668
        %v3639 = vpop.f32.mrf.mxu0
        %v3640 = vadd.f32 %v3527, %v3639
        %3641 = vmatmul.f32.gmra.mxu0 %v676
        %v3642 = vpop.f32.mrf.mxu0
        %v3643 = vadd.f32 %v3530, %v3642
        %3644 = vmatmul.f32.gmra.mxu0 %v684
        %v3645 = vpop.f32.mrf.mxu0
        %v3646 = vadd.f32 %v3533, %v3645
        %3647 = vmatmul.f32.gmra.mxu0 %v692
        %v3648 = vpop.f32.mrf.mxu0
        %v3649 = vadd.f32 %v3536, %v3648
        %3650 = vmatmul.f32.gmra.mxu0 %v700
        %v3651 = vpop.f32.mrf.mxu0
        %v3652 = vadd.f32 %v3539, %v3651
        %3653 = vmatmul.f32.gmra.mxu0 %v708
        %v3654 = vpop.f32.mrf.mxu0
        %v3655 = vadd.f32 %v3542, %v3654
        %3656 = vmatmul.f32.gmra.mxu0 %v716
        %v3657 = vpop.f32.mrf.mxu0
        %v3658 = vadd.f32 %v3545, %v3657
        %3659 = vmatmul.f32.gmra.mxu0 %v724
        %v3660 = vpop.f32.mrf.mxu0
        %v3661 = vadd.f32 %v3548, %v3660
        %3662 = vmatmul.f32.gmra.mxu0 %v732
        %v3663 = vpop.f32.mrf.mxu0
        %v3664 = vadd.f32 %v3551, %v3663
        %3665 = vmatmul.f32.gmra.mxu0 %v740
        %v3666 = vpop.f32.mrf.mxu0
        %v3667 = vadd.f32 %v3554, %v3666
        %3668 = vmatmul.f32.gmra.mxu0 %v748
        %v3669 = vpop.f32.mrf.mxu0
        %v3670 = vadd.f32 %v3557, %v3669
        %3671 = vmatmul.f32.gmra.mxu0 %v756
        %v3672 = vpop.f32.mrf.mxu0
        %v3673 = vadd.f32 %v3560, %v3672
        %3674 = vmatmul.f32.gmra.mxu0 %v764
        %v3675 = vpop.f32.mrf.mxu0
        %v3676 = vadd.f32 %v3563, %v3675
        %3677 = vmatmul.f32.gmra.mxu0 %v772
        %v3678 = vpop.f32.mrf.mxu0
        %v3679 = vadd.f32 %v3566, %v3678
        %3680 = vmatmul.f32.gmra.mxu0 %v780
        %v3681 = vpop.f32.mrf.mxu0
        %v3682 = vadd.f32 %v3569, %v3681
        %3683 = vmatmul.f32.gmra.mxu0 %v788
        %v3684 = vpop.f32.mrf.mxu0
        %v3685 = vadd.f32 %v3572, %v3684
        %3686 = vmatmul.f32.gmra.mxu0 %v796
        %v3687 = vpop.f32.mrf.mxu0
        %v3688 = vadd.f32 %v3575, %v3687
        %3689 = vmatmul.f32.gmra.mxu0 %v804
        %v3690 = vpop.f32.mrf.mxu0
        %v3691 = vadd.f32 %v3578, %v3690
        %3692 = vdwg.mxu0
        %3693 = vmatpush.msra.mxu0 %v1190
        %3694 = vmatpush.msra.mxu0 %v1186
        %3695 = vmatpush.msra.mxu0 %v1182
        %3696 = vmatpush.msra.mxu0 %v1178
        %3697 = vmatpush.msra.mxu0 %v1174
        %3698 = vmatpush.msra.mxu0 %v1170
        %3699 = vmatpush.msra.mxu0 %v1166
        %3700 = vmatpush.msra.mxu0 %v1162
        %3701 = vmatpush.msra.mxu0 %v1158
        %3702 = vmatpush.msra.mxu0 %v1154
        %3703 = vmatpush.msra.mxu0 %v1150
        %3704 = vmatpush.msra.mxu0 %v1146
        %3705 = vmatpush.msra.mxu0 %v1142
        %3706 = vmatpush.msra.mxu0 %v1138
        %3707 = vmatpush.msra.mxu0 %v1134
        %3708 = vmatpush.msra.mxu0 %v1130
        %3709 = vmatmul.f32.gmra.mxu0 %v557
        %v3710 = vpop.f32.mrf.mxu0
        %v3711 = vadd.f32 %v3598, %v3710
        %3712 = vmatmul.f32.gmra.mxu0 %v565
        %v3713 = vpop.f32.mrf.mxu0
        %v3714 = vadd.f32 %v3601, %v3713
        %3715 = vmatmul.f32.gmra.mxu0 %v573
        %v3716 = vpop.f32.mrf.mxu0
        %v3717 = vadd.f32 %v3604, %v3716
        %3718 = vmatmul.f32.gmra.mxu0 %v581
        %v3719 = vpop.f32.mrf.mxu0
        %v3720 = vadd.f32 %v3607, %v3719
        %3721 = vmatmul.f32.gmra.mxu0 %v589
        %v3722 = vpop.f32.mrf.mxu0
        %v3723 = vadd.f32 %v3610, %v3722
        %3724 = vmatmul.f32.gmra.mxu0 %v597
        %v3725 = vpop.f32.mrf.mxu0
        %v3726 = vadd.f32 %v3613, %v3725
        %3727 = vmatmul.f32.gmra.mxu0 %v605
        %v3728 = vpop.f32.mrf.mxu0
        %v3729 = vadd.f32 %v3616, %v3728
        %3730 = vmatmul.f32.gmra.mxu0 %v613
        %v3731 = vpop.f32.mrf.mxu0
        %v3732 = vadd.f32 %v3619, %v3731
        %3733 = vmatmul.f32.gmra.mxu0 %v621
        %v3734 = vpop.f32.mrf.mxu0
        %v3735 = vadd.f32 %v3622, %v3734
        %3736 = vmatmul.f32.gmra.mxu0 %v629
        %v3737 = vpop.f32.mrf.mxu0
        %v3738 = vadd.f32 %v3625, %v3737
        %3739 = vmatmul.f32.gmra.mxu0 %v637
        %v3740 = vpop.f32.mrf.mxu0
        %v3741 = vadd.f32 %v3628, %v3740
        %3742 = vmatmul.f32.gmra.mxu0 %v645
        %v3743 = vpop.f32.mrf.mxu0
        %v3744 = vadd.f32 %v3631, %v3743
        %3745 = vmatmul.f32.gmra.mxu0 %v653
        %v3746 = vpop.f32.mrf.mxu0
        %v3747 = vadd.f32 %v3634, %v3746
        %3748 = vmatmul.f32.gmra.mxu0 %v661
        %v3749 = vpop.f32.mrf.mxu0
        %v3750 = vadd.f32 %v3637, %v3749
        %3751 = vmatmul.f32.gmra.mxu0 %v669
        %v3752 = vpop.f32.mrf.mxu0
        %v3753 = vadd.f32 %v3640, %v3752
        %3754 = vmatmul.f32.gmra.mxu0 %v677
        %v3755 = vpop.f32.mrf.mxu0
        %v3756 = vadd.f32 %v3643, %v3755
        %3757 = vmatmul.f32.gmra.mxu0 %v685
        %v3758 = vpop.f32.mrf.mxu0
        %v3759 = vadd.f32 %v3646, %v3758
        %3760 = vmatmul.f32.gmra.mxu0 %v693
        %v3761 = vpop.f32.mrf.mxu0
        %v3762 = vadd.f32 %v3649, %v3761
        %3763 = vmatmul.f32.gmra.mxu0 %v701
        %v3764 = vpop.f32.mrf.mxu0
        %v3765 = vadd.f32 %v3652, %v3764
        %3766 = vmatmul.f32.gmra.mxu0 %v709
        %v3767 = vpop.f32.mrf.mxu0
        %v3768 = vadd.f32 %v3655, %v3767
        %3769 = vmatmul.f32.gmra.mxu0 %v717
        %v3770 = vpop.f32.mrf.mxu0
        %v3771 = vadd.f32 %v3658, %v3770
        %3772 = vmatmul.f32.gmra.mxu0 %v725
        %v3773 = vpop.f32.mrf.mxu0
        %v3774 = vadd.f32 %v3661, %v3773
        %3775 = vmatmul.f32.gmra.mxu0 %v733
        %v3776 = vpop.f32.mrf.mxu0
        %v3777 = vadd.f32 %v3664, %v3776
        %3778 = vmatmul.f32.gmra.mxu0 %v741
        %v3779 = vpop.f32.mrf.mxu0
        %v3780 = vadd.f32 %v3667, %v3779
        %3781 = vmatmul.f32.gmra.mxu0 %v749
        %v3782 = vpop.f32.mrf.mxu0
        %v3783 = vadd.f32 %v3670, %v3782
        %3784 = vmatmul.f32.gmra.mxu0 %v757
        %v3785 = vpop.f32.mrf.mxu0
        %v3786 = vadd.f32 %v3673, %v3785
        %3787 = vmatmul.f32.gmra.mxu0 %v765
        %v3788 = vpop.f32.mrf.mxu0
        %v3789 = vadd.f32 %v3676, %v3788
        %3790 = vmatmul.f32.gmra.mxu0 %v773
        %v3791 = vpop.f32.mrf.mxu0
        %v3792 = vadd.f32 %v3679, %v3791
        %3793 = vmatmul.f32.gmra.mxu0 %v781
        %v3794 = vpop.f32.mrf.mxu0
        %v3795 = vadd.f32 %v3682, %v3794
        %3796 = vmatmul.f32.gmra.mxu0 %v789
        %v3797 = vpop.f32.mrf.mxu0
        %v3798 = vadd.f32 %v3685, %v3797
        %3799 = vmatmul.f32.gmra.mxu0 %v797
        %v3800 = vpop.f32.mrf.mxu0
        %v3801 = vadd.f32 %v3688, %v3800
        %3802 = vmatmul.f32.gmra.mxu0 %v805
        %v3803 = vpop.f32.mrf.mxu0
        %v3804 = vadd.f32 %v3691, %v3803
        %3805 = vdwg.mxu0
        %3806 = vmatpush.msra.mxu0 %v1254
        %3807 = vmatpush.msra.mxu0 %v1250
        %3808 = vmatpush.msra.mxu0 %v1246
        %3809 = vmatpush.msra.mxu0 %v1242
        %3810 = vmatpush.msra.mxu0 %v1238
        %3811 = vmatpush.msra.mxu0 %v1234
        %3812 = vmatpush.msra.mxu0 %v1230
        %3813 = vmatpush.msra.mxu0 %v1226
        %3814 = vmatpush.msra.mxu0 %v1222
        %3815 = vmatpush.msra.mxu0 %v1218
        %3816 = vmatpush.msra.mxu0 %v1214
        %3817 = vmatpush.msra.mxu0 %v1210
        %3818 = vmatpush.msra.mxu0 %v1206
        %3819 = vmatpush.msra.mxu0 %v1202
        %3820 = vmatpush.msra.mxu0 %v1198
        %3821 = vmatpush.msra.mxu0 %v1194
        %3822 = vmatmul.f32.gmra.mxu0 %v558
        %v3823 = vpop.f32.mrf.mxu0
        %v3824 = vadd.f32 %v3711, %v3823
        %3825 = vmatmul.f32.gmra.mxu0 %v566
        %v3826 = vpop.f32.mrf.mxu0
        %v3827 = vadd.f32 %v3714, %v3826
        %3828 = vmatmul.f32.gmra.mxu0 %v574
        %v3829 = vpop.f32.mrf.mxu0
        %v3830 = vadd.f32 %v3717, %v3829
        %3831 = vmatmul.f32.gmra.mxu0 %v582
        %v3832 = vpop.f32.mrf.mxu0
        %v3833 = vadd.f32 %v3720, %v3832
        %3834 = vmatmul.f32.gmra.mxu0 %v590
        %v3835 = vpop.f32.mrf.mxu0
        %v3836 = vadd.f32 %v3723, %v3835
        %3837 = vmatmul.f32.gmra.mxu0 %v598
        %v3838 = vpop.f32.mrf.mxu0
        %v3839 = vadd.f32 %v3726, %v3838
        %3840 = vmatmul.f32.gmra.mxu0 %v606
        %v3841 = vpop.f32.mrf.mxu0
        %v3842 = vadd.f32 %v3729, %v3841
        %3843 = vmatmul.f32.gmra.mxu0 %v614
        %v3844 = vpop.f32.mrf.mxu0
        %v3845 = vadd.f32 %v3732, %v3844
        %3846 = vmatmul.f32.gmra.mxu0 %v622
        %v3847 = vpop.f32.mrf.mxu0
        %v3848 = vadd.f32 %v3735, %v3847
        %3849 = vmatmul.f32.gmra.mxu0 %v630
        %v3850 = vpop.f32.mrf.mxu0
        %v3851 = vadd.f32 %v3738, %v3850
        %3852 = vmatmul.f32.gmra.mxu0 %v638
        %v3853 = vpop.f32.mrf.mxu0
        %v3854 = vadd.f32 %v3741, %v3853
        %3855 = vmatmul.f32.gmra.mxu0 %v646
        %v3856 = vpop.f32.mrf.mxu0
        %v3857 = vadd.f32 %v3744, %v3856
        %3858 = vmatmul.f32.gmra.mxu0 %v654
        %v3859 = vpop.f32.mrf.mxu0
        %v3860 = vadd.f32 %v3747, %v3859
        %3861 = vmatmul.f32.gmra.mxu0 %v662
        %v3862 = vpop.f32.mrf.mxu0
        %v3863 = vadd.f32 %v3750, %v3862
        %3864 = vmatmul.f32.gmra.mxu0 %v670
        %v3865 = vpop.f32.mrf.mxu0
        %v3866 = vadd.f32 %v3753, %v3865
        %3867 = vmatmul.f32.gmra.mxu0 %v678
        %v3868 = vpop.f32.mrf.mxu0
        %v3869 = vadd.f32 %v3756, %v3868
        %3870 = vmatmul.f32.gmra.mxu0 %v686
        %v3871 = vpop.f32.mrf.mxu0
        %v3872 = vadd.f32 %v3759, %v3871
        %3873 = vmatmul.f32.gmra.mxu0 %v694
        %v3874 = vpop.f32.mrf.mxu0
        %v3875 = vadd.f32 %v3762, %v3874
        %3876 = vmatmul.f32.gmra.mxu0 %v702
        %v3877 = vpop.f32.mrf.mxu0
        %v3878 = vadd.f32 %v3765, %v3877
        %3879 = vmatmul.f32.gmra.mxu0 %v710
        %v3880 = vpop.f32.mrf.mxu0
        %v3881 = vadd.f32 %v3768, %v3880
        %3882 = vmatmul.f32.gmra.mxu0 %v718
        %v3883 = vpop.f32.mrf.mxu0
        %v3884 = vadd.f32 %v3771, %v3883
        %3885 = vmatmul.f32.gmra.mxu0 %v726
        %v3886 = vpop.f32.mrf.mxu0
        %v3887 = vadd.f32 %v3774, %v3886
        %3888 = vmatmul.f32.gmra.mxu0 %v734
        %v3889 = vpop.f32.mrf.mxu0
        %v3890 = vadd.f32 %v3777, %v3889
        %3891 = vmatmul.f32.gmra.mxu0 %v742
        %v3892 = vpop.f32.mrf.mxu0
        %v3893 = vadd.f32 %v3780, %v3892
        %3894 = vmatmul.f32.gmra.mxu0 %v750
        %v3895 = vpop.f32.mrf.mxu0
        %v3896 = vadd.f32 %v3783, %v3895
        %3897 = vmatmul.f32.gmra.mxu0 %v758
        %v3898 = vpop.f32.mrf.mxu0
        %v3899 = vadd.f32 %v3786, %v3898
        %3900 = vmatmul.f32.gmra.mxu0 %v766
        %v3901 = vpop.f32.mrf.mxu0
        %v3902 = vadd.f32 %v3789, %v3901
        %3903 = vmatmul.f32.gmra.mxu0 %v774
        %v3904 = vpop.f32.mrf.mxu0
        %v3905 = vadd.f32 %v3792, %v3904
        %3906 = vmatmul.f32.gmra.mxu0 %v782
        %v3907 = vpop.f32.mrf.mxu0
        %v3908 = vadd.f32 %v3795, %v3907
        %3909 = vmatmul.f32.gmra.mxu0 %v790
        %v3910 = vpop.f32.mrf.mxu0
        %v3911 = vadd.f32 %v3798, %v3910
        %3912 = vmatmul.f32.gmra.mxu0 %v798
        %v3913 = vpop.f32.mrf.mxu0
        %v3914 = vadd.f32 %v3801, %v3913
        %3915 = vmatmul.f32.gmra.mxu0 %v806
        %v3916 = vpop.f32.mrf.mxu0
        %v3917 = vadd.f32 %v3804, %v3916
        %3918 = vdwg.mxu0
        %3919 = vmatpush.msra.mxu0 %v1318
        %3920 = vmatpush.msra.mxu0 %v1314
        %3921 = vmatpush.msra.mxu0 %v1310
        %3922 = vmatpush.msra.mxu0 %v1306
        %3923 = vmatpush.msra.mxu0 %v1302
        %3924 = vmatpush.msra.mxu0 %v1298
        %3925 = vmatpush.msra.mxu0 %v1294
        %3926 = vmatpush.msra.mxu0 %v1290
        %3927 = vmatpush.msra.mxu0 %v1286
        %3928 = vmatpush.msra.mxu0 %v1282
        %3929 = vmatpush.msra.mxu0 %v1278
        %3930 = vmatpush.msra.mxu0 %v1274
        %3931 = vmatpush.msra.mxu0 %v1270
        %3932 = vmatpush.msra.mxu0 %v1266
        %3933 = vmatpush.msra.mxu0 %v1262
        %3934 = vmatpush.msra.mxu0 %v1258
        %3935 = vmatmul.f32.gmra.mxu0 %v559
        %v3936 = vpop.f32.mrf.mxu0
        %v3937 = vadd.f32 %v3824, %v3936
        %3938 = vmatmul.f32.gmra.mxu0 %v567
        %v3939 = vpop.f32.mrf.mxu0
        %v3940 = vadd.f32 %v3827, %v3939
        %3941 = vmatmul.f32.gmra.mxu0 %v575
        %v3942 = vpop.f32.mrf.mxu0
        %v3943 = vadd.f32 %v3830, %v3942
        %3944 = vmatmul.f32.gmra.mxu0 %v583
        %v3945 = vpop.f32.mrf.mxu0
        %v3946 = vadd.f32 %v3833, %v3945
        %3947 = vmatmul.f32.gmra.mxu0 %v591
        %v3948 = vpop.f32.mrf.mxu0
        %v3949 = vadd.f32 %v3836, %v3948
        %3950 = vmatmul.f32.gmra.mxu0 %v599
        %v3951 = vpop.f32.mrf.mxu0
        %v3952 = vadd.f32 %v3839, %v3951
        %3953 = vmatmul.f32.gmra.mxu0 %v607
        %v3954 = vpop.f32.mrf.mxu0
        %v3955 = vadd.f32 %v3842, %v3954
        %3956 = vmatmul.f32.gmra.mxu0 %v615
        %v3957 = vpop.f32.mrf.mxu0
        %v3958 = vadd.f32 %v3845, %v3957
        %3959 = vmatmul.f32.gmra.mxu0 %v623
        %v3960 = vpop.f32.mrf.mxu0
        %v3961 = vadd.f32 %v3848, %v3960
        %3962 = vmatmul.f32.gmra.mxu0 %v631
        %v3963 = vpop.f32.mrf.mxu0
        %v3964 = vadd.f32 %v3851, %v3963
        %3965 = vmatmul.f32.gmra.mxu0 %v639
        %v3966 = vpop.f32.mrf.mxu0
        %v3967 = vadd.f32 %v3854, %v3966
        %3968 = vmatmul.f32.gmra.mxu0 %v647
        %v3969 = vpop.f32.mrf.mxu0
        %v3970 = vadd.f32 %v3857, %v3969
        %3971 = vmatmul.f32.gmra.mxu0 %v655
        %v3972 = vpop.f32.mrf.mxu0
        %v3973 = vadd.f32 %v3860, %v3972
        %3974 = vmatmul.f32.gmra.mxu0 %v663
        %v3975 = vpop.f32.mrf.mxu0
        %v3976 = vadd.f32 %v3863, %v3975
        %3977 = vmatmul.f32.gmra.mxu0 %v671
        %v3978 = vpop.f32.mrf.mxu0
        %v3979 = vadd.f32 %v3866, %v3978
        %3980 = vmatmul.f32.gmra.mxu0 %v679
        %v3981 = vpop.f32.mrf.mxu0
        %v3982 = vadd.f32 %v3869, %v3981
        %3983 = vmatmul.f32.gmra.mxu0 %v687
        %v3984 = vpop.f32.mrf.mxu0
        %v3985 = vadd.f32 %v3872, %v3984
        %3986 = vmatmul.f32.gmra.mxu0 %v695
        %v3987 = vpop.f32.mrf.mxu0
        %v3988 = vadd.f32 %v3875, %v3987
        %3989 = vmatmul.f32.gmra.mxu0 %v703
        %v3990 = vpop.f32.mrf.mxu0
        %v3991 = vadd.f32 %v3878, %v3990
        %3992 = vmatmul.f32.gmra.mxu0 %v711
        %v3993 = vpop.f32.mrf.mxu0
        %v3994 = vadd.f32 %v3881, %v3993
        %3995 = vmatmul.f32.gmra.mxu0 %v719
        %v3996 = vpop.f32.mrf.mxu0
        %v3997 = vadd.f32 %v3884, %v3996
        %3998 = vmatmul.f32.gmra.mxu0 %v727
        %v3999 = vpop.f32.mrf.mxu0
        %v4000 = vadd.f32 %v3887, %v3999
        %4001 = vmatmul.f32.gmra.mxu0 %v735
        %v4002 = vpop.f32.mrf.mxu0
        %v4003 = vadd.f32 %v3890, %v4002
        %4004 = vmatmul.f32.gmra.mxu0 %v743
        %v4005 = vpop.f32.mrf.mxu0
        %v4006 = vadd.f32 %v3893, %v4005
        %4007 = vmatmul.f32.gmra.mxu0 %v751
        %v4008 = vpop.f32.mrf.mxu0
        %v4009 = vadd.f32 %v3896, %v4008
        %4010 = vmatmul.f32.gmra.mxu0 %v759
        %v4011 = vpop.f32.mrf.mxu0
        %v4012 = vadd.f32 %v3899, %v4011
        %4013 = vmatmul.f32.gmra.mxu0 %v767
        %v4014 = vpop.f32.mrf.mxu0
        %v4015 = vadd.f32 %v3902, %v4014
        %4016 = vmatmul.f32.gmra.mxu0 %v775
        %v4017 = vpop.f32.mrf.mxu0
        %v4018 = vadd.f32 %v3905, %v4017
        %4019 = vmatmul.f32.gmra.mxu0 %v783
        %v4020 = vpop.f32.mrf.mxu0
        %v4021 = vadd.f32 %v3908, %v4020
        %4022 = vmatmul.f32.gmra.mxu0 %v791
        %v4023 = vpop.f32.mrf.mxu0
        %v4024 = vadd.f32 %v3911, %v4023
        %4025 = vmatmul.f32.gmra.mxu0 %v799
        %v4026 = vpop.f32.mrf.mxu0
        %v4027 = vadd.f32 %v3914, %v4026
        %4028 = vmatmul.f32.gmra.mxu0 %v807
        %v4029 = vpop.f32.mrf.mxu0
        %v4030 = vadd.f32 %v3917, %v4029
        %4031 = vdwg.mxu0
        %4032 = vmatpush.msra.mxu0 %v871
        %4033 = vmatpush.msra.mxu0 %v867
        %4034 = vmatpush.msra.mxu0 %v863
        %4035 = vmatpush.msra.mxu0 %v859
        %4036 = vmatpush.msra.mxu0 %v855
        %4037 = vmatpush.msra.mxu0 %v851
        %4038 = vmatpush.msra.mxu0 %v847
        %4039 = vmatpush.msra.mxu0 %v843
        %4040 = vmatpush.msra.mxu0 %v839
        %4041 = vmatpush.msra.mxu0 %v835
        %4042 = vmatpush.msra.mxu0 %v831
        %4043 = vmatpush.msra.mxu0 %v827
        %4044 = vmatpush.msra.mxu0 %v823
        %4045 = vmatpush.msra.mxu0 %v819
        %4046 = vmatpush.msra.mxu0 %v815
        %4047 = vmatpush.msra.mxu0 %v811
        %4048 = vmatmul.f32.gmra.mxu0 %v552
        %v4049 = vpop.f32.mrf.mxu0
        %v4050 = vadd.f32 0.0, %v4049
        %4051 = vmatmul.f32.gmra.mxu0 %v560
        %v4052 = vpop.f32.mrf.mxu0
        %v4053 = vadd.f32 0.0, %v4052
        %4054 = vmatmul.f32.gmra.mxu0 %v568
        %v4055 = vpop.f32.mrf.mxu0
        %v4056 = vadd.f32 0.0, %v4055
        %4057 = vmatmul.f32.gmra.mxu0 %v576
        %v4058 = vpop.f32.mrf.mxu0
        %v4059 = vadd.f32 0.0, %v4058
        %4060 = vmatmul.f32.gmra.mxu0 %v584
        %v4061 = vpop.f32.mrf.mxu0
        %v4062 = vadd.f32 0.0, %v4061
        %4063 = vmatmul.f32.gmra.mxu0 %v592
        %v4064 = vpop.f32.mrf.mxu0
        %v4065 = vadd.f32 0.0, %v4064
        %4066 = vmatmul.f32.gmra.mxu0 %v600
        %v4067 = vpop.f32.mrf.mxu0
        %v4068 = vadd.f32 0.0, %v4067
        %4069 = vmatmul.f32.gmra.mxu0 %v608
        %v4070 = vpop.f32.mrf.mxu0
        %v4071 = vadd.f32 0.0, %v4070
        %4072 = vmatmul.f32.gmra.mxu0 %v616
        %v4073 = vpop.f32.mrf.mxu0
        %v4074 = vadd.f32 0.0, %v4073
        %4075 = vmatmul.f32.gmra.mxu0 %v624
        %v4076 = vpop.f32.mrf.mxu0
        %v4077 = vadd.f32 0.0, %v4076
        %4078 = vmatmul.f32.gmra.mxu0 %v632
        %v4079 = vpop.f32.mrf.mxu0
        %v4080 = vadd.f32 0.0, %v4079
        %4081 = vmatmul.f32.gmra.mxu0 %v640
        %v4082 = vpop.f32.mrf.mxu0
        %v4083 = vadd.f32 0.0, %v4082
        %4084 = vmatmul.f32.gmra.mxu0 %v648
        %v4085 = vpop.f32.mrf.mxu0
        %v4086 = vadd.f32 0.0, %v4085
        %4087 = vmatmul.f32.gmra.mxu0 %v656
        %v4088 = vpop.f32.mrf.mxu0
        %v4089 = vadd.f32 0.0, %v4088
        %4090 = vmatmul.f32.gmra.mxu0 %v664
        %v4091 = vpop.f32.mrf.mxu0
        %v4092 = vadd.f32 0.0, %v4091
        %4093 = vmatmul.f32.gmra.mxu0 %v672
        %v4094 = vpop.f32.mrf.mxu0
        %v4095 = vadd.f32 0.0, %v4094
        %4096 = vmatmul.f32.gmra.mxu0 %v680
        %v4097 = vpop.f32.mrf.mxu0
        %v4098 = vadd.f32 0.0, %v4097
        %4099 = vmatmul.f32.gmra.mxu0 %v688
        %v4100 = vpop.f32.mrf.mxu0
        %v4101 = vadd.f32 0.0, %v4100
        %4102 = vmatmul.f32.gmra.mxu0 %v696
        %v4103 = vpop.f32.mrf.mxu0
        %v4104 = vadd.f32 0.0, %v4103
        %4105 = vmatmul.f32.gmra.mxu0 %v704
        %v4106 = vpop.f32.mrf.mxu0
        %v4107 = vadd.f32 0.0, %v4106
        %4108 = vmatmul.f32.gmra.mxu0 %v712
        %v4109 = vpop.f32.mrf.mxu0
        %v4110 = vadd.f32 0.0, %v4109
        %4111 = vmatmul.f32.gmra.mxu0 %v720
        %v4112 = vpop.f32.mrf.mxu0
        %v4113 = vadd.f32 0.0, %v4112
        %4114 = vmatmul.f32.gmra.mxu0 %v728
        %v4115 = vpop.f32.mrf.mxu0
        %v4116 = vadd.f32 0.0, %v4115
        %4117 = vmatmul.f32.gmra.mxu0 %v736
        %v4118 = vpop.f32.mrf.mxu0
        %v4119 = vadd.f32 0.0, %v4118
        %4120 = vmatmul.f32.gmra.mxu0 %v744
        %v4121 = vpop.f32.mrf.mxu0
        %v4122 = vadd.f32 0.0, %v4121
        %4123 = vmatmul.f32.gmra.mxu0 %v752
        %v4124 = vpop.f32.mrf.mxu0
        %v4125 = vadd.f32 0.0, %v4124
        %4126 = vmatmul.f32.gmra.mxu0 %v760
        %v4127 = vpop.f32.mrf.mxu0
        %v4128 = vadd.f32 0.0, %v4127
        %4129 = vmatmul.f32.gmra.mxu0 %v768
        %v4130 = vpop.f32.mrf.mxu0
        %v4131 = vadd.f32 0.0, %v4130
        %4132 = vmatmul.f32.gmra.mxu0 %v776
        %v4133 = vpop.f32.mrf.mxu0
        %v4134 = vadd.f32 0.0, %v4133
        %4135 = vmatmul.f32.gmra.mxu0 %v784
        %v4136 = vpop.f32.mrf.mxu0
        %v4137 = vadd.f32 0.0, %v4136
        %4138 = vmatmul.f32.gmra.mxu0 %v792
        %v4139 = vpop.f32.mrf.mxu0
        %v4140 = vadd.f32 0.0, %v4139
        %4141 = vmatmul.f32.gmra.mxu0 %v800
        %v4142 = vpop.f32.mrf.mxu0
        %v4143 = vadd.f32 0.0, %v4142
        %4144 = vdwg.mxu0
        %4145 = vmatpush.msra.mxu0 %v935
        %4146 = vmatpush.msra.mxu0 %v931
        %4147 = vmatpush.msra.mxu0 %v927
        %4148 = vmatpush.msra.mxu0 %v923
        %4149 = vmatpush.msra.mxu0 %v919
        %4150 = vmatpush.msra.mxu0 %v915
        %4151 = vmatpush.msra.mxu0 %v911
        %4152 = vmatpush.msra.mxu0 %v907
        %4153 = vmatpush.msra.mxu0 %v903
        %4154 = vmatpush.msra.mxu0 %v899
        %4155 = vmatpush.msra.mxu0 %v895
        %4156 = vmatpush.msra.mxu0 %v891
        %4157 = vmatpush.msra.mxu0 %v887
        %4158 = vmatpush.msra.mxu0 %v883
        %4159 = vmatpush.msra.mxu0 %v879
        %4160 = vmatpush.msra.mxu0 %v875
        %4161 = vmatmul.f32.gmra.mxu0 %v553
        %v4162 = vpop.f32.mrf.mxu0
        %v4163 = vadd.f32 %v4050, %v4162
        %4164 = vmatmul.f32.gmra.mxu0 %v561
        %v4165 = vpop.f32.mrf.mxu0
        %v4166 = vadd.f32 %v4053, %v4165
        %4167 = vmatmul.f32.gmra.mxu0 %v569
        %v4168 = vpop.f32.mrf.mxu0
        %v4169 = vadd.f32 %v4056, %v4168
        %4170 = vmatmul.f32.gmra.mxu0 %v577
        %v4171 = vpop.f32.mrf.mxu0
        %v4172 = vadd.f32 %v4059, %v4171
        %4173 = vmatmul.f32.gmra.mxu0 %v585
        %v4174 = vpop.f32.mrf.mxu0
        %v4175 = vadd.f32 %v4062, %v4174
        %4176 = vmatmul.f32.gmra.mxu0 %v593
        %v4177 = vpop.f32.mrf.mxu0
        %v4178 = vadd.f32 %v4065, %v4177
        %4179 = vmatmul.f32.gmra.mxu0 %v601
        %v4180 = vpop.f32.mrf.mxu0
        %v4181 = vadd.f32 %v4068, %v4180
        %4182 = vmatmul.f32.gmra.mxu0 %v609
        %v4183 = vpop.f32.mrf.mxu0
        %v4184 = vadd.f32 %v4071, %v4183
        %4185 = vmatmul.f32.gmra.mxu0 %v617
        %v4186 = vpop.f32.mrf.mxu0
        %v4187 = vadd.f32 %v4074, %v4186
        %4188 = vmatmul.f32.gmra.mxu0 %v625
        %v4189 = vpop.f32.mrf.mxu0
        %v4190 = vadd.f32 %v4077, %v4189
        %4191 = vmatmul.f32.gmra.mxu0 %v633
        %v4192 = vpop.f32.mrf.mxu0
        %v4193 = vadd.f32 %v4080, %v4192
        %4194 = vmatmul.f32.gmra.mxu0 %v641
        %v4195 = vpop.f32.mrf.mxu0
        %v4196 = vadd.f32 %v4083, %v4195
        %4197 = vmatmul.f32.gmra.mxu0 %v649
        %v4198 = vpop.f32.mrf.mxu0
        %v4199 = vadd.f32 %v4086, %v4198
        %4200 = vmatmul.f32.gmra.mxu0 %v657
        %v4201 = vpop.f32.mrf.mxu0
        %v4202 = vadd.f32 %v4089, %v4201
        %4203 = vmatmul.f32.gmra.mxu0 %v665
        %v4204 = vpop.f32.mrf.mxu0
        %v4205 = vadd.f32 %v4092, %v4204
        %4206 = vmatmul.f32.gmra.mxu0 %v673
        %v4207 = vpop.f32.mrf.mxu0
        %v4208 = vadd.f32 %v4095, %v4207
        %4209 = vmatmul.f32.gmra.mxu0 %v681
        %v4210 = vpop.f32.mrf.mxu0
        %v4211 = vadd.f32 %v4098, %v4210
        %4212 = vmatmul.f32.gmra.mxu0 %v689
        %v4213 = vpop.f32.mrf.mxu0
        %v4214 = vadd.f32 %v4101, %v4213
        %4215 = vmatmul.f32.gmra.mxu0 %v697
        %v4216 = vpop.f32.mrf.mxu0
        %v4217 = vadd.f32 %v4104, %v4216
        %4218 = vmatmul.f32.gmra.mxu0 %v705
        %v4219 = vpop.f32.mrf.mxu0
        %v4220 = vadd.f32 %v4107, %v4219
        %4221 = vmatmul.f32.gmra.mxu0 %v713
        %v4222 = vpop.f32.mrf.mxu0
        %v4223 = vadd.f32 %v4110, %v4222
        %4224 = vmatmul.f32.gmra.mxu0 %v721
        %v4225 = vpop.f32.mrf.mxu0
        %v4226 = vadd.f32 %v4113, %v4225
        %4227 = vmatmul.f32.gmra.mxu0 %v729
        %v4228 = vpop.f32.mrf.mxu0
        %v4229 = vadd.f32 %v4116, %v4228
        %4230 = vmatmul.f32.gmra.mxu0 %v737
        %v4231 = vpop.f32.mrf.mxu0
        %v4232 = vadd.f32 %v4119, %v4231
        %4233 = vmatmul.f32.gmra.mxu0 %v745
        %v4234 = vpop.f32.mrf.mxu0
        %v4235 = vadd.f32 %v4122, %v4234
        %4236 = vmatmul.f32.gmra.mxu0 %v753
        %v4237 = vpop.f32.mrf.mxu0
        %v4238 = vadd.f32 %v4125, %v4237
        %4239 = vmatmul.f32.gmra.mxu0 %v761
        %v4240 = vpop.f32.mrf.mxu0
        %v4241 = vadd.f32 %v4128, %v4240
        %4242 = vmatmul.f32.gmra.mxu0 %v769
        %v4243 = vpop.f32.mrf.mxu0
        %v4244 = vadd.f32 %v4131, %v4243
        %4245 = vmatmul.f32.gmra.mxu0 %v777
        %v4246 = vpop.f32.mrf.mxu0
        %v4247 = vadd.f32 %v4134, %v4246
        %4248 = vmatmul.f32.gmra.mxu0 %v785
        %v4249 = vpop.f32.mrf.mxu0
        %v4250 = vadd.f32 %v4137, %v4249
        %4251 = vmatmul.f32.gmra.mxu0 %v793
        %v4252 = vpop.f32.mrf.mxu0
        %v4253 = vadd.f32 %v4140, %v4252
        %4254 = vmatmul.f32.gmra.mxu0 %v801
        %v4255 = vpop.f32.mrf.mxu0
        %v4256 = vadd.f32 %v4143, %v4255
        %4257 = vdwg.mxu0
        %4258 = vmatpush.msra.mxu0 %v999
        %4259 = vmatpush.msra.mxu0 %v995
        %4260 = vmatpush.msra.mxu0 %v991
        %4261 = vmatpush.msra.mxu0 %v987
        %4262 = vmatpush.msra.mxu0 %v983
        %4263 = vmatpush.msra.mxu0 %v979
        %4264 = vmatpush.msra.mxu0 %v975
        %4265 = vmatpush.msra.mxu0 %v971
        %4266 = vmatpush.msra.mxu0 %v967
        %4267 = vmatpush.msra.mxu0 %v963
        %4268 = vmatpush.msra.mxu0 %v959
        %4269 = vmatpush.msra.mxu0 %v955
        %4270 = vmatpush.msra.mxu0 %v951
        %4271 = vmatpush.msra.mxu0 %v947
        %4272 = vmatpush.msra.mxu0 %v943
        %4273 = vmatpush.msra.mxu0 %v939
        %4274 = vmatmul.f32.gmra.mxu0 %v554
        %v4275 = vpop.f32.mrf.mxu0
        %v4276 = vadd.f32 %v4163, %v4275
        %4277 = vmatmul.f32.gmra.mxu0 %v562
        %v4278 = vpop.f32.mrf.mxu0
        %v4279 = vadd.f32 %v4166, %v4278
        %4280 = vmatmul.f32.gmra.mxu0 %v570
        %v4281 = vpop.f32.mrf.mxu0
        %v4282 = vadd.f32 %v4169, %v4281
        %4283 = vmatmul.f32.gmra.mxu0 %v578
        %v4284 = vpop.f32.mrf.mxu0
        %v4285 = vadd.f32 %v4172, %v4284
        %4286 = vmatmul.f32.gmra.mxu0 %v586
        %v4287 = vpop.f32.mrf.mxu0
        %v4288 = vadd.f32 %v4175, %v4287
        %4289 = vmatmul.f32.gmra.mxu0 %v594
        %v4290 = vpop.f32.mrf.mxu0
        %v4291 = vadd.f32 %v4178, %v4290
        %4292 = vmatmul.f32.gmra.mxu0 %v602
        %v4293 = vpop.f32.mrf.mxu0
        %v4294 = vadd.f32 %v4181, %v4293
        %4295 = vmatmul.f32.gmra.mxu0 %v610
        %v4296 = vpop.f32.mrf.mxu0
        %v4297 = vadd.f32 %v4184, %v4296
        %4298 = vmatmul.f32.gmra.mxu0 %v618
        %v4299 = vpop.f32.mrf.mxu0
        %v4300 = vadd.f32 %v4187, %v4299
        %4301 = vmatmul.f32.gmra.mxu0 %v626
        %v4302 = vpop.f32.mrf.mxu0
        %v4303 = vadd.f32 %v4190, %v4302
        %4304 = vmatmul.f32.gmra.mxu0 %v634
        %v4305 = vpop.f32.mrf.mxu0
        %v4306 = vadd.f32 %v4193, %v4305
        %4307 = vmatmul.f32.gmra.mxu0 %v642
        %v4308 = vpop.f32.mrf.mxu0
        %v4309 = vadd.f32 %v4196, %v4308
        %4310 = vmatmul.f32.gmra.mxu0 %v650
        %v4311 = vpop.f32.mrf.mxu0
        %v4312 = vadd.f32 %v4199, %v4311
        %4313 = vmatmul.f32.gmra.mxu0 %v658
        %v4314 = vpop.f32.mrf.mxu0
        %v4315 = vadd.f32 %v4202, %v4314
        %4316 = vmatmul.f32.gmra.mxu0 %v666
        %v4317 = vpop.f32.mrf.mxu0
        %v4318 = vadd.f32 %v4205, %v4317
        %4319 = vmatmul.f32.gmra.mxu0 %v674
        %v4320 = vpop.f32.mrf.mxu0
        %v4321 = vadd.f32 %v4208, %v4320
        %4322 = vmatmul.f32.gmra.mxu0 %v682
        %v4323 = vpop.f32.mrf.mxu0
        %v4324 = vadd.f32 %v4211, %v4323
        %4325 = vmatmul.f32.gmra.mxu0 %v690
        %v4326 = vpop.f32.mrf.mxu0
        %v4327 = vadd.f32 %v4214, %v4326
        %4328 = vmatmul.f32.gmra.mxu0 %v698
        %v4329 = vpop.f32.mrf.mxu0
        %v4330 = vadd.f32 %v4217, %v4329
        %4331 = vmatmul.f32.gmra.mxu0 %v706
        %v4332 = vpop.f32.mrf.mxu0
        %v4333 = vadd.f32 %v4220, %v4332
        %4334 = vmatmul.f32.gmra.mxu0 %v714
        %v4335 = vpop.f32.mrf.mxu0
        %v4336 = vadd.f32 %v4223, %v4335
        %4337 = vmatmul.f32.gmra.mxu0 %v722
        %v4338 = vpop.f32.mrf.mxu0
        %v4339 = vadd.f32 %v4226, %v4338
        %4340 = vmatmul.f32.gmra.mxu0 %v730
        %v4341 = vpop.f32.mrf.mxu0
        %v4342 = vadd.f32 %v4229, %v4341
        %4343 = vmatmul.f32.gmra.mxu0 %v738
        %v4344 = vpop.f32.mrf.mxu0
        %v4345 = vadd.f32 %v4232, %v4344
        %4346 = vmatmul.f32.gmra.mxu0 %v746
        %v4347 = vpop.f32.mrf.mxu0
        %v4348 = vadd.f32 %v4235, %v4347
        %4349 = vmatmul.f32.gmra.mxu0 %v754
        %v4350 = vpop.f32.mrf.mxu0
        %v4351 = vadd.f32 %v4238, %v4350
        %4352 = vmatmul.f32.gmra.mxu0 %v762
        %v4353 = vpop.f32.mrf.mxu0
        %v4354 = vadd.f32 %v4241, %v4353
        %4355 = vmatmul.f32.gmra.mxu0 %v770
        %v4356 = vpop.f32.mrf.mxu0
        %v4357 = vadd.f32 %v4244, %v4356
        %4358 = vmatmul.f32.gmra.mxu0 %v778
        %v4359 = vpop.f32.mrf.mxu0
        %v4360 = vadd.f32 %v4247, %v4359
        %4361 = vmatmul.f32.gmra.mxu0 %v786
        %v4362 = vpop.f32.mrf.mxu0
        %v4363 = vadd.f32 %v4250, %v4362
        %4364 = vmatmul.f32.gmra.mxu0 %v794
        %v4365 = vpop.f32.mrf.mxu0
        %v4366 = vadd.f32 %v4253, %v4365
        %4367 = vmatmul.f32.gmra.mxu0 %v802
        %v4368 = vpop.f32.mrf.mxu0
        %v4369 = vadd.f32 %v4256, %v4368
        %4370 = vdwg.mxu0
        %4371 = vmatpush.msra.mxu0 %v1063
        %4372 = vmatpush.msra.mxu0 %v1059
        %4373 = vmatpush.msra.mxu0 %v1055
        %4374 = vmatpush.msra.mxu0 %v1051
        %4375 = vmatpush.msra.mxu0 %v1047
        %4376 = vmatpush.msra.mxu0 %v1043
        %4377 = vmatpush.msra.mxu0 %v1039
        %4378 = vmatpush.msra.mxu0 %v1035
        %4379 = vmatpush.msra.mxu0 %v1031
        %4380 = vmatpush.msra.mxu0 %v1027
        %4381 = vmatpush.msra.mxu0 %v1023
        %4382 = vmatpush.msra.mxu0 %v1019
        %4383 = vmatpush.msra.mxu0 %v1015
        %4384 = vmatpush.msra.mxu0 %v1011
        %4385 = vmatpush.msra.mxu0 %v1007
        %4386 = vmatpush.msra.mxu0 %v1003
        %4387 = vmatmul.f32.gmra.mxu0 %v555
        %v4388 = vpop.f32.mrf.mxu0
        %v4389 = vadd.f32 %v4276, %v4388
        %4390 = vmatmul.f32.gmra.mxu0 %v563
        %v4391 = vpop.f32.mrf.mxu0
        %v4392 = vadd.f32 %v4279, %v4391
        %4393 = vmatmul.f32.gmra.mxu0 %v571
        %v4394 = vpop.f32.mrf.mxu0
        %v4395 = vadd.f32 %v4282, %v4394
        %4396 = vmatmul.f32.gmra.mxu0 %v579
        %v4397 = vpop.f32.mrf.mxu0
        %v4398 = vadd.f32 %v4285, %v4397
        %4399 = vmatmul.f32.gmra.mxu0 %v587
        %v4400 = vpop.f32.mrf.mxu0
        %v4401 = vadd.f32 %v4288, %v4400
        %4402 = vmatmul.f32.gmra.mxu0 %v595
        %v4403 = vpop.f32.mrf.mxu0
        %v4404 = vadd.f32 %v4291, %v4403
        %4405 = vmatmul.f32.gmra.mxu0 %v603
        %v4406 = vpop.f32.mrf.mxu0
        %v4407 = vadd.f32 %v4294, %v4406
        %4408 = vmatmul.f32.gmra.mxu0 %v611
        %v4409 = vpop.f32.mrf.mxu0
        %v4410 = vadd.f32 %v4297, %v4409
        %4411 = vmatmul.f32.gmra.mxu0 %v619
        %v4412 = vpop.f32.mrf.mxu0
        %v4413 = vadd.f32 %v4300, %v4412
        %4414 = vmatmul.f32.gmra.mxu0 %v627
        %v4415 = vpop.f32.mrf.mxu0
        %v4416 = vadd.f32 %v4303, %v4415
        %4417 = vmatmul.f32.gmra.mxu0 %v635
        %v4418 = vpop.f32.mrf.mxu0
        %v4419 = vadd.f32 %v4306, %v4418
        %4420 = vmatmul.f32.gmra.mxu0 %v643
        %v4421 = vpop.f32.mrf.mxu0
        %v4422 = vadd.f32 %v4309, %v4421
        %4423 = vmatmul.f32.gmra.mxu0 %v651
        %v4424 = vpop.f32.mrf.mxu0
        %v4425 = vadd.f32 %v4312, %v4424
        %4426 = vmatmul.f32.gmra.mxu0 %v659
        %v4427 = vpop.f32.mrf.mxu0
        %v4428 = vadd.f32 %v4315, %v4427
        %4429 = vmatmul.f32.gmra.mxu0 %v667
        %v4430 = vpop.f32.mrf.mxu0
        %v4431 = vadd.f32 %v4318, %v4430
        %4432 = vmatmul.f32.gmra.mxu0 %v675
        %v4433 = vpop.f32.mrf.mxu0
        %v4434 = vadd.f32 %v4321, %v4433
        %4435 = vmatmul.f32.gmra.mxu0 %v683
        %v4436 = vpop.f32.mrf.mxu0
        %v4437 = vadd.f32 %v4324, %v4436
        %4438 = vmatmul.f32.gmra.mxu0 %v691
        %v4439 = vpop.f32.mrf.mxu0
        %v4440 = vadd.f32 %v4327, %v4439
        %4441 = vmatmul.f32.gmra.mxu0 %v699
        %v4442 = vpop.f32.mrf.mxu0
        %v4443 = vadd.f32 %v4330, %v4442
        %4444 = vmatmul.f32.gmra.mxu0 %v707
        %v4445 = vpop.f32.mrf.mxu0
        %v4446 = vadd.f32 %v4333, %v4445
        %4447 = vmatmul.f32.gmra.mxu0 %v715
        %v4448 = vpop.f32.mrf.mxu0
        %v4449 = vadd.f32 %v4336, %v4448
        %4450 = vmatmul.f32.gmra.mxu0 %v723
        %v4451 = vpop.f32.mrf.mxu0
        %v4452 = vadd.f32 %v4339, %v4451
        %4453 = vmatmul.f32.gmra.mxu0 %v731
        %v4454 = vpop.f32.mrf.mxu0
        %v4455 = vadd.f32 %v4342, %v4454
        %4456 = vmatmul.f32.gmra.mxu0 %v739
        %v4457 = vpop.f32.mrf.mxu0
        %v4458 = vadd.f32 %v4345, %v4457
        %4459 = vmatmul.f32.gmra.mxu0 %v747
        %v4460 = vpop.f32.mrf.mxu0
        %v4461 = vadd.f32 %v4348, %v4460
        %4462 = vmatmul.f32.gmra.mxu0 %v755
        %v4463 = vpop.f32.mrf.mxu0
        %v4464 = vadd.f32 %v4351, %v4463
        %4465 = vmatmul.f32.gmra.mxu0 %v763
        %v4466 = vpop.f32.mrf.mxu0
        %v4467 = vadd.f32 %v4354, %v4466
        %4468 = vmatmul.f32.gmra.mxu0 %v771
        %v4469 = vpop.f32.mrf.mxu0
        %v4470 = vadd.f32 %v4357, %v4469
        %4471 = vmatmul.f32.gmra.mxu0 %v779
        %v4472 = vpop.f32.mrf.mxu0
        %v4473 = vadd.f32 %v4360, %v4472
        %4474 = vmatmul.f32.gmra.mxu0 %v787
        %v4475 = vpop.f32.mrf.mxu0
        %v4476 = vadd.f32 %v4363, %v4475
        %4477 = vmatmul.f32.gmra.mxu0 %v795
        %v4478 = vpop.f32.mrf.mxu0
        %v4479 = vadd.f32 %v4366, %v4478
        %4480 = vmatmul.f32.gmra.mxu0 %v803
        %v4481 = vpop.f32.mrf.mxu0
        %v4482 = vadd.f32 %v4369, %v4481
        %4483 = vdwg.mxu0
        %4484 = vmatpush.msra.mxu0 %v1127
        %4485 = vmatpush.msra.mxu0 %v1123
        %4486 = vmatpush.msra.mxu0 %v1119
        %4487 = vmatpush.msra.mxu0 %v1115
        %4488 = vmatpush.msra.mxu0 %v1111
        %4489 = vmatpush.msra.mxu0 %v1107
        %4490 = vmatpush.msra.mxu0 %v1103
        %4491 = vmatpush.msra.mxu0 %v1099
        %4492 = vmatpush.msra.mxu0 %v1095
        %4493 = vmatpush.msra.mxu0 %v1091
        %4494 = vmatpush.msra.mxu0 %v1087
        %4495 = vmatpush.msra.mxu0 %v1083
        %4496 = vmatpush.msra.mxu0 %v1079
        %4497 = vmatpush.msra.mxu0 %v1075
        %4498 = vmatpush.msra.mxu0 %v1071
        %4499 = vmatpush.msra.mxu0 %v1067
        %4500 = vmatmul.f32.gmra.mxu0 %v556
        %v4501 = vpop.f32.mrf.mxu0
        %v4502 = vadd.f32 %v4389, %v4501
        %4503 = vmatmul.f32.gmra.mxu0 %v564
        %v4504 = vpop.f32.mrf.mxu0
        %v4505 = vadd.f32 %v4392, %v4504
        %4506 = vmatmul.f32.gmra.mxu0 %v572
        %v4507 = vpop.f32.mrf.mxu0
        %v4508 = vadd.f32 %v4395, %v4507
        %4509 = vmatmul.f32.gmra.mxu0 %v580
        %v4510 = vpop.f32.mrf.mxu0
        %v4511 = vadd.f32 %v4398, %v4510
        %4512 = vmatmul.f32.gmra.mxu0 %v588
        %v4513 = vpop.f32.mrf.mxu0
        %v4514 = vadd.f32 %v4401, %v4513
        %4515 = vmatmul.f32.gmra.mxu0 %v596
        %v4516 = vpop.f32.mrf.mxu0
        %v4517 = vadd.f32 %v4404, %v4516
        %4518 = vmatmul.f32.gmra.mxu0 %v604
        %v4519 = vpop.f32.mrf.mxu0
        %v4520 = vadd.f32 %v4407, %v4519
        %4521 = vmatmul.f32.gmra.mxu0 %v612
        %v4522 = vpop.f32.mrf.mxu0
        %v4523 = vadd.f32 %v4410, %v4522
        %4524 = vmatmul.f32.gmra.mxu0 %v620
        %v4525 = vpop.f32.mrf.mxu0
        %v4526 = vadd.f32 %v4413, %v4525
        %4527 = vmatmul.f32.gmra.mxu0 %v628
        %v4528 = vpop.f32.mrf.mxu0
        %v4529 = vadd.f32 %v4416, %v4528
        %4530 = vmatmul.f32.gmra.mxu0 %v636
        %v4531 = vpop.f32.mrf.mxu0
        %v4532 = vadd.f32 %v4419, %v4531
        %4533 = vmatmul.f32.gmra.mxu0 %v644
        %v4534 = vpop.f32.mrf.mxu0
        %v4535 = vadd.f32 %v4422, %v4534
        %4536 = vmatmul.f32.gmra.mxu0 %v652
        %v4537 = vpop.f32.mrf.mxu0
        %v4538 = vadd.f32 %v4425, %v4537
        %4539 = vmatmul.f32.gmra.mxu0 %v660
        %v4540 = vpop.f32.mrf.mxu0
        %v4541 = vadd.f32 %v4428, %v4540
        %4542 = vmatmul.f32.gmra.mxu0 %v668
        %v4543 = vpop.f32.mrf.mxu0
        %v4544 = vadd.f32 %v4431, %v4543
        %4545 = vmatmul.f32.gmra.mxu0 %v676
        %v4546 = vpop.f32.mrf.mxu0
        %v4547 = vadd.f32 %v4434, %v4546
        %4548 = vmatmul.f32.gmra.mxu0 %v684
        %v4549 = vpop.f32.mrf.mxu0
        %v4550 = vadd.f32 %v4437, %v4549
        %4551 = vmatmul.f32.gmra.mxu0 %v692
        %v4552 = vpop.f32.mrf.mxu0
        %v4553 = vadd.f32 %v4440, %v4552
        %4554 = vmatmul.f32.gmra.mxu0 %v700
        %v4555 = vpop.f32.mrf.mxu0
        %v4556 = vadd.f32 %v4443, %v4555
        %4557 = vmatmul.f32.gmra.mxu0 %v708
        %v4558 = vpop.f32.mrf.mxu0
        %v4559 = vadd.f32 %v4446, %v4558
        %4560 = vmatmul.f32.gmra.mxu0 %v716
        %v4561 = vpop.f32.mrf.mxu0
        %v4562 = vadd.f32 %v4449, %v4561
        %4563 = vmatmul.f32.gmra.mxu0 %v724
        %v4564 = vpop.f32.mrf.mxu0
        %v4565 = vadd.f32 %v4452, %v4564
        %4566 = vmatmul.f32.gmra.mxu0 %v732
        %v4567 = vpop.f32.mrf.mxu0
        %v4568 = vadd.f32 %v4455, %v4567
        %4569 = vmatmul.f32.gmra.mxu0 %v740
        %v4570 = vpop.f32.mrf.mxu0
        %v4571 = vadd.f32 %v4458, %v4570
        %4572 = vmatmul.f32.gmra.mxu0 %v748
        %v4573 = vpop.f32.mrf.mxu0
        %v4574 = vadd.f32 %v4461, %v4573
        %4575 = vmatmul.f32.gmra.mxu0 %v756
        %v4576 = vpop.f32.mrf.mxu0
        %v4577 = vadd.f32 %v4464, %v4576
        %4578 = vmatmul.f32.gmra.mxu0 %v764
        %v4579 = vpop.f32.mrf.mxu0
        %v4580 = vadd.f32 %v4467, %v4579
        %4581 = vmatmul.f32.gmra.mxu0 %v772
        %v4582 = vpop.f32.mrf.mxu0
        %v4583 = vadd.f32 %v4470, %v4582
        %4584 = vmatmul.f32.gmra.mxu0 %v780
        %v4585 = vpop.f32.mrf.mxu0
        %v4586 = vadd.f32 %v4473, %v4585
        %4587 = vmatmul.f32.gmra.mxu0 %v788
        %v4588 = vpop.f32.mrf.mxu0
        %v4589 = vadd.f32 %v4476, %v4588
        %4590 = vmatmul.f32.gmra.mxu0 %v796
        %v4591 = vpop.f32.mrf.mxu0
        %v4592 = vadd.f32 %v4479, %v4591
        %4593 = vmatmul.f32.gmra.mxu0 %v804
        %v4594 = vpop.f32.mrf.mxu0
        %v4595 = vadd.f32 %v4482, %v4594
        %4596 = vdwg.mxu0
        %4597 = vmatpush.msra.mxu0 %v1191
        %4598 = vmatpush.msra.mxu0 %v1187
        %4599 = vmatpush.msra.mxu0 %v1183
        %4600 = vmatpush.msra.mxu0 %v1179
        %4601 = vmatpush.msra.mxu0 %v1175
        %4602 = vmatpush.msra.mxu0 %v1171
        %4603 = vmatpush.msra.mxu0 %v1167
        %4604 = vmatpush.msra.mxu0 %v1163
        %4605 = vmatpush.msra.mxu0 %v1159
        %4606 = vmatpush.msra.mxu0 %v1155
        %4607 = vmatpush.msra.mxu0 %v1151
        %4608 = vmatpush.msra.mxu0 %v1147
        %4609 = vmatpush.msra.mxu0 %v1143
        %4610 = vmatpush.msra.mxu0 %v1139
        %4611 = vmatpush.msra.mxu0 %v1135
        %4612 = vmatpush.msra.mxu0 %v1131
        %4613 = vmatmul.f32.gmra.mxu0 %v557
        %v4614 = vpop.f32.mrf.mxu0
        %v4615 = vadd.f32 %v4502, %v4614
        %4616 = vmatmul.f32.gmra.mxu0 %v565
        %v4617 = vpop.f32.mrf.mxu0
        %v4618 = vadd.f32 %v4505, %v4617
        %4619 = vmatmul.f32.gmra.mxu0 %v573
        %v4620 = vpop.f32.mrf.mxu0
        %v4621 = vadd.f32 %v4508, %v4620
        %4622 = vmatmul.f32.gmra.mxu0 %v581
        %v4623 = vpop.f32.mrf.mxu0
        %v4624 = vadd.f32 %v4511, %v4623
        %4625 = vmatmul.f32.gmra.mxu0 %v589
        %v4626 = vpop.f32.mrf.mxu0
        %v4627 = vadd.f32 %v4514, %v4626
        %4628 = vmatmul.f32.gmra.mxu0 %v597
        %v4629 = vpop.f32.mrf.mxu0
        %v4630 = vadd.f32 %v4517, %v4629
        %4631 = vmatmul.f32.gmra.mxu0 %v605
        %v4632 = vpop.f32.mrf.mxu0
        %v4633 = vadd.f32 %v4520, %v4632
        %4634 = vmatmul.f32.gmra.mxu0 %v613
        %v4635 = vpop.f32.mrf.mxu0
        %v4636 = vadd.f32 %v4523, %v4635
        %4637 = vmatmul.f32.gmra.mxu0 %v621
        %v4638 = vpop.f32.mrf.mxu0
        %v4639 = vadd.f32 %v4526, %v4638
        %4640 = vmatmul.f32.gmra.mxu0 %v629
        %v4641 = vpop.f32.mrf.mxu0
        %v4642 = vadd.f32 %v4529, %v4641
        %4643 = vmatmul.f32.gmra.mxu0 %v637
        %v4644 = vpop.f32.mrf.mxu0
        %v4645 = vadd.f32 %v4532, %v4644
        %4646 = vmatmul.f32.gmra.mxu0 %v645
        %v4647 = vpop.f32.mrf.mxu0
        %v4648 = vadd.f32 %v4535, %v4647
        %4649 = vmatmul.f32.gmra.mxu0 %v653
        %v4650 = vpop.f32.mrf.mxu0
        %v4651 = vadd.f32 %v4538, %v4650
        %4652 = vmatmul.f32.gmra.mxu0 %v661
        %v4653 = vpop.f32.mrf.mxu0
        %v4654 = vadd.f32 %v4541, %v4653
        %4655 = vmatmul.f32.gmra.mxu0 %v669
        %v4656 = vpop.f32.mrf.mxu0
        %v4657 = vadd.f32 %v4544, %v4656
        %4658 = vmatmul.f32.gmra.mxu0 %v677
        %v4659 = vpop.f32.mrf.mxu0
        %v4660 = vadd.f32 %v4547, %v4659
        %4661 = vmatmul.f32.gmra.mxu0 %v685
        %v4662 = vpop.f32.mrf.mxu0
        %v4663 = vadd.f32 %v4550, %v4662
        %4664 = vmatmul.f32.gmra.mxu0 %v693
        %v4665 = vpop.f32.mrf.mxu0
        %v4666 = vadd.f32 %v4553, %v4665
        %4667 = vmatmul.f32.gmra.mxu0 %v701
        %v4668 = vpop.f32.mrf.mxu0
        %v4669 = vadd.f32 %v4556, %v4668
        %4670 = vmatmul.f32.gmra.mxu0 %v709
        %v4671 = vpop.f32.mrf.mxu0
        %v4672 = vadd.f32 %v4559, %v4671
        %4673 = vmatmul.f32.gmra.mxu0 %v717
        %v4674 = vpop.f32.mrf.mxu0
        %v4675 = vadd.f32 %v4562, %v4674
        %4676 = vmatmul.f32.gmra.mxu0 %v725
        %v4677 = vpop.f32.mrf.mxu0
        %v4678 = vadd.f32 %v4565, %v4677
        %4679 = vmatmul.f32.gmra.mxu0 %v733
        %v4680 = vpop.f32.mrf.mxu0
        %v4681 = vadd.f32 %v4568, %v4680
        %4682 = vmatmul.f32.gmra.mxu0 %v741
        %v4683 = vpop.f32.mrf.mxu0
        %v4684 = vadd.f32 %v4571, %v4683
        %4685 = vmatmul.f32.gmra.mxu0 %v749
        %v4686 = vpop.f32.mrf.mxu0
        %v4687 = vadd.f32 %v4574, %v4686
        %4688 = vmatmul.f32.gmra.mxu0 %v757
        %v4689 = vpop.f32.mrf.mxu0
        %v4690 = vadd.f32 %v4577, %v4689
        %4691 = vmatmul.f32.gmra.mxu0 %v765
        %v4692 = vpop.f32.mrf.mxu0
        %v4693 = vadd.f32 %v4580, %v4692
        %4694 = vmatmul.f32.gmra.mxu0 %v773
        %v4695 = vpop.f32.mrf.mxu0
        %v4696 = vadd.f32 %v4583, %v4695
        %4697 = vmatmul.f32.gmra.mxu0 %v781
        %v4698 = vpop.f32.mrf.mxu0
        %v4699 = vadd.f32 %v4586, %v4698
        %4700 = vmatmul.f32.gmra.mxu0 %v789
        %v4701 = vpop.f32.mrf.mxu0
        %v4702 = vadd.f32 %v4589, %v4701
        %4703 = vmatmul.f32.gmra.mxu0 %v797
        %v4704 = vpop.f32.mrf.mxu0
        %v4705 = vadd.f32 %v4592, %v4704
        %4706 = vmatmul.f32.gmra.mxu0 %v805
        %v4707 = vpop.f32.mrf.mxu0
        %v4708 = vadd.f32 %v4595, %v4707
        %4709 = vdwg.mxu0
        %4710 = vmatpush.msra.mxu0 %v1255
        %4711 = vmatpush.msra.mxu0 %v1251
        %4712 = vmatpush.msra.mxu0 %v1247
        %4713 = vmatpush.msra.mxu0 %v1243
        %4714 = vmatpush.msra.mxu0 %v1239
        %4715 = vmatpush.msra.mxu0 %v1235
        %4716 = vmatpush.msra.mxu0 %v1231
        %4717 = vmatpush.msra.mxu0 %v1227
        %4718 = vmatpush.msra.mxu0 %v1223
        %4719 = vmatpush.msra.mxu0 %v1219
        %4720 = vmatpush.msra.mxu0 %v1215
        %4721 = vmatpush.msra.mxu0 %v1211
        %4722 = vmatpush.msra.mxu0 %v1207
        %4723 = vmatpush.msra.mxu0 %v1203
        %4724 = vmatpush.msra.mxu0 %v1199
        %4725 = vmatpush.msra.mxu0 %v1195
        %4726 = vmatmul.f32.gmra.mxu0 %v558
        %v4727 = vpop.f32.mrf.mxu0
        %v4728 = vadd.f32 %v4615, %v4727
        %4729 = vmatmul.f32.gmra.mxu0 %v566
        %v4730 = vpop.f32.mrf.mxu0
        %v4731 = vadd.f32 %v4618, %v4730
        %4732 = vmatmul.f32.gmra.mxu0 %v574
        %v4733 = vpop.f32.mrf.mxu0
        %v4734 = vadd.f32 %v4621, %v4733
        %4735 = vmatmul.f32.gmra.mxu0 %v582
        %v4736 = vpop.f32.mrf.mxu0
        %v4737 = vadd.f32 %v4624, %v4736
        %4738 = vmatmul.f32.gmra.mxu0 %v590
        %v4739 = vpop.f32.mrf.mxu0
        %v4740 = vadd.f32 %v4627, %v4739
        %4741 = vmatmul.f32.gmra.mxu0 %v598
        %v4742 = vpop.f32.mrf.mxu0
        %v4743 = vadd.f32 %v4630, %v4742
        %4744 = vmatmul.f32.gmra.mxu0 %v606
        %v4745 = vpop.f32.mrf.mxu0
        %v4746 = vadd.f32 %v4633, %v4745
        %4747 = vmatmul.f32.gmra.mxu0 %v614
        %v4748 = vpop.f32.mrf.mxu0
        %v4749 = vadd.f32 %v4636, %v4748
        %4750 = vmatmul.f32.gmra.mxu0 %v622
        %v4751 = vpop.f32.mrf.mxu0
        %v4752 = vadd.f32 %v4639, %v4751
        %4753 = vmatmul.f32.gmra.mxu0 %v630
        %v4754 = vpop.f32.mrf.mxu0
        %v4755 = vadd.f32 %v4642, %v4754
        %4756 = vmatmul.f32.gmra.mxu0 %v638
        %v4757 = vpop.f32.mrf.mxu0
        %v4758 = vadd.f32 %v4645, %v4757
        %4759 = vmatmul.f32.gmra.mxu0 %v646
        %v4760 = vpop.f32.mrf.mxu0
        %v4761 = vadd.f32 %v4648, %v4760
        %4762 = vmatmul.f32.gmra.mxu0 %v654
        %v4763 = vpop.f32.mrf.mxu0
        %v4764 = vadd.f32 %v4651, %v4763
        %4765 = vmatmul.f32.gmra.mxu0 %v662
        %v4766 = vpop.f32.mrf.mxu0
        %v4767 = vadd.f32 %v4654, %v4766
        %4768 = vmatmul.f32.gmra.mxu0 %v670
        %v4769 = vpop.f32.mrf.mxu0
        %v4770 = vadd.f32 %v4657, %v4769
        %4771 = vmatmul.f32.gmra.mxu0 %v678
        %v4772 = vpop.f32.mrf.mxu0
        %v4773 = vadd.f32 %v4660, %v4772
        %4774 = vmatmul.f32.gmra.mxu0 %v686
        %v4775 = vpop.f32.mrf.mxu0
        %v4776 = vadd.f32 %v4663, %v4775
        %4777 = vmatmul.f32.gmra.mxu0 %v694
        %v4778 = vpop.f32.mrf.mxu0
        %v4779 = vadd.f32 %v4666, %v4778
        %4780 = vmatmul.f32.gmra.mxu0 %v702
        %v4781 = vpop.f32.mrf.mxu0
        %v4782 = vadd.f32 %v4669, %v4781
        %4783 = vmatmul.f32.gmra.mxu0 %v710
        %v4784 = vpop.f32.mrf.mxu0
        %v4785 = vadd.f32 %v4672, %v4784
        %4786 = vmatmul.f32.gmra.mxu0 %v718
        %v4787 = vpop.f32.mrf.mxu0
        %v4788 = vadd.f32 %v4675, %v4787
        %4789 = vmatmul.f32.gmra.mxu0 %v726
        %v4790 = vpop.f32.mrf.mxu0
        %v4791 = vadd.f32 %v4678, %v4790
        %4792 = vmatmul.f32.gmra.mxu0 %v734
        %v4793 = vpop.f32.mrf.mxu0
        %v4794 = vadd.f32 %v4681, %v4793
        %4795 = vmatmul.f32.gmra.mxu0 %v742
        %v4796 = vpop.f32.mrf.mxu0
        %v4797 = vadd.f32 %v4684, %v4796
        %4798 = vmatmul.f32.gmra.mxu0 %v750
        %v4799 = vpop.f32.mrf.mxu0
        %v4800 = vadd.f32 %v4687, %v4799
        %4801 = vmatmul.f32.gmra.mxu0 %v758
        %v4802 = vpop.f32.mrf.mxu0
        %v4803 = vadd.f32 %v4690, %v4802
        %4804 = vmatmul.f32.gmra.mxu0 %v766
        %v4805 = vpop.f32.mrf.mxu0
        %v4806 = vadd.f32 %v4693, %v4805
        %4807 = vmatmul.f32.gmra.mxu0 %v774
        %v4808 = vpop.f32.mrf.mxu0
        %v4809 = vadd.f32 %v4696, %v4808
        %4810 = vmatmul.f32.gmra.mxu0 %v782
        %v4811 = vpop.f32.mrf.mxu0
        %v4812 = vadd.f32 %v4699, %v4811
        %4813 = vmatmul.f32.gmra.mxu0 %v790
        %v4814 = vpop.f32.mrf.mxu0
        %v4815 = vadd.f32 %v4702, %v4814
        %4816 = vmatmul.f32.gmra.mxu0 %v798
        %v4817 = vpop.f32.mrf.mxu0
        %v4818 = vadd.f32 %v4705, %v4817
        %4819 = vmatmul.f32.gmra.mxu0 %v806
        %v4820 = vpop.f32.mrf.mxu0
        %v4821 = vadd.f32 %v4708, %v4820
        %4822 = vdwg.mxu0
        %4823 = vmatpush.msra.mxu0 %v1319
        %4824 = vmatpush.msra.mxu0 %v1315
        %4825 = vmatpush.msra.mxu0 %v1311
        %4826 = vmatpush.msra.mxu0 %v1307
        %4827 = vmatpush.msra.mxu0 %v1303
        %4828 = vmatpush.msra.mxu0 %v1299
        %4829 = vmatpush.msra.mxu0 %v1295
        %4830 = vmatpush.msra.mxu0 %v1291
        %4831 = vmatpush.msra.mxu0 %v1287
        %4832 = vmatpush.msra.mxu0 %v1283
        %4833 = vmatpush.msra.mxu0 %v1279
        %4834 = vmatpush.msra.mxu0 %v1275
        %4835 = vmatpush.msra.mxu0 %v1271
        %4836 = vmatpush.msra.mxu0 %v1267
        %4837 = vmatpush.msra.mxu0 %v1263
        %4838 = vmatpush.msra.mxu0 %v1259
        %4839 = vmatmul.f32.gmra.mxu0 %v559
        %v4840 = vpop.f32.mrf.mxu0
        %v4841 = vadd.f32 %v4728, %v4840
        %4842 = vmatmul.f32.gmra.mxu0 %v567
        %v4843 = vpop.f32.mrf.mxu0
        %v4844 = vadd.f32 %v4731, %v4843
        %4845 = vmatmul.f32.gmra.mxu0 %v575
        %v4846 = vpop.f32.mrf.mxu0
        %v4847 = vadd.f32 %v4734, %v4846
        %4848 = vmatmul.f32.gmra.mxu0 %v583
        %v4849 = vpop.f32.mrf.mxu0
        %v4850 = vadd.f32 %v4737, %v4849
        %4851 = vmatmul.f32.gmra.mxu0 %v591
        %v4852 = vpop.f32.mrf.mxu0
        %v4853 = vadd.f32 %v4740, %v4852
        %4854 = vmatmul.f32.gmra.mxu0 %v599
        %v4855 = vpop.f32.mrf.mxu0
        %v4856 = vadd.f32 %v4743, %v4855
        %4857 = vmatmul.f32.gmra.mxu0 %v607
        %v4858 = vpop.f32.mrf.mxu0
        %v4859 = vadd.f32 %v4746, %v4858
        %4860 = vmatmul.f32.gmra.mxu0 %v615
        %v4861 = vpop.f32.mrf.mxu0
        %v4862 = vadd.f32 %v4749, %v4861
        %4863 = vmatmul.f32.gmra.mxu0 %v623
        %v4864 = vpop.f32.mrf.mxu0
        %v4865 = vadd.f32 %v4752, %v4864
        %4866 = vmatmul.f32.gmra.mxu0 %v631
        %v4867 = vpop.f32.mrf.mxu0
        %v4868 = vadd.f32 %v4755, %v4867
        %4869 = vmatmul.f32.gmra.mxu0 %v639
        %v4870 = vpop.f32.mrf.mxu0
        %v4871 = vadd.f32 %v4758, %v4870
        %4872 = vmatmul.f32.gmra.mxu0 %v647
        %v4873 = vpop.f32.mrf.mxu0
        %v4874 = vadd.f32 %v4761, %v4873
        %4875 = vmatmul.f32.gmra.mxu0 %v655
        %v4876 = vpop.f32.mrf.mxu0
        %v4877 = vadd.f32 %v4764, %v4876
        %4878 = vmatmul.f32.gmra.mxu0 %v663
        %v4879 = vpop.f32.mrf.mxu0
        %v4880 = vadd.f32 %v4767, %v4879
        %4881 = vmatmul.f32.gmra.mxu0 %v671
        %v4882 = vpop.f32.mrf.mxu0
        %v4883 = vadd.f32 %v4770, %v4882
        %4884 = vmatmul.f32.gmra.mxu0 %v679
        %v4885 = vpop.f32.mrf.mxu0
        %v4886 = vadd.f32 %v4773, %v4885
        %4887 = vmatmul.f32.gmra.mxu0 %v687
        %v4888 = vpop.f32.mrf.mxu0
        %v4889 = vadd.f32 %v4776, %v4888
        %4890 = vmatmul.f32.gmra.mxu0 %v695
        %v4891 = vpop.f32.mrf.mxu0
        %v4892 = vadd.f32 %v4779, %v4891
        %4893 = vmatmul.f32.gmra.mxu0 %v703
        %v4894 = vpop.f32.mrf.mxu0
        %v4895 = vadd.f32 %v4782, %v4894
        %4896 = vmatmul.f32.gmra.mxu0 %v711
        %v4897 = vpop.f32.mrf.mxu0
        %v4898 = vadd.f32 %v4785, %v4897
        %4899 = vmatmul.f32.gmra.mxu0 %v719
        %v4900 = vpop.f32.mrf.mxu0
        %v4901 = vadd.f32 %v4788, %v4900
        %4902 = vmatmul.f32.gmra.mxu0 %v727
        %v4903 = vpop.f32.mrf.mxu0
        %v4904 = vadd.f32 %v4791, %v4903
        %4905 = vmatmul.f32.gmra.mxu0 %v735
        %v4906 = vpop.f32.mrf.mxu0
        %v4907 = vadd.f32 %v4794, %v4906
        %4908 = vmatmul.f32.gmra.mxu0 %v743
        %v4909 = vpop.f32.mrf.mxu0
        %v4910 = vadd.f32 %v4797, %v4909
        %4911 = vmatmul.f32.gmra.mxu0 %v751
        %v4912 = vpop.f32.mrf.mxu0
        %v4913 = vadd.f32 %v4800, %v4912
        %4914 = vmatmul.f32.gmra.mxu0 %v759
        %v4915 = vpop.f32.mrf.mxu0
        %v4916 = vadd.f32 %v4803, %v4915
        %4917 = vmatmul.f32.gmra.mxu0 %v767
        %v4918 = vpop.f32.mrf.mxu0
        %v4919 = vadd.f32 %v4806, %v4918
        %4920 = vmatmul.f32.gmra.mxu0 %v775
        %v4921 = vpop.f32.mrf.mxu0
        %v4922 = vadd.f32 %v4809, %v4921
        %4923 = vmatmul.f32.gmra.mxu0 %v783
        %v4924 = vpop.f32.mrf.mxu0
        %v4925 = vadd.f32 %v4812, %v4924
        %4926 = vmatmul.f32.gmra.mxu0 %v791
        %v4927 = vpop.f32.mrf.mxu0
        %v4928 = vadd.f32 %v4815, %v4927
        %4929 = vmatmul.f32.gmra.mxu0 %v799
        %v4930 = vpop.f32.mrf.mxu0
        %v4931 = vadd.f32 %v4818, %v4930
        %4932 = vmatmul.f32.gmra.mxu0 %v807
        %v4933 = vpop.f32.mrf.mxu0
        %v4934 = vadd.f32 %v4821, %v4933
        %4935 = vdwg.mxu0
        %v4936 = vadd.f32 %v424, %v2129
        %v4937 = vadd.f32 %v425, %v3033
        %v4938 = vadd.f32 %v426, %v3937
        %v4939 = vadd.f32 %v427, %v4841
        %v4940 = vadd.f32 %v428, %v2132
        %v4941 = vadd.f32 %v429, %v3036
        %v4942 = vadd.f32 %v430, %v3940
        %v4943 = vadd.f32 %v431, %v4844
        %v4944 = vadd.f32 %v432, %v2135
        %v4945 = vadd.f32 %v433, %v3039
        %v4946 = vadd.f32 %v434, %v3943
        %v4947 = vadd.f32 %v435, %v4847
        %v4948 = vadd.f32 %v436, %v2138
        %v4949 = vadd.f32 %v437, %v3042
        %v4950 = vadd.f32 %v438, %v3946
        %v4951 = vadd.f32 %v439, %v4850
        %v4952 = vadd.f32 %v440, %v2141
        %v4953 = vadd.f32 %v441, %v3045
        %v4954 = vadd.f32 %v442, %v3949
        %v4955 = vadd.f32 %v443, %v4853
        %v4956 = vadd.f32 %v444, %v2144
        %v4957 = vadd.f32 %v445, %v3048
        %v4958 = vadd.f32 %v446, %v3952
        %v4959 = vadd.f32 %v447, %v4856
        %v4960 = vadd.f32 %v448, %v2147
        %v4961 = vadd.f32 %v449, %v3051
        %v4962 = vadd.f32 %v450, %v3955
        %v4963 = vadd.f32 %v451, %v4859
        %v4964 = vadd.f32 %v452, %v2150
        %v4965 = vadd.f32 %v453, %v3054
        %v4966 = vadd.f32 %v454, %v3958
        %v4967 = vadd.f32 %v455, %v4862
        %v4968 = vadd.f32 %v456, %v2153
        %v4969 = vadd.f32 %v457, %v3057
        %v4970 = vadd.f32 %v458, %v3961
        %v4971 = vadd.f32 %v459, %v4865
        %v4972 = vadd.f32 %v460, %v2156
        %v4973 = vadd.f32 %v461, %v3060
        %v4974 = vadd.f32 %v462, %v3964
        %v4975 = vadd.f32 %v463, %v4868
        %v4976 = vadd.f32 %v464, %v2159
        %v4977 = vadd.f32 %v465, %v3063
        %v4978 = vadd.f32 %v466, %v3967
        %v4979 = vadd.f32 %v467, %v4871
        %v4980 = vadd.f32 %v468, %v2162
        %v4981 = vadd.f32 %v469, %v3066
        %v4982 = vadd.f32 %v470, %v3970
        %v4983 = vadd.f32 %v471, %v4874
        %v4984 = vadd.f32 %v472, %v2165
        %v4985 = vadd.f32 %v473, %v3069
        %v4986 = vadd.f32 %v474, %v3973
        %v4987 = vadd.f32 %v475, %v4877
        %v4988 = vadd.f32 %v476, %v2168
        %v4989 = vadd.f32 %v477, %v3072
        %v4990 = vadd.f32 %v478, %v3976
        %v4991 = vadd.f32 %v479, %v4880
        %v4992 = vadd.f32 %v480, %v2171
        %v4993 = vadd.f32 %v481, %v3075
        %v4994 = vadd.f32 %v482, %v3979
        %v4995 = vadd.f32 %v483, %v4883
        %v4996 = vadd.f32 %v484, %v2174
        %v4997 = vadd.f32 %v485, %v3078
        %v4998 = vadd.f32 %v486, %v3982
        %v4999 = vadd.f32 %v487, %v4886
        %v5000 = vadd.f32 %v488, %v2177
        %v5001 = vadd.f32 %v489, %v3081
        %v5002 = vadd.f32 %v490, %v3985
        %v5003 = vadd.f32 %v491, %v4889
        %v5004 = vadd.f32 %v492, %v2180
        %v5005 = vadd.f32 %v493, %v3084
        %v5006 = vadd.f32 %v494, %v3988
        %v5007 = vadd.f32 %v495, %v4892
        %v5008 = vadd.f32 %v496, %v2183
        %v5009 = vadd.f32 %v497, %v3087
        %v5010 = vadd.f32 %v498, %v3991
        %v5011 = vadd.f32 %v499, %v4895
        %v5012 = vadd.f32 %v500, %v2186
        %v5013 = vadd.f32 %v501, %v3090
        %v5014 = vadd.f32 %v502, %v3994
        %v5015 = vadd.f32 %v503, %v4898
        %v5016 = vadd.f32 %v504, %v2189
        %v5017 = vadd.f32 %v505, %v3093
        %v5018 = vadd.f32 %v506, %v3997
        %v5019 = vadd.f32 %v507, %v4901
        %v5020 = vadd.f32 %v508, %v2192
        %v5021 = vadd.f32 %v509, %v3096
        %v5022 = vadd.f32 %v510, %v4000
        %v5023 = vadd.f32 %v511, %v4904
        %v5024 = vadd.f32 %v512, %v2195
        %v5025 = vadd.f32 %v513, %v3099
        %v5026 = vadd.f32 %v514, %v4003
        %v5027 = vadd.f32 %v515, %v4907
        %v5028 = vadd.f32 %v516, %v2198
        %v5029 = vadd.f32 %v517, %v3102
        %v5030 = vadd.f32 %v518, %v4006
        %v5031 = vadd.f32 %v519, %v4910
        %v5032 = vadd.f32 %v520, %v2201
        %v5033 = vadd.f32 %v521, %v3105
        %v5034 = vadd.f32 %v522, %v4009
        %v5035 = vadd.f32 %v523, %v4913
        %v5036 = vadd.f32 %v524, %v2204
        %v5037 = vadd.f32 %v525, %v3108
        %v5038 = vadd.f32 %v526, %v4012
        %v5039 = vadd.f32 %v527, %v4916
        %v5040 = vadd.f32 %v528, %v2207
        %v5041 = vadd.f32 %v529, %v3111
        %v5042 = vadd.f32 %v530, %v4015
        %v5043 = vadd.f32 %v531, %v4919
        %v5044 = vadd.f32 %v532, %v2210
        %v5045 = vadd.f32 %v533, %v3114
        %v5046 = vadd.f32 %v534, %v4018
        %v5047 = vadd.f32 %v535, %v4922
        %v5048 = vadd.f32 %v536, %v2213
        %v5049 = vadd.f32 %v537, %v3117
        %v5050 = vadd.f32 %v538, %v4021
        %v5051 = vadd.f32 %v539, %v4925
        %v5052 = vadd.f32 %v540, %v2216
        %v5053 = vadd.f32 %v541, %v3120
        %v5054 = vadd.f32 %v542, %v4024
        %v5055 = vadd.f32 %v543, %v4928
        %v5056 = vadd.f32 %v544, %v2219
        %v5057 = vadd.f32 %v545, %v3123
        %v5058 = vadd.f32 %v546, %v4027
        %v5059 = vadd.f32 %v547, %v4931
        %v5060 = vadd.f32 %v548, %v2222
        %v5061 = vadd.f32 %v549, %v3126
        %v5062 = vadd.f32 %v550, %v4030
        %v5063 = vadd.f32 %v551, %v4934
        %5064 = vst [vmem:[%s284] sm:$0xff] %v4936
        %5065 = vst [vmem:[%s284 + $0x8] sm:$0xff] %v4937
        %5066 = vst [vmem:[%s284 + $0x10] sm:$0xff] %v4938
        %5067 = vst [vmem:[%s284 + $0x18] sm:$0xff] %v4939
        %5068 = vst [vmem:[%s284 + $0x20] sm:$0xff] %v4940
        %5069 = vst [vmem:[%s284 + $0x28] sm:$0xff] %v4941
        %5070 = vst [vmem:[%s284 + $0x30] sm:$0xff] %v4942
        %5071 = vst [vmem:[%s284 + $0x38] sm:$0xff] %v4943
        %5072 = vst [vmem:[%s284 + $0x40] sm:$0xff] %v4944
        %5073 = vst [vmem:[%s284 + $0x48] sm:$0xff] %v4945
        %5074 = vst [vmem:[%s284 + $0x50] sm:$0xff] %v4946
        %5075 = vst [vmem:[%s284 + $0x58] sm:$0xff] %v4947
        %5076 = vst [vmem:[%s284 + $0x60] sm:$0xff] %v4948
        %5077 = vst [vmem:[%s284 + $0x68] sm:$0xff] %v4949
        %5078 = vst [vmem:[%s284 + $0x70] sm:$0xff] %v4950
        %5079 = vst [vmem:[%s284 + $0x78] sm:$0xff] %v4951
        %5080 = vst [vmem:[%s284 + $0x80] sm:$0xff] %v4952
        %5081 = vst [vmem:[%s284 + $0x88] sm:$0xff] %v4953
        %5082 = vst [vmem:[%s284 + $0x90] sm:$0xff] %v4954
        %5083 = vst [vmem:[%s284 + $0x98] sm:$0xff] %v4955
        %5084 = vst [vmem:[%s284 + $0xa0] sm:$0xff] %v4956
        %5085 = vst [vmem:[%s284 + $0xa8] sm:$0xff] %v4957
        %5086 = vst [vmem:[%s284 + $0xb0] sm:$0xff] %v4958
        %5087 = vst [vmem:[%s284 + $0xb8] sm:$0xff] %v4959
        %5088 = vst [vmem:[%s284 + $0xc0] sm:$0xff] %v4960
        %5089 = vst [vmem:[%s284 + $0xc8] sm:$0xff] %v4961
        %5090 = vst [vmem:[%s284 + $0xd0] sm:$0xff] %v4962
        %5091 = vst [vmem:[%s284 + $0xd8] sm:$0xff] %v4963
        %5092 = vst [vmem:[%s284 + $0xe0] sm:$0xff] %v4964
        %5093 = vst [vmem:[%s284 + $0xe8] sm:$0xff] %v4965
        %5094 = vst [vmem:[%s284 + $0xf0] sm:$0xff] %v4966
        %5095 = vst [vmem:[%s284 + $0xf8] sm:$0xff] %v4967
        %5096 = vst [vmem:[%s284 + $0x100] sm:$0xff] %v4968
        %5097 = vst [vmem:[%s284 + $0x108] sm:$0xff] %v4969
        %5098 = vst [vmem:[%s284 + $0x110] sm:$0xff] %v4970
        %5099 = vst [vmem:[%s284 + $0x118] sm:$0xff] %v4971
        %5100 = vst [vmem:[%s284 + $0x120] sm:$0xff] %v4972
        %5101 = vst [vmem:[%s284 + $0x128] sm:$0xff] %v4973
        %5102 = vst [vmem:[%s284 + $0x130] sm:$0xff] %v4974
        %5103 = vst [vmem:[%s284 + $0x138] sm:$0xff] %v4975
        %5104 = vst [vmem:[%s284 + $0x140] sm:$0xff] %v4976
        %5105 = vst [vmem:[%s284 + $0x148] sm:$0xff] %v4977
        %5106 = vst [vmem:[%s284 + $0x150] sm:$0xff] %v4978
        %5107 = vst [vmem:[%s284 + $0x158] sm:$0xff] %v4979
        %5108 = vst [vmem:[%s284 + $0x160] sm:$0xff] %v4980
        %5109 = vst [vmem:[%s284 + $0x168] sm:$0xff] %v4981
        %5110 = vst [vmem:[%s284 + $0x170] sm:$0xff] %v4982
        %5111 = vst [vmem:[%s284 + $0x178] sm:$0xff] %v4983
        %5112 = vst [vmem:[%s284 + $0x180] sm:$0xff] %v4984
        %5113 = vst [vmem:[%s284 + $0x188] sm:$0xff] %v4985
        %5114 = vst [vmem:[%s284 + $0x190] sm:$0xff] %v4986
        %5115 = vst [vmem:[%s284 + $0x198] sm:$0xff] %v4987
        %5116 = vst [vmem:[%s284 + $0x1a0] sm:$0xff] %v4988
        %5117 = vst [vmem:[%s284 + $0x1a8] sm:$0xff] %v4989
        %5118 = vst [vmem:[%s284 + $0x1b0] sm:$0xff] %v4990
        %5119 = vst [vmem:[%s284 + $0x1b8] sm:$0xff] %v4991
        %5120 = vst [vmem:[%s284 + $0x1c0] sm:$0xff] %v4992
        %5121 = vst [vmem:[%s284 + $0x1c8] sm:$0xff] %v4993
        %5122 = vst [vmem:[%s284 + $0x1d0] sm:$0xff] %v4994
        %5123 = vst [vmem:[%s284 + $0x1d8] sm:$0xff] %v4995
        %5124 = vst [vmem:[%s284 + $0x1e0] sm:$0xff] %v4996
        %5125 = vst [vmem:[%s284 + $0x1e8] sm:$0xff] %v4997
        %5126 = vst [vmem:[%s284 + $0x1f0] sm:$0xff] %v4998
        %5127 = vst [vmem:[%s284 + $0x1f8] sm:$0xff] %v4999
        %5128 = vst [vmem:[%s284 + $0x200] sm:$0xff] %v5000
        %5129 = vst [vmem:[%s284 + $0x208] sm:$0xff] %v5001
        %5130 = vst [vmem:[%s284 + $0x210] sm:$0xff] %v5002
        %5131 = vst [vmem:[%s284 + $0x218] sm:$0xff] %v5003
        %5132 = vst [vmem:[%s284 + $0x220] sm:$0xff] %v5004
        %5133 = vst [vmem:[%s284 + $0x228] sm:$0xff] %v5005
        %5134 = vst [vmem:[%s284 + $0x230] sm:$0xff] %v5006
        %5135 = vst [vmem:[%s284 + $0x238] sm:$0xff] %v5007
        %5136 = vst [vmem:[%s284 + $0x240] sm:$0xff] %v5008
        %5137 = vst [vmem:[%s284 + $0x248] sm:$0xff] %v5009
        %5138 = vst [vmem:[%s284 + $0x250] sm:$0xff] %v5010
        %5139 = vst [vmem:[%s284 + $0x258] sm:$0xff] %v5011
        %5140 = vst [vmem:[%s284 + $0x260] sm:$0xff] %v5012
        %5141 = vst [vmem:[%s284 + $0x268] sm:$0xff] %v5013
        %5142 = vst [vmem:[%s284 + $0x270] sm:$0xff] %v5014
        %5143 = vst [vmem:[%s284 + $0x278] sm:$0xff] %v5015
        %5144 = vst [vmem:[%s284 + $0x280] sm:$0xff] %v5016
        %5145 = vst [vmem:[%s284 + $0x288] sm:$0xff] %v5017
        %5146 = vst [vmem:[%s284 + $0x290] sm:$0xff] %v5018
        %5147 = vst [vmem:[%s284 + $0x298] sm:$0xff] %v5019
        %5148 = vst [vmem:[%s284 + $0x2a0] sm:$0xff] %v5020
        %5149 = vst [vmem:[%s284 + $0x2a8] sm:$0xff] %v5021
        %5150 = vst [vmem:[%s284 + $0x2b0] sm:$0xff] %v5022
        %5151 = vst [vmem:[%s284 + $0x2b8] sm:$0xff] %v5023
        %5152 = vst [vmem:[%s284 + $0x2c0] sm:$0xff] %v5024
        %5153 = vst [vmem:[%s284 + $0x2c8] sm:$0xff] %v5025
        %5154 = vst [vmem:[%s284 + $0x2d0] sm:$0xff] %v5026
        %5155 = vst [vmem:[%s284 + $0x2d8] sm:$0xff] %v5027
        %5156 = vst [vmem:[%s284 + $0x2e0] sm:$0xff] %v5028
        %5157 = vst [vmem:[%s284 + $0x2e8] sm:$0xff] %v5029
        %5158 = vst [vmem:[%s284 + $0x2f0] sm:$0xff] %v5030
        %5159 = vst [vmem:[%s284 + $0x2f8] sm:$0xff] %v5031
        %5160 = vst [vmem:[%s284 + $0x300] sm:$0xff] %v5032
        %5161 = vst [vmem:[%s284 + $0x308] sm:$0xff] %v5033
        %5162 = vst [vmem:[%s284 + $0x310] sm:$0xff] %v5034
        %5163 = vst [vmem:[%s284 + $0x318] sm:$0xff] %v5035
        %5164 = vst [vmem:[%s284 + $0x320] sm:$0xff] %v5036
        %5165 = vst [vmem:[%s284 + $0x328] sm:$0xff] %v5037
        %5166 = vst [vmem:[%s284 + $0x330] sm:$0xff] %v5038
        %5167 = vst [vmem:[%s284 + $0x338] sm:$0xff] %v5039
        %5168 = vst [vmem:[%s284 + $0x340] sm:$0xff] %v5040
        %5169 = vst [vmem:[%s284 + $0x348] sm:$0xff] %v5041
        %5170 = vst [vmem:[%s284 + $0x350] sm:$0xff] %v5042
        %5171 = vst [vmem:[%s284 + $0x358] sm:$0xff] %v5043
        %5172 = vst [vmem:[%s284 + $0x360] sm:$0xff] %v5044
        %5173 = vst [vmem:[%s284 + $0x368] sm:$0xff] %v5045
        %5174 = vst [vmem:[%s284 + $0x370] sm:$0xff] %v5046
        %5175 = vst [vmem:[%s284 + $0x378] sm:$0xff] %v5047
        %5176 = vst [vmem:[%s284 + $0x380] sm:$0xff] %v5048
        %5177 = vst [vmem:[%s284 + $0x388] sm:$0xff] %v5049
        %5178 = vst [vmem:[%s284 + $0x390] sm:$0xff] %v5050
        %5179 = vst [vmem:[%s284 + $0x398] sm:$0xff] %v5051
        %5180 = vst [vmem:[%s284 + $0x3a0] sm:$0xff] %v5052
        %5181 = vst [vmem:[%s284 + $0x3a8] sm:$0xff] %v5053
        %5182 = vst [vmem:[%s284 + $0x3b0] sm:$0xff] %v5054
        %5183 = vst [vmem:[%s284 + $0x3b8] sm:$0xff] %v5055
        %5184 = vst [vmem:[%s284 + $0x3c0] sm:$0xff] %v5056
        %5185 = vst [vmem:[%s284 + $0x3c8] sm:$0xff] %v5057
        %5186 = vst [vmem:[%s284 + $0x3d0] sm:$0xff] %v5058
        %5187 = vst [vmem:[%s284 + $0x3d8] sm:$0xff] %v5059
        %5188 = vst [vmem:[%s284 + $0x3e0] sm:$0xff] %v5060
        %5189 = vst [vmem:[%s284 + $0x3e8] sm:$0xff] %v5061
        %5190 = vst [vmem:[%s284 + $0x3f0] sm:$0xff] %v5062
        %5191 = vst [vmem:[%s284 + $0x3f8] sm:$0xff] %v5063
        %p5192 = scmp.eq.s32.totalorder %s30, 1
        // Predicated region
        $region49: #{tpu_custom_call.1} parent=31 // pred_check
          %p5193 = pneg %p5192
        $region50: #{tpu_custom_call.1} parent=31 // pred_check_branch
          %5195 = sbr.rel (%p5193) target = $region52
        $region51: #{tpu_custom_call.1} parent=31 // pred_region
          %v5196 = vld [vmem:[%s284] sm:$0xff]
          %v5197 = vld [vmem:[%s284 + $0x8] sm:$0xff]
          %v5198 = vld [vmem:[%s284 + $0x10] sm:$0xff]
          %v5199 = vld [vmem:[%s284 + $0x18] sm:$0xff]
          %v5200 = vld [vmem:[%s284 + $0x20] sm:$0xff]
          %v5201 = vld [vmem:[%s284 + $0x28] sm:$0xff]
          %v5202 = vld [vmem:[%s284 + $0x30] sm:$0xff]
          %v5203 = vld [vmem:[%s284 + $0x38] sm:$0xff]
          %v5204 = vld [vmem:[%s284 + $0x40] sm:$0xff]
          %v5205 = vld [vmem:[%s284 + $0x48] sm:$0xff]
          %v5206 = vld [vmem:[%s284 + $0x50] sm:$0xff]
          %v5207 = vld [vmem:[%s284 + $0x58] sm:$0xff]
          %v5208 = vld [vmem:[%s284 + $0x60] sm:$0xff]
          %v5209 = vld [vmem:[%s284 + $0x68] sm:$0xff]
          %v5210 = vld [vmem:[%s284 + $0x70] sm:$0xff]
          %v5211 = vld [vmem:[%s284 + $0x78] sm:$0xff]
          %v5212 = vld [vmem:[%s284 + $0x80] sm:$0xff]
          %v5213 = vld [vmem:[%s284 + $0x88] sm:$0xff]
          %v5214 = vld [vmem:[%s284 + $0x90] sm:$0xff]
          %v5215 = vld [vmem:[%s284 + $0x98] sm:$0xff]
          %v5216 = vld [vmem:[%s284 + $0xa0] sm:$0xff]
          %v5217 = vld [vmem:[%s284 + $0xa8] sm:$0xff]
          %v5218 = vld [vmem:[%s284 + $0xb0] sm:$0xff]
          %v5219 = vld [vmem:[%s284 + $0xb8] sm:$0xff]
          %v5220 = vld [vmem:[%s284 + $0xc0] sm:$0xff]
          %v5221 = vld [vmem:[%s284 + $0xc8] sm:$0xff]
          %v5222 = vld [vmem:[%s284 + $0xd0] sm:$0xff]
          %v5223 = vld [vmem:[%s284 + $0xd8] sm:$0xff]
          %v5224 = vld [vmem:[%s284 + $0xe0] sm:$0xff]
          %v5225 = vld [vmem:[%s284 + $0xe8] sm:$0xff]
          %v5226 = vld [vmem:[%s284 + $0xf0] sm:$0xff]
          %v5227 = vld [vmem:[%s284 + $0xf8] sm:$0xff]
          %v5228 = vld [vmem:[%s284 + $0x100] sm:$0xff]
          %v5229 = vld [vmem:[%s284 + $0x108] sm:$0xff]
          %v5230 = vld [vmem:[%s284 + $0x110] sm:$0xff]
          %v5231 = vld [vmem:[%s284 + $0x118] sm:$0xff]
          %v5232 = vld [vmem:[%s284 + $0x120] sm:$0xff]
          %v5233 = vld [vmem:[%s284 + $0x128] sm:$0xff]
          %v5234 = vld [vmem:[%s284 + $0x130] sm:$0xff]
          %v5235 = vld [vmem:[%s284 + $0x138] sm:$0xff]
          %v5236 = vld [vmem:[%s284 + $0x140] sm:$0xff]
          %v5237 = vld [vmem:[%s284 + $0x148] sm:$0xff]
          %v5238 = vld [vmem:[%s284 + $0x150] sm:$0xff]
          %v5239 = vld [vmem:[%s284 + $0x158] sm:$0xff]
          %v5240 = vld [vmem:[%s284 + $0x160] sm:$0xff]
          %v5241 = vld [vmem:[%s284 + $0x168] sm:$0xff]
          %v5242 = vld [vmem:[%s284 + $0x170] sm:$0xff]
          %v5243 = vld [vmem:[%s284 + $0x178] sm:$0xff]
          %v5244 = vld [vmem:[%s284 + $0x180] sm:$0xff]
          %v5245 = vld [vmem:[%s284 + $0x188] sm:$0xff]
          %v5246 = vld [vmem:[%s284 + $0x190] sm:$0xff]
          %v5247 = vld [vmem:[%s284 + $0x198] sm:$0xff]
          %v5248 = vld [vmem:[%s284 + $0x1a0] sm:$0xff]
          %v5249 = vld [vmem:[%s284 + $0x1a8] sm:$0xff]
          %v5250 = vld [vmem:[%s284 + $0x1b0] sm:$0xff]
          %v5251 = vld [vmem:[%s284 + $0x1b8] sm:$0xff]
          %v5252 = vld [vmem:[%s284 + $0x1c0] sm:$0xff]
          %v5253 = vld [vmem:[%s284 + $0x1c8] sm:$0xff]
          %v5254 = vld [vmem:[%s284 + $0x1d0] sm:$0xff]
          %v5255 = vld [vmem:[%s284 + $0x1d8] sm:$0xff]
          %v5256 = vld [vmem:[%s284 + $0x1e0] sm:$0xff]
          %v5257 = vld [vmem:[%s284 + $0x1e8] sm:$0xff]
          %v5258 = vld [vmem:[%s284 + $0x1f0] sm:$0xff]
          %v5259 = vld [vmem:[%s284 + $0x1f8] sm:$0xff]
          %v5260 = vld [vmem:[%s284 + $0x200] sm:$0xff]
          %v5261 = vld [vmem:[%s284 + $0x208] sm:$0xff]
          %v5262 = vld [vmem:[%s284 + $0x210] sm:$0xff]
          %v5263 = vld [vmem:[%s284 + $0x218] sm:$0xff]
          %v5264 = vld [vmem:[%s284 + $0x220] sm:$0xff]
          %v5265 = vld [vmem:[%s284 + $0x228] sm:$0xff]
          %v5266 = vld [vmem:[%s284 + $0x230] sm:$0xff]
          %v5267 = vld [vmem:[%s284 + $0x238] sm:$0xff]
          %v5268 = vld [vmem:[%s284 + $0x240] sm:$0xff]
          %v5269 = vld [vmem:[%s284 + $0x248] sm:$0xff]
          %v5270 = vld [vmem:[%s284 + $0x250] sm:$0xff]
          %v5271 = vld [vmem:[%s284 + $0x258] sm:$0xff]
          %v5272 = vld [vmem:[%s284 + $0x260] sm:$0xff]
          %v5273 = vld [vmem:[%s284 + $0x268] sm:$0xff]
          %v5274 = vld [vmem:[%s284 + $0x270] sm:$0xff]
          %v5275 = vld [vmem:[%s284 + $0x278] sm:$0xff]
          %v5276 = vld [vmem:[%s284 + $0x280] sm:$0xff]
          %v5277 = vld [vmem:[%s284 + $0x288] sm:$0xff]
          %v5278 = vld [vmem:[%s284 + $0x290] sm:$0xff]
          %v5279 = vld [vmem:[%s284 + $0x298] sm:$0xff]
          %v5280 = vld [vmem:[%s284 + $0x2a0] sm:$0xff]
          %v5281 = vld [vmem:[%s284 + $0x2a8] sm:$0xff]
          %v5282 = vld [vmem:[%s284 + $0x2b0] sm:$0xff]
          %v5283 = vld [vmem:[%s284 + $0x2b8] sm:$0xff]
          %v5284 = vld [vmem:[%s284 + $0x2c0] sm:$0xff]
          %v5285 = vld [vmem:[%s284 + $0x2c8] sm:$0xff]
          %v5286 = vld [vmem:[%s284 + $0x2d0] sm:$0xff]
          %v5287 = vld [vmem:[%s284 + $0x2d8] sm:$0xff]
          %v5288 = vld [vmem:[%s284 + $0x2e0] sm:$0xff]
          %v5289 = vld [vmem:[%s284 + $0x2e8] sm:$0xff]
          %v5290 = vld [vmem:[%s284 + $0x2f0] sm:$0xff]
          %v5291 = vld [vmem:[%s284 + $0x2f8] sm:$0xff]
          %v5292 = vld [vmem:[%s284 + $0x300] sm:$0xff]
          %v5293 = vld [vmem:[%s284 + $0x308] sm:$0xff]
          %v5294 = vld [vmem:[%s284 + $0x310] sm:$0xff]
          %v5295 = vld [vmem:[%s284 + $0x318] sm:$0xff]
          %v5296 = vld [vmem:[%s284 + $0x320] sm:$0xff]
          %v5297 = vld [vmem:[%s284 + $0x328] sm:$0xff]
          %v5298 = vld [vmem:[%s284 + $0x330] sm:$0xff]
          %v5299 = vld [vmem:[%s284 + $0x338] sm:$0xff]
          %v5300 = vld [vmem:[%s284 + $0x340] sm:$0xff]
          %v5301 = vld [vmem:[%s284 + $0x348] sm:$0xff]
          %v5302 = vld [vmem:[%s284 + $0x350] sm:$0xff]
          %v5303 = vld [vmem:[%s284 + $0x358] sm:$0xff]
          %v5304 = vld [vmem:[%s284 + $0x360] sm:$0xff]
          %v5305 = vld [vmem:[%s284 + $0x368] sm:$0xff]
          %v5306 = vld [vmem:[%s284 + $0x370] sm:$0xff]
          %v5307 = vld [vmem:[%s284 + $0x378] sm:$0xff]
          %v5308 = vld [vmem:[%s284 + $0x380] sm:$0xff]
          %v5309 = vld [vmem:[%s284 + $0x388] sm:$0xff]
          %v5310 = vld [vmem:[%s284 + $0x390] sm:$0xff]
          %v5311 = vld [vmem:[%s284 + $0x398] sm:$0xff]
          %v5312 = vld [vmem:[%s284 + $0x3a0] sm:$0xff]
          %v5313 = vld [vmem:[%s284 + $0x3a8] sm:$0xff]
          %v5314 = vld [vmem:[%s284 + $0x3b0] sm:$0xff]
          %v5315 = vld [vmem:[%s284 + $0x3b8] sm:$0xff]
          %v5316 = vld [vmem:[%s284 + $0x3c0] sm:$0xff]
          %v5317 = vld [vmem:[%s284 + $0x3c8] sm:$0xff]
          %v5318 = vld [vmem:[%s284 + $0x3d0] sm:$0xff]
          %v5319 = vld [vmem:[%s284 + $0x3d8] sm:$0xff]
          %v5320 = vld [vmem:[%s284 + $0x3e0] sm:$0xff]
          %v5321 = vld [vmem:[%s284 + $0x3e8] sm:$0xff]
          %v5322 = vld [vmem:[%s284 + $0x3f0] sm:$0xff]
          %v5323 = vld [vmem:[%s284 + $0x3f8] sm:$0xff]
          %v5324 = vld [vmem:[#allocation7] sm:$0xf]
          %v5326 = vperm.slane %v5324, 0
          %v5327 = vperm.slane %v5324, 1
          %v5328 = vperm.slane %v5324, 2
          %v5329 = vperm.slane %v5324, 3
          %v5334 = vadd.f32 %v5196, %v5326
          %v5335 = vadd.f32 %v5197, %v5327
          %v5336 = vadd.f32 %v5198, %v5328
          %v5337 = vadd.f32 %v5199, %v5329
          %v5338 = vadd.f32 %v5200, %v5326
          %v5339 = vadd.f32 %v5201, %v5327
          %v5340 = vadd.f32 %v5202, %v5328
          %v5341 = vadd.f32 %v5203, %v5329
          %v5342 = vadd.f32 %v5204, %v5326
          %v5343 = vadd.f32 %v5205, %v5327
          %v5344 = vadd.f32 %v5206, %v5328
          %v5345 = vadd.f32 %v5207, %v5329
          %v5346 = vadd.f32 %v5208, %v5326
          %v5347 = vadd.f32 %v5209, %v5327
          %v5348 = vadd.f32 %v5210, %v5328
          %v5349 = vadd.f32 %v5211, %v5329
          %v5350 = vadd.f32 %v5212, %v5326
          %v5351 = vadd.f32 %v5213, %v5327
          %v5352 = vadd.f32 %v5214, %v5328
          %v5353 = vadd.f32 %v5215, %v5329
          %v5354 = vadd.f32 %v5216, %v5326
          %v5355 = vadd.f32 %v5217, %v5327
          %v5356 = vadd.f32 %v5218, %v5328
          %v5357 = vadd.f32 %v5219, %v5329
          %v5358 = vadd.f32 %v5220, %v5326
          %v5359 = vadd.f32 %v5221, %v5327
          %v5360 = vadd.f32 %v5222, %v5328
          %v5361 = vadd.f32 %v5223, %v5329
          %v5362 = vadd.f32 %v5224, %v5326
          %v5363 = vadd.f32 %v5225, %v5327
          %v5364 = vadd.f32 %v5226, %v5328
          %v5365 = vadd.f32 %v5227, %v5329
          %v5366 = vadd.f32 %v5228, %v5326
          %v5367 = vadd.f32 %v5229, %v5327
          %v5368 = vadd.f32 %v5230, %v5328
          %v5369 = vadd.f32 %v5231, %v5329
          %v5370 = vadd.f32 %v5232, %v5326
          %v5371 = vadd.f32 %v5233, %v5327
          %v5372 = vadd.f32 %v5234, %v5328
          %v5373 = vadd.f32 %v5235, %v5329
          %v5374 = vadd.f32 %v5236, %v5326
          %v5375 = vadd.f32 %v5237, %v5327
          %v5376 = vadd.f32 %v5238, %v5328
          %v5377 = vadd.f32 %v5239, %v5329
          %v5378 = vadd.f32 %v5240, %v5326
          %v5379 = vadd.f32 %v5241, %v5327
          %v5380 = vadd.f32 %v5242, %v5328
          %v5381 = vadd.f32 %v5243, %v5329
          %v5382 = vadd.f32 %v5244, %v5326
          %v5383 = vadd.f32 %v5245, %v5327
          %v5384 = vadd.f32 %v5246, %v5328
          %v5385 = vadd.f32 %v5247, %v5329
          %v5386 = vadd.f32 %v5248, %v5326
          %v5387 = vadd.f32 %v5249, %v5327
          %v5388 = vadd.f32 %v5250, %v5328
          %v5389 = vadd.f32 %v5251, %v5329
          %v5390 = vadd.f32 %v5252, %v5326
          %v5391 = vadd.f32 %v5253, %v5327
          %v5392 = vadd.f32 %v5254, %v5328
          %v5393 = vadd.f32 %v5255, %v5329
          %v5394 = vadd.f32 %v5256, %v5326
          %v5395 = vadd.f32 %v5257, %v5327
          %v5396 = vadd.f32 %v5258, %v5328
          %v5397 = vadd.f32 %v5259, %v5329
          %v5398 = vadd.f32 %v5260, %v5326
          %v5399 = vadd.f32 %v5261, %v5327
          %v5400 = vadd.f32 %v5262, %v5328
          %v5401 = vadd.f32 %v5263, %v5329
          %v5402 = vadd.f32 %v5264, %v5326
          %v5403 = vadd.f32 %v5265, %v5327
          %v5404 = vadd.f32 %v5266, %v5328
          %v5405 = vadd.f32 %v5267, %v5329
          %v5406 = vadd.f32 %v5268, %v5326
          %v5407 = vadd.f32 %v5269, %v5327
          %v5408 = vadd.f32 %v5270, %v5328
          %v5409 = vadd.f32 %v5271, %v5329
          %v5410 = vadd.f32 %v5272, %v5326
          %v5411 = vadd.f32 %v5273, %v5327
          %v5412 = vadd.f32 %v5274, %v5328
          %v5413 = vadd.f32 %v5275, %v5329
          %v5414 = vadd.f32 %v5276, %v5326
          %v5415 = vadd.f32 %v5277, %v5327
          %v5416 = vadd.f32 %v5278, %v5328
          %v5417 = vadd.f32 %v5279, %v5329
          %v5418 = vadd.f32 %v5280, %v5326
          %v5419 = vadd.f32 %v5281, %v5327
          %v5420 = vadd.f32 %v5282, %v5328
          %v5421 = vadd.f32 %v5283, %v5329
          %v5422 = vadd.f32 %v5284, %v5326
          %v5423 = vadd.f32 %v5285, %v5327
          %v5424 = vadd.f32 %v5286, %v5328
          %v5425 = vadd.f32 %v5287, %v5329
          %v5426 = vadd.f32 %v5288, %v5326
          %v5427 = vadd.f32 %v5289, %v5327
          %v5428 = vadd.f32 %v5290, %v5328
          %v5429 = vadd.f32 %v5291, %v5329
          %v5430 = vadd.f32 %v5292, %v5326
          %v5431 = vadd.f32 %v5293, %v5327
          %v5432 = vadd.f32 %v5294, %v5328
          %v5433 = vadd.f32 %v5295, %v5329
          %v5434 = vadd.f32 %v5296, %v5326
          %v5435 = vadd.f32 %v5297, %v5327
          %v5436 = vadd.f32 %v5298, %v5328
          %v5437 = vadd.f32 %v5299, %v5329
          %v5438 = vadd.f32 %v5300, %v5326
          %v5439 = vadd.f32 %v5301, %v5327
          %v5440 = vadd.f32 %v5302, %v5328
          %v5441 = vadd.f32 %v5303, %v5329
          %v5442 = vadd.f32 %v5304, %v5326
          %v5443 = vadd.f32 %v5305, %v5327
          %v5444 = vadd.f32 %v5306, %v5328
          %v5445 = vadd.f32 %v5307, %v5329
          %v5446 = vadd.f32 %v5308, %v5326
          %v5447 = vadd.f32 %v5309, %v5327
          %v5448 = vadd.f32 %v5310, %v5328
          %v5449 = vadd.f32 %v5311, %v5329
          %v5450 = vadd.f32 %v5312, %v5326
          %v5451 = vadd.f32 %v5313, %v5327
          %v5452 = vadd.f32 %v5314, %v5328
          %v5453 = vadd.f32 %v5315, %v5329
          %v5454 = vadd.f32 %v5316, %v5326
          %v5455 = vadd.f32 %v5317, %v5327
          %v5456 = vadd.f32 %v5318, %v5328
          %v5457 = vadd.f32 %v5319, %v5329
          %v5458 = vadd.f32 %v5320, %v5326
          %v5459 = vadd.f32 %v5321, %v5327
          %v5460 = vadd.f32 %v5322, %v5328
          %v5461 = vadd.f32 %v5323, %v5329
          %v5462 = vmax.f32 %v5334, 0.1217971
          %v5463 = vmax.f32 %v5335, 0.1217971
          %v5464 = vmax.f32 %v5336, 0.1217971
          %v5465 = vmax.f32 %v5337, 0.1217971
          %v5466 = vmax.f32 %v5338, 0.1217971
          %v5467 = vmax.f32 %v5339, 0.1217971
          %v5468 = vmax.f32 %v5340, 0.1217971
          %v5469 = vmax.f32 %v5341, 0.1217971
          %v5470 = vmax.f32 %v5342, 0.1217971
          %v5471 = vmax.f32 %v5343, 0.1217971
          %v5472 = vmax.f32 %v5344, 0.1217971
          %v5473 = vmax.f32 %v5345, 0.1217971
          %v5474 = vmax.f32 %v5346, 0.1217971
          %v5475 = vmax.f32 %v5347, 0.1217971
          %v5476 = vmax.f32 %v5348, 0.1217971
          %v5477 = vmax.f32 %v5349, 0.1217971
          %v5478 = vmax.f32 %v5350, 0.1217971
          %v5479 = vmax.f32 %v5351, 0.1217971
          %v5480 = vmax.f32 %v5352, 0.1217971
          %v5481 = vmax.f32 %v5353, 0.1217971
          %v5482 = vmax.f32 %v5354, 0.1217971
          %v5483 = vmax.f32 %v5355, 0.1217971
          %v5484 = vmax.f32 %v5356, 0.1217971
          %v5485 = vmax.f32 %v5357, 0.1217971
          %v5486 = vmax.f32 %v5358, 0.1217971
          %v5487 = vmax.f32 %v5359, 0.1217971
          %v5488 = vmax.f32 %v5360, 0.1217971
          %v5489 = vmax.f32 %v5361, 0.1217971
          %v5490 = vmax.f32 %v5362, 0.1217971
          %v5491 = vmax.f32 %v5363, 0.1217971
          %v5492 = vmax.f32 %v5364, 0.1217971
          %v5493 = vmax.f32 %v5365, 0.1217971
          %v5494 = vmax.f32 %v5366, 0.1217971
          %v5495 = vmax.f32 %v5367, 0.1217971
          %v5496 = vmax.f32 %v5368, 0.1217971
          %v5497 = vmax.f32 %v5369, 0.1217971
          %v5498 = vmax.f32 %v5370, 0.1217971
          %v5499 = vmax.f32 %v5371, 0.1217971
          %v5500 = vmax.f32 %v5372, 0.1217971
          %v5501 = vmax.f32 %v5373, 0.1217971
          %v5502 = vmax.f32 %v5374, 0.1217971
          %v5503 = vmax.f32 %v5375, 0.1217971
          %v5504 = vmax.f32 %v5376, 0.1217971
          %v5505 = vmax.f32 %v5377, 0.1217971
          %v5506 = vmax.f32 %v5378, 0.1217971
          %v5507 = vmax.f32 %v5379, 0.1217971
          %v5508 = vmax.f32 %v5380, 0.1217971
          %v5509 = vmax.f32 %v5381, 0.1217971
          %v5510 = vmax.f32 %v5382, 0.1217971
          %v5511 = vmax.f32 %v5383, 0.1217971
          %v5512 = vmax.f32 %v5384, 0.1217971
          %v5513 = vmax.f32 %v5385, 0.1217971
          %v5514 = vmax.f32 %v5386, 0.1217971
          %v5515 = vmax.f32 %v5387, 0.1217971
          %v5516 = vmax.f32 %v5388, 0.1217971
          %v5517 = vmax.f32 %v5389, 0.1217971
          %v5518 = vmax.f32 %v5390, 0.1217971
          %v5519 = vmax.f32 %v5391, 0.1217971
          %v5520 = vmax.f32 %v5392, 0.1217971
          %v5521 = vmax.f32 %v5393, 0.1217971
          %v5522 = vmax.f32 %v5394, 0.1217971
          %v5523 = vmax.f32 %v5395, 0.1217971
          %v5524 = vmax.f32 %v5396, 0.1217971
          %v5525 = vmax.f32 %v5397, 0.1217971
          %v5526 = vmax.f32 %v5398, 0.1217971
          %v5527 = vmax.f32 %v5399, 0.1217971
          %v5528 = vmax.f32 %v5400, 0.1217971
          %v5529 = vmax.f32 %v5401, 0.1217971
          %v5530 = vmax.f32 %v5402, 0.1217971
          %v5531 = vmax.f32 %v5403, 0.1217971
          %v5532 = vmax.f32 %v5404, 0.1217971
          %v5533 = vmax.f32 %v5405, 0.1217971
          %v5534 = vmax.f32 %v5406, 0.1217971
          %v5535 = vmax.f32 %v5407, 0.1217971
          %v5536 = vmax.f32 %v5408, 0.1217971
          %v5537 = vmax.f32 %v5409, 0.1217971
          %v5538 = vmax.f32 %v5410, 0.1217971
          %v5539 = vmax.f32 %v5411, 0.1217971
          %v5540 = vmax.f32 %v5412, 0.1217971
          %v5541 = vmax.f32 %v5413, 0.1217971
          %v5542 = vmax.f32 %v5414, 0.1217971
          %v5543 = vmax.f32 %v5415, 0.1217971
          %v5544 = vmax.f32 %v5416, 0.1217971
          %v5545 = vmax.f32 %v5417, 0.1217971
          %v5546 = vmax.f32 %v5418, 0.1217971
          %v5547 = vmax.f32 %v5419, 0.1217971
          %v5548 = vmax.f32 %v5420, 0.1217971
          %v5549 = vmax.f32 %v5421, 0.1217971
          %v5550 = vmax.f32 %v5422, 0.1217971
          %v5551 = vmax.f32 %v5423, 0.1217971
          %v5552 = vmax.f32 %v5424, 0.1217971
          %v5553 = vmax.f32 %v5425, 0.1217971
          %v5554 = vmax.f32 %v5426, 0.1217971
          %v5555 = vmax.f32 %v5427, 0.1217971
          %v5556 = vmax.f32 %v5428, 0.1217971
          %v5557 = vmax.f32 %v5429, 0.1217971
          %v5558 = vmax.f32 %v5430, 0.1217971
          %v5559 = vmax.f32 %v5431, 0.1217971
          %v5560 = vmax.f32 %v5432, 0.1217971
          %v5561 = vmax.f32 %v5433, 0.1217971
          %v5562 = vmax.f32 %v5434, 0.1217971
          %v5563 = vmax.f32 %v5435, 0.1217971
          %v5564 = vmax.f32 %v5436, 0.1217971
          %v5565 = vmax.f32 %v5437, 0.1217971
          %v5566 = vmax.f32 %v5438, 0.1217971
          %v5567 = vmax.f32 %v5439, 0.1217971
          %v5568 = vmax.f32 %v5440, 0.1217971
          %v5569 = vmax.f32 %v5441, 0.1217971
          %v5570 = vmax.f32 %v5442, 0.1217971
          %v5571 = vmax.f32 %v5443, 0.1217971
          %v5572 = vmax.f32 %v5444, 0.1217971
          %v5573 = vmax.f32 %v5445, 0.1217971
          %v5574 = vmax.f32 %v5446, 0.1217971
          %v5575 = vmax.f32 %v5447, 0.1217971
          %v5576 = vmax.f32 %v5448, 0.1217971
          %v5577 = vmax.f32 %v5449, 0.1217971
          %v5578 = vmax.f32 %v5450, 0.1217971
          %v5579 = vmax.f32 %v5451, 0.1217971
          %v5580 = vmax.f32 %v5452, 0.1217971
          %v5581 = vmax.f32 %v5453, 0.1217971
          %v5582 = vmax.f32 %v5454, 0.1217971
          %v5583 = vmax.f32 %v5455, 0.1217971
          %v5584 = vmax.f32 %v5456, 0.1217971
          %v5585 = vmax.f32 %v5457, 0.1217971
          %v5586 = vmax.f32 %v5458, 0.1217971
          %v5587 = vmax.f32 %v5459, 0.1217971
          %v5588 = vmax.f32 %v5460, 0.1217971
          %v5589 = vmax.f32 %v5461, 0.1217971
          %v5590 = vmin.f32 %v5462, 1.202422
          %v5591 = vmin.f32 %v5463, 1.202422
          %v5592 = vmin.f32 %v5464, 1.202422
          %v5593 = vmin.f32 %v5465, 1.202422
          %v5594 = vmin.f32 %v5466, 1.202422
          %v5595 = vmin.f32 %v5467, 1.202422
          %v5596 = vmin.f32 %v5468, 1.202422
          %v5597 = vmin.f32 %v5469, 1.202422
          %v5598 = vmin.f32 %v5470, 1.202422
          %v5599 = vmin.f32 %v5471, 1.202422
          %v5600 = vmin.f32 %v5472, 1.202422
          %v5601 = vmin.f32 %v5473, 1.202422
          %v5602 = vmin.f32 %v5474, 1.202422
          %v5603 = vmin.f32 %v5475, 1.202422
          %v5604 = vmin.f32 %v5476, 1.202422
          %v5605 = vmin.f32 %v5477, 1.202422
          %v5606 = vmin.f32 %v5478, 1.202422
          %v5607 = vmin.f32 %v5479, 1.202422
          %v5608 = vmin.f32 %v5480, 1.202422
          %v5609 = vmin.f32 %v5481, 1.202422
          %v5610 = vmin.f32 %v5482, 1.202422
          %v5611 = vmin.f32 %v5483, 1.202422
          %v5612 = vmin.f32 %v5484, 1.202422
          %v5613 = vmin.f32 %v5485, 1.202422
          %v5614 = vmin.f32 %v5486, 1.202422
          %v5615 = vmin.f32 %v5487, 1.202422
          %v5616 = vmin.f32 %v5488, 1.202422
          %v5617 = vmin.f32 %v5489, 1.202422
          %v5618 = vmin.f32 %v5490, 1.202422
          %v5619 = vmin.f32 %v5491, 1.202422
          %v5620 = vmin.f32 %v5492, 1.202422
          %v5621 = vmin.f32 %v5493, 1.202422
          %v5622 = vmin.f32 %v5494, 1.202422
          %v5623 = vmin.f32 %v5495, 1.202422
          %v5624 = vmin.f32 %v5496, 1.202422
          %v5625 = vmin.f32 %v5497, 1.202422
          %v5626 = vmin.f32 %v5498, 1.202422
          %v5627 = vmin.f32 %v5499, 1.202422
          %v5628 = vmin.f32 %v5500, 1.202422
          %v5629 = vmin.f32 %v5501, 1.202422
          %v5630 = vmin.f32 %v5502, 1.202422
          %v5631 = vmin.f32 %v5503, 1.202422
          %v5632 = vmin.f32 %v5504, 1.202422
          %v5633 = vmin.f32 %v5505, 1.202422
          %v5634 = vmin.f32 %v5506, 1.202422
          %v5635 = vmin.f32 %v5507, 1.202422
          %v5636 = vmin.f32 %v5508, 1.202422
          %v5637 = vmin.f32 %v5509, 1.202422
          %v5638 = vmin.f32 %v5510, 1.202422
          %v5639 = vmin.f32 %v5511, 1.202422
          %v5640 = vmin.f32 %v5512, 1.202422
          %v5641 = vmin.f32 %v5513, 1.202422
          %v5642 = vmin.f32 %v5514, 1.202422
          %v5643 = vmin.f32 %v5515, 1.202422
          %v5644 = vmin.f32 %v5516, 1.202422
          %v5645 = vmin.f32 %v5517, 1.202422
          %v5646 = vmin.f32 %v5518, 1.202422
          %v5647 = vmin.f32 %v5519, 1.202422
          %v5648 = vmin.f32 %v5520, 1.202422
          %v5649 = vmin.f32 %v5521, 1.202422
          %v5650 = vmin.f32 %v5522, 1.202422
          %v5651 = vmin.f32 %v5523, 1.202422
          %v5652 = vmin.f32 %v5524, 1.202422
          %v5653 = vmin.f32 %v5525, 1.202422
          %v5654 = vmin.f32 %v5526, 1.202422
          %v5655 = vmin.f32 %v5527, 1.202422
          %v5656 = vmin.f32 %v5528, 1.202422
          %v5657 = vmin.f32 %v5529, 1.202422
          %v5658 = vmin.f32 %v5530, 1.202422
          %v5659 = vmin.f32 %v5531, 1.202422
          %v5660 = vmin.f32 %v5532, 1.202422
          %v5661 = vmin.f32 %v5533, 1.202422
          %v5662 = vmin.f32 %v5534, 1.202422
          %v5663 = vmin.f32 %v5535, 1.202422
          %v5664 = vmin.f32 %v5536, 1.202422
          %v5665 = vmin.f32 %v5537, 1.202422
          %v5666 = vmin.f32 %v5538, 1.202422
          %v5667 = vmin.f32 %v5539, 1.202422
          %v5668 = vmin.f32 %v5540, 1.202422
          %v5669 = vmin.f32 %v5541, 1.202422
          %v5670 = vmin.f32 %v5542, 1.202422
          %v5671 = vmin.f32 %v5543, 1.202422
          %v5672 = vmin.f32 %v5544, 1.202422
          %v5673 = vmin.f32 %v5545, 1.202422
          %v5674 = vmin.f32 %v5546, 1.202422
          %v5675 = vmin.f32 %v5547, 1.202422
          %v5676 = vmin.f32 %v5548, 1.202422
          %v5677 = vmin.f32 %v5549, 1.202422
          %v5678 = vmin.f32 %v5550, 1.202422
          %v5679 = vmin.f32 %v5551, 1.202422
          %v5680 = vmin.f32 %v5552, 1.202422
          %v5681 = vmin.f32 %v5553, 1.202422
          %v5682 = vmin.f32 %v5554, 1.202422
          %v5683 = vmin.f32 %v5555, 1.202422
          %v5684 = vmin.f32 %v5556, 1.202422
          %v5685 = vmin.f32 %v5557, 1.202422
          %v5686 = vmin.f32 %v5558, 1.202422
          %v5687 = vmin.f32 %v5559, 1.202422
          %v5688 = vmin.f32 %v5560, 1.202422
          %v5689 = vmin.f32 %v5561, 1.202422
          %v5690 = vmin.f32 %v5562, 1.202422
          %v5691 = vmin.f32 %v5563, 1.202422
          %v5692 = vmin.f32 %v5564, 1.202422
          %v5693 = vmin.f32 %v5565, 1.202422
          %v5694 = vmin.f32 %v5566, 1.202422
          %v5695 = vmin.f32 %v5567, 1.202422
          %v5696 = vmin.f32 %v5568, 1.202422
          %v5697 = vmin.f32 %v5569, 1.202422
          %v5698 = vmin.f32 %v5570, 1.202422
          %v5699 = vmin.f32 %v5571, 1.202422
          %v5700 = vmin.f32 %v5572, 1.202422
          %v5701 = vmin.f32 %v5573, 1.202422
          %v5702 = vmin.f32 %v5574, 1.202422
          %v5703 = vmin.f32 %v5575, 1.202422
          %v5704 = vmin.f32 %v5576, 1.202422
          %v5705 = vmin.f32 %v5577, 1.202422
          %v5706 = vmin.f32 %v5578, 1.202422
          %v5707 = vmin.f32 %v5579, 1.202422
          %v5708 = vmin.f32 %v5580, 1.202422
          %v5709 = vmin.f32 %v5581, 1.202422
          %v5710 = vmin.f32 %v5582, 1.202422
          %v5711 = vmin.f32 %v5583, 1.202422
          %v5712 = vmin.f32 %v5584, 1.202422
          %v5713 = vmin.f32 %v5585, 1.202422
          %v5714 = vmin.f32 %v5586, 1.202422
          %v5715 = vmin.f32 %v5587, 1.202422
          %v5716 = vmin.f32 %v5588, 1.202422
          %v5717 = vmin.f32 %v5589, 1.202422
          %5718 = vst [vmem:[%s284] sm:$0xff] %v5590
          %5719 = vst [vmem:[%s284 + $0x8] sm:$0xff] %v5591
          %5720 = vst [vmem:[%s284 + $0x10] sm:$0xff] %v5592
          %5721 = vst [vmem:[%s284 + $0x18] sm:$0xff] %v5593
          %5722 = vst [vmem:[%s284 + $0x20] sm:$0xff] %v5594
          %5723 = vst [vmem:[%s284 + $0x28] sm:$0xff] %v5595
          %5724 = vst [vmem:[%s284 + $0x30] sm:$0xff] %v5596
          %5725 = vst [vmem:[%s284 + $0x38] sm:$0xff] %v5597
          %5726 = vst [vmem:[%s284 + $0x40] sm:$0xff] %v5598
          %5727 = vst [vmem:[%s284 + $0x48] sm:$0xff] %v5599
          %5728 = vst [vmem:[%s284 + $0x50] sm:$0xff] %v5600
          %5729 = vst [vmem:[%s284 + $0x58] sm:$0xff] %v5601
          %5730 = vst [vmem:[%s284 + $0x60] sm:$0xff] %v5602
          %5731 = vst [vmem:[%s284 + $0x68] sm:$0xff] %v5603
          %5732 = vst [vmem:[%s284 + $0x70] sm:$0xff] %v5604
          %5733 = vst [vmem:[%s284 + $0x78] sm:$0xff] %v5605
          %5734 = vst [vmem:[%s284 + $0x80] sm:$0xff] %v5606
          %5735 = vst [vmem:[%s284 + $0x88] sm:$0xff] %v5607
          %5736 = vst [vmem:[%s284 + $0x90] sm:$0xff] %v5608
          %5737 = vst [vmem:[%s284 + $0x98] sm:$0xff] %v5609
          %5738 = vst [vmem:[%s284 + $0xa0] sm:$0xff] %v5610
          %5739 = vst [vmem:[%s284 + $0xa8] sm:$0xff] %v5611
          %5740 = vst [vmem:[%s284 + $0xb0] sm:$0xff] %v5612
          %5741 = vst [vmem:[%s284 + $0xb8] sm:$0xff] %v5613
          %5742 = vst [vmem:[%s284 + $0xc0] sm:$0xff] %v5614
          %5743 = vst [vmem:[%s284 + $0xc8] sm:$0xff] %v5615
          %5744 = vst [vmem:[%s284 + $0xd0] sm:$0xff] %v5616
          %5745 = vst [vmem:[%s284 + $0xd8] sm:$0xff] %v5617
          %5746 = vst [vmem:[%s284 + $0xe0] sm:$0xff] %v5618
          %5747 = vst [vmem:[%s284 + $0xe8] sm:$0xff] %v5619
          %5748 = vst [vmem:[%s284 + $0xf0] sm:$0xff] %v5620
          %5749 = vst [vmem:[%s284 + $0xf8] sm:$0xff] %v5621
          %5750 = vst [vmem:[%s284 + $0x100] sm:$0xff] %v5622
          %5751 = vst [vmem:[%s284 + $0x108] sm:$0xff] %v5623
          %5752 = vst [vmem:[%s284 + $0x110] sm:$0xff] %v5624
          %5753 = vst [vmem:[%s284 + $0x118] sm:$0xff] %v5625
          %5754 = vst [vmem:[%s284 + $0x120] sm:$0xff] %v5626
          %5755 = vst [vmem:[%s284 + $0x128] sm:$0xff] %v5627
          %5756 = vst [vmem:[%s284 + $0x130] sm:$0xff] %v5628
          %5757 = vst [vmem:[%s284 + $0x138] sm:$0xff] %v5629
          %5758 = vst [vmem:[%s284 + $0x140] sm:$0xff] %v5630
          %5759 = vst [vmem:[%s284 + $0x148] sm:$0xff] %v5631
          %5760 = vst [vmem:[%s284 + $0x150] sm:$0xff] %v5632
          %5761 = vst [vmem:[%s284 + $0x158] sm:$0xff] %v5633
          %5762 = vst [vmem:[%s284 + $0x160] sm:$0xff] %v5634
          %5763 = vst [vmem:[%s284 + $0x168] sm:$0xff] %v5635
          %5764 = vst [vmem:[%s284 + $0x170] sm:$0xff] %v5636
          %5765 = vst [vmem:[%s284 + $0x178] sm:$0xff] %v5637
          %5766 = vst [vmem:[%s284 + $0x180] sm:$0xff] %v5638
          %5767 = vst [vmem:[%s284 + $0x188] sm:$0xff] %v5639
          %5768 = vst [vmem:[%s284 + $0x190] sm:$0xff] %v5640
          %5769 = vst [vmem:[%s284 + $0x198] sm:$0xff] %v5641
          %5770 = vst [vmem:[%s284 + $0x1a0] sm:$0xff] %v5642
          %5771 = vst [vmem:[%s284 + $0x1a8] sm:$0xff] %v5643
          %5772 = vst [vmem:[%s284 + $0x1b0] sm:$0xff] %v5644
          %5773 = vst [vmem:[%s284 + $0x1b8] sm:$0xff] %v5645
          %5774 = vst [vmem:[%s284 + $0x1c0] sm:$0xff] %v5646
          %5775 = vst [vmem:[%s284 + $0x1c8] sm:$0xff] %v5647
          %5776 = vst [vmem:[%s284 + $0x1d0] sm:$0xff] %v5648
          %5777 = vst [vmem:[%s284 + $0x1d8] sm:$0xff] %v5649
          %5778 = vst [vmem:[%s284 + $0x1e0] sm:$0xff] %v5650
          %5779 = vst [vmem:[%s284 + $0x1e8] sm:$0xff] %v5651
          %5780 = vst [vmem:[%s284 + $0x1f0] sm:$0xff] %v5652
          %5781 = vst [vmem:[%s284 + $0x1f8] sm:$0xff] %v5653
          %5782 = vst [vmem:[%s284 + $0x200] sm:$0xff] %v5654
          %5783 = vst [vmem:[%s284 + $0x208] sm:$0xff] %v5655
          %5784 = vst [vmem:[%s284 + $0x210] sm:$0xff] %v5656
          %5785 = vst [vmem:[%s284 + $0x218] sm:$0xff] %v5657
          %5786 = vst [vmem:[%s284 + $0x220] sm:$0xff] %v5658
          %5787 = vst [vmem:[%s284 + $0x228] sm:$0xff] %v5659
          %5788 = vst [vmem:[%s284 + $0x230] sm:$0xff] %v5660
          %5789 = vst [vmem:[%s284 + $0x238] sm:$0xff] %v5661
          %5790 = vst [vmem:[%s284 + $0x240] sm:$0xff] %v5662
          %5791 = vst [vmem:[%s284 + $0x248] sm:$0xff] %v5663
          %5792 = vst [vmem:[%s284 + $0x250] sm:$0xff] %v5664
          %5793 = vst [vmem:[%s284 + $0x258] sm:$0xff] %v5665
          %5794 = vst [vmem:[%s284 + $0x260] sm:$0xff] %v5666
          %5795 = vst [vmem:[%s284 + $0x268] sm:$0xff] %v5667
          %5796 = vst [vmem:[%s284 + $0x270] sm:$0xff] %v5668
          %5797 = vst [vmem:[%s284 + $0x278] sm:$0xff] %v5669
          %5798 = vst [vmem:[%s284 + $0x280] sm:$0xff] %v5670
          %5799 = vst [vmem:[%s284 + $0x288] sm:$0xff] %v5671
          %5800 = vst [vmem:[%s284 + $0x290] sm:$0xff] %v5672
          %5801 = vst [vmem:[%s284 + $0x298] sm:$0xff] %v5673
          %5802 = vst [vmem:[%s284 + $0x2a0] sm:$0xff] %v5674
          %5803 = vst [vmem:[%s284 + $0x2a8] sm:$0xff] %v5675
          %5804 = vst [vmem:[%s284 + $0x2b0] sm:$0xff] %v5676
          %5805 = vst [vmem:[%s284 + $0x2b8] sm:$0xff] %v5677
          %5806 = vst [vmem:[%s284 + $0x2c0] sm:$0xff] %v5678
          %5807 = vst [vmem:[%s284 + $0x2c8] sm:$0xff] %v5679
          %5808 = vst [vmem:[%s284 + $0x2d0] sm:$0xff] %v5680
          %5809 = vst [vmem:[%s284 + $0x2d8] sm:$0xff] %v5681
          %5810 = vst [vmem:[%s284 + $0x2e0] sm:$0xff] %v5682
          %5811 = vst [vmem:[%s284 + $0x2e8] sm:$0xff] %v5683
          %5812 = vst [vmem:[%s284 + $0x2f0] sm:$0xff] %v5684
          %5813 = vst [vmem:[%s284 + $0x2f8] sm:$0xff] %v5685
          %5814 = vst [vmem:[%s284 + $0x300] sm:$0xff] %v5686
          %5815 = vst [vmem:[%s284 + $0x308] sm:$0xff] %v5687
          %5816 = vst [vmem:[%s284 + $0x310] sm:$0xff] %v5688
          %5817 = vst [vmem:[%s284 + $0x318] sm:$0xff] %v5689
          %5818 = vst [vmem:[%s284 + $0x320] sm:$0xff] %v5690
          %5819 = vst [vmem:[%s284 + $0x328] sm:$0xff] %v5691
          %5820 = vst [vmem:[%s284 + $0x330] sm:$0xff] %v5692
          %5821 = vst [vmem:[%s284 + $0x338] sm:$0xff] %v5693
          %5822 = vst [vmem:[%s284 + $0x340] sm:$0xff] %v5694
          %5823 = vst [vmem:[%s284 + $0x348] sm:$0xff] %v5695
          %5824 = vst [vmem:[%s284 + $0x350] sm:$0xff] %v5696
          %5825 = vst [vmem:[%s284 + $0x358] sm:$0xff] %v5697
          %5826 = vst [vmem:[%s284 + $0x360] sm:$0xff] %v5698
          %5827 = vst [vmem:[%s284 + $0x368] sm:$0xff] %v5699
          %5828 = vst [vmem:[%s284 + $0x370] sm:$0xff] %v5700
          %5829 = vst [vmem:[%s284 + $0x378] sm:$0xff] %v5701
          %5830 = vst [vmem:[%s284 + $0x380] sm:$0xff] %v5702
          %5831 = vst [vmem:[%s284 + $0x388] sm:$0xff] %v5703
          %5832 = vst [vmem:[%s284 + $0x390] sm:$0xff] %v5704
          %5833 = vst [vmem:[%s284 + $0x398] sm:$0xff] %v5705
          %5834 = vst [vmem:[%s284 + $0x3a0] sm:$0xff] %v5706
          %5835 = vst [vmem:[%s284 + $0x3a8] sm:$0xff] %v5707
          %5836 = vst [vmem:[%s284 + $0x3b0] sm:$0xff] %v5708
          %5837 = vst [vmem:[%s284 + $0x3b8] sm:$0xff] %v5709
          %5838 = vst [vmem:[%s284 + $0x3c0] sm:$0xff] %v5710
          %5839 = vst [vmem:[%s284 + $0x3c8] sm:$0xff] %v5711
          %5840 = vst [vmem:[%s284 + $0x3d0] sm:$0xff] %v5712
          %5841 = vst [vmem:[%s284 + $0x3d8] sm:$0xff] %v5713
          %5842 = vst [vmem:[%s284 + $0x3e0] sm:$0xff] %v5714
          %5843 = vst [vmem:[%s284 + $0x3e8] sm:$0xff] %v5715
          %5844 = vst [vmem:[%s284 + $0x3f0] sm:$0xff] %v5716
          %5845 = vst [vmem:[%s284 + $0x3f8] sm:$0xff] %v5717
        $region52: #{tpu_custom_call.1} parent=31 // pred_fallthru
          _
        %s5846 = sand.u32 %s134, 1
        %s5847 = scalar_lea.sflag [#allocation4], %s5846
        %s5848 = sand.u32 %s134, 1
        %s5849 = smul.addr %s5848, 1024
        %s5850 = scalar_lea.vmem [#allocation8], %s5849
        // Predicated region
        $region53: #{tpu_custom_call.1} parent=31 // pred_check
          %p5851 = pneg %p144
        $region54: #{tpu_custom_call.1} parent=31 // pred_check_branch
          %5853 = sbr.rel (%p5851) target = $region56
        $region55: #{tpu_custom_call.1} parent=31 // pred_region
          %s5854 = smul.u32 32, %s28
          %s5855 = smul.u32 4, %s29
          %5857 = vsyncadd %s5847, 0
          %s5858 = smul.addr %s5854, 4
          %s5859 = sadd.s32 %s5855, %s5858
          %s5860 = smul.addr %s5859, 8
          %s5861 = scalar_lea.hbm %s3, %s5860
          %s5862 = sshll.u32 %s5850, 4
          %s5863 = int_to_ptr.vmem [resolvable:$true] %s5862
          %s5864 = sshll.u32 %s5861, 4
          %s5865 = int_to_ptr.hbm [resolvable:$true] %s5864
          %5870 = dma.vmem_to_hbm [thread:$0]  %s5863, 16384, %s5865, %s5847, 512, 512, 32
        $region56: #{tpu_custom_call.1} parent=31 // pred_fallthru
          _
      $region32: #{tpu_custom_call.1} parent=5 // pred_fallthru
        _
      %p5871 = scmp.le.s32.totalorder 2, %s18
      // Predicated region
      $region57: #{tpu_custom_call.1} parent=5 // pred_check
        %p5872 = pneg %p5871
      $region58: #{tpu_custom_call.1} parent=5 // pred_check_branch
        %5874 = sbr.rel (%p5872) target = $region60
      $region59: #{tpu_custom_call.1} parent=5 // pred_region
        %s5875 = ssub.s32 %s18, 2
        // Predicated region
        $region61: #{tpu_custom_call.1} parent=59 // pred_check
          %p5876 = pneg %p150
        $region62: #{tpu_custom_call.1} parent=59 // pred_check_branch
          %5878 = sbr.rel (%p5876) target = $region64
        $region63: #{tpu_custom_call.1} parent=59 // pred_region
          %s5879 = sand.u32 %s135, 1
          %s5880 = scalar_lea.sflag [#allocation4], %s5879
          %s5881 = sand.u32 %s135, 1
          %s5882 = smul.addr %s5881, 1024
          %s5883 = scalar_lea.vmem [#allocation8], %s5882
          %5885 = dma.done %s5880, 16384
        $region64: #{tpu_custom_call.1} parent=59 // pred_fallthru
          _
      $region60: #{tpu_custom_call.1} parent=5 // pred_fallthru
        _
    $region6: #{tpu_custom_call.1} parent=1 // loop_footer
      %s22 = sadd.s32 1, %s18
    $region7: #{tpu_custom_call.1} parent=1 // loop_footer_branch
      %17 = sbr.rel target = $region3
    $region8: #{tpu_custom_call.1} parent=1 // loop_exit
      _
    %5886 = vsyncpa [#allocation3], 1
    %s5887 = scalar_lea.sflag [#allocation3], 1
    %5888 = vsyncpa %s5887, 1
    %5889 = vsyncpa [#allocation6], 1
    %s5890 = scalar_lea.sflag [#allocation6], 1
    %5891 = vsyncpa %s5890, 1
    %5892 = vsyncpa [#allocation4], 1
    %s5893 = scalar_lea.sflag [#allocation4], 1
    %5894 = vsyncpa %s5893, 1

</llo_original>
